<compile_context>
chip_gen: v6e
topology: v6e:2x2x1
jax: 0.10.0
libtpu: 0.0.40
codegen_flags: <defaults>
</compile_context>

<pallas_src>
import functools

import jax
import jax.numpy as jnp
from jax.experimental import pallas as pl
from jax.experimental.pallas import tpu as pltpu


# ----------------------------- helpers --------------------------------------

def _shift_rows(a, s):
    """out[m] = a[m + s] for a 2-D (R, C) array, zero-filled outside [0, R)."""
    if s == 0:
        return a
    r, c = a.shape
    z = jnp.zeros((abs(s), c), a.dtype)
    if s > 0:
        return jnp.concatenate([a[s:, :], z], axis=0)
    return jnp.concatenate([z, a[:s, :]], axis=0)


def _row_tile(hw):
    """Largest row tile <= 512 that divides hw and is a multiple of 8."""
    for t in (512, 256, 128, 64, 32, 16, 8):
        if hw % t == 0:
            return t
    return hw


_VMEM_FULL = functools.partial(pl.BlockSpec, memory_space=pltpu.MemorySpace.VMEM)


# ----------------------------- Pallas kernels -------------------------------

def _expand_dw_gap_kernel(x_ref, w1_ref, s1_ref, b1_ref, dww_ref, s2_ref, b2_ref,
                          y_ref, gap_ref, *, h, w, k):
    """Fused: conv1(1x1) + BN1 + SiLU -> depthwise KxK + BN2 + SiLU, plus SE GAP.

    x_ref:   (1, H*W, C)      input plane of one batch element
    w1_ref:  (C, 4C)  bf16    1x1 expansion weights
    dww_ref: (K*K, 4C) f32    depthwise taps (row ki*K+kj)
    y_ref:   (1, H*W, 4C)     post-act2 output
    gap_ref: (1, 1, 4C)       global average pool of y (for the SE gate)
    """
    hw = h * w
    pad = k // 2

    x = x_ref[0]                                                   # (HW, C)
    # conv1 (1x1, C->4C) + BN1 + SiLU -- stays in VMEM, never written to HBM.
    e = jnp.dot(x.astype(jnp.bfloat16), w1_ref[...],
                preferred_element_type=jnp.float32)                # (HW, 4C)
    e = e * s1_ref[...] + b1_ref[...]
    e = e * jax.nn.sigmoid(e)
    c4 = e.shape[-1]

    # Depthwise KxK conv on the flattened plane: a spatial shift (di, dj) is a
    # row shift of di*W + dj, with a column mask for the W-edge wraparound.
    col = jax.lax.broadcasted_iota(jnp.int32, (hw, 1), 0) % w
    col_mask = {dj: jnp.logical_and(col + dj >= 0, col + dj < w).astype(jnp.float32)
                for dj in range(-pad, pad + 1)}

    acc = jnp.zeros((hw, c4), jnp.float32)
    for ki in range(k):
        di = ki - pad
        for kj in range(k):
            dj = kj - pad
            sh = _shift_rows(e, di * w + dj)                       # (HW, 4C)
            acc = acc + (sh * col_mask[dj]) * dww_ref[ki * k + kj]

    # BN2 + SiLU (RepUnit deploy form)
    y = acc * s2_ref[...] + b2_ref[...]
    y = y * jax.nn.sigmoid(y)
    y_ref[0] = y

    # SE global average pool folded into this pass (no extra full-tensor HBM read).
    gap_ref[0] = jnp.mean(y, axis=0, keepdims=True)                # (1, 4C)


def _se_gate_kernel(gap_ref, w1_ref, sbn_ref, bbn_ref, w2_ref, o_ref):
    """SE gate: pooled -> 1x1 -> BN -> ReLU -> 1x1 -> hardsigmoid. Tiny tensors."""
    p = gap_ref[:, 0, :]                                           # (N, 4C)
    g = jnp.dot(p, w1_ref[...], preferred_element_type=jnp.float32)
    g = jnp.maximum(g * sbn_ref[...] + bbn_ref[...], 0.0)
    s = jnp.dot(g, w2_ref[...], preferred_element_type=jnp.float32)
    o_ref[...] = jnp.clip((s + 3.0) / 6.0, 0.0, 1.0)[:, None, :]   # (N, 1, 4C)


def _se_scale_conv3_add_silu_kernel(y_ref, g_ref, w3_ref, s3_ref, b3_ref,
                                    skip_ref, o_ref):
    """Fused: SE channel scale -> conv3(1x1, 4C->C) + BN3 -> +skip -> SiLU.

    y_ref:    (1, TM, 4C)   post-act2 tile
    g_ref:    (1, 1, 4C)    SE gate for this batch element
    skip_ref: (1, TM, C)    residual input tile
    """
    ys = y_ref[0] * g_ref[0]                                       # SE scaling
    z = jnp.dot(ys.astype(jnp.bfloat16), w3_ref[...],
                preferred_element_type=jnp.float32)                # (TM, C)
    z = z * s3_ref[...] + b3_ref[...] + skip_ref[0]
    o_ref[0] = z * jax.nn.sigmoid(z)


# ------------------------------ Wrapper (glue) ------------------------------

def bn_affine(key, ch, eps=1e-5):
    """Eval-mode BatchNorm folded into (scale, bias), shape (1, ch)."""
    kg, kb = jax.random.split(key)
    gamma = jax.random.uniform(kg, (ch,), jnp.float32, 0.5, 1.5)
    beta = jax.random.uniform(kb, (ch,), jnp.float32, -0.1, 0.1)
    running_mean = jnp.zeros((ch,), jnp.float32)
    running_var = jnp.ones((ch,), jnp.float32)
    scale = gamma / jnp.sqrt(running_var + eps)
    bias = beta - running_mean * scale
    return scale.reshape(1, ch), bias.reshape(1, ch)


def init_params(key, size, kernel_size):
    expand = 4 * size
    se_e = max(expand // 4, 8)
    ks = jax.random.split(key, 10)
    p = {}
    p["conv1_w"] = 0.1 * jax.random.normal(ks[0], (size, expand), jnp.float32)
    p["bn1_scale"], p["bn1_bias"] = bn_affine(ks[1], expand)
    p["dw_w"] = 0.1 * jax.random.normal(ks[2], (kernel_size * kernel_size, expand), jnp.float32)
    p["bn2_scale"], p["bn2_bias"] = bn_affine(ks[3], expand)
    p["se_w1"] = 0.1 * jax.random.normal(ks[4], (expand, se_e), jnp.float32)
    p["se_bn_scale"], p["se_bn_bias"] = bn_affine(ks[5], se_e)
    p["se_w2"] = 0.1 * jax.random.normal(ks[6], (se_e, expand), jnp.float32)
    p["conv3_w"] = 0.1 * jax.random.normal(ks[7], (expand, size), jnp.float32)
    p["bn3_scale"], p["bn3_bias"] = bn_affine(ks[8], size)
    return p


@functools.partial(jax.jit, static_argnames=("kernel_size",))
def mobilenet_block(x_nchw, params, kernel_size):
    n, c, h, w = x_nchw.shape
    c4 = 4 * c
    hw = h * w
    k = kernel_size

    # NCHW -> (N, H*W, C); also serves as the residual (skip) input.
    x = jnp.transpose(x_nchw, (0, 2, 3, 1)).reshape(n, hw, c).astype(jnp.float32)

    # bf16 MXU operands (f32 accumulation inside the kernels).
    w1 = params["conv1_w"].astype(jnp.bfloat16)
    w3 = params["conv3_w"].astype(jnp.bfloat16)

    # ---- Kernel A: conv1+BN1+SiLU -> depthwise KxK + BN2 + SiLU, + SE GAP ----
    kern_a = functools.partial(_expand_dw_gap_kernel, h=h, w=w, k=k)
    y, gap = pl.pallas_call(
        kern_a,
        grid=(n,),
        in_specs=[
            pl.BlockSpec((1, hw, c), lambda i: (i, 0, 0)),
            pl.BlockSpec((c, c4), lambda i: (0, 0)),
            pl.BlockSpec((1, c4), lambda i: (0, 0)),
            pl.BlockSpec((1, c4), lambda i: (0, 0)),
            pl.BlockSpec((k * k, c4), lambda i: (0, 0)),
            pl.BlockSpec((1, c4), lambda i: (0, 0)),
            pl.BlockSpec((1, c4), lambda i: (0, 0)),
        ],
        out_specs=(
            pl.BlockSpec((1, hw, c4), lambda i: (i, 0, 0)),
            pl.BlockSpec((1, 1, c4), lambda i: (i, 0, 0)),
        ),
        out_shape=(
            jax.ShapeDtypeStruct((n, hw, c4), jnp.float32),
            jax.ShapeDtypeStruct((n, 1, c4), jnp.float32),
        ),
        compiler_params=pltpu.CompilerParams(
            dimension_semantics=("parallel",),
            vmem_limit_bytes=32 * 1024 * 1024,
        ),
        cost_estimate=pl.CostEstimate(
            flops=2 * n * hw * c * c4 + 2 * n * hw * c4 * k * k,
            transcendentals=2 * n * hw * c4,
            bytes_accessed=4 * n * hw * (c + c4),
        ),
    )(x, w1, params["bn1_scale"], params["bn1_bias"],
      params["dw_w"], params["bn2_scale"], params["bn2_bias"])

    # ---- Kernel G: tiny SE gate (whole arrays are a few KB; no grid needed) ----
    gate = pl.pallas_call(
        _se_gate_kernel,
        out_shape=jax.ShapeDtypeStruct((n, 1, c4), jnp.float32),
        in_specs=[_VMEM_FULL() for _ in range(5)],
        out_specs=_VMEM_FULL(),
    )(gap, params["se_w1"], params["se_bn_scale"], params["se_bn_bias"],
      params["se_w2"])

    # ---- Kernel B: SE scale -> conv3 + BN3 -> +skip -> SiLU, tiled over rows ----
    tm = _row_tile(hw)
    out = pl.pallas_call(
        _se_scale_conv3_add_silu_kernel,
        grid=(n, hw // tm),
        in_specs=[
            pl.BlockSpec((1, tm, c4), lambda i, j: (i, j, 0)),
            pl.BlockSpec((1, 1, c4), lambda i, j: (i, 0, 0)),
            pl.BlockSpec((c4, c), lambda i, j: (0, 0)),
            pl.BlockSpec((1, c), lambda i, j: (0, 0)),
            pl.BlockSpec((1, c), lambda i, j: (0, 0)),
            pl.BlockSpec((1, tm, c), lambda i, j: (i, j, 0)),
        ],
        out_specs=pl.BlockSpec((1, tm, c), lambda i, j: (i, j, 0)),
        out_shape=jax.ShapeDtypeStruct((n, hw, c), jnp.float32),
        compiler_params=pltpu.CompilerParams(
            dimension_semantics=("parallel", "parallel"),
            vmem_limit_bytes=32 * 1024 * 1024,
        ),
        cost_estimate=pl.CostEstimate(
            flops=2 * n * hw * c4 * c + 2 * n * hw * c4,
            transcendentals=n * hw * c,
            bytes_accessed=4 * n * hw * (c4 + 2 * c),
        ),
    )(y, gate, w3, params["bn3_scale"], params["bn3_bias"], x)

    # (N, H*W, C) -> NCHW
    return jnp.transpose(out.reshape(n, h, w, c), (0, 3, 1, 2))


# ----------------------------------- main ------------------------------------

if __name__ == "__main__":
    key = jax.random.PRNGKey(0)
    k_x, k_p = jax.random.split(key)

    N, C, H, W = 2, 8, 16, 16
    KERNEL_SIZE = 3

    x = jax.random.normal(k_x, (N, C, H, W), jnp.float32)
    params = init_params(k_p, C, KERNEL_SIZE)

    y = mobilenet_block(x, params, KERNEL_SIZE)
    jax.block_until_ready(y)
    assert y.shape == (N, C, H, W), y.shape
    print("KERNEL_OK")
</pallas_src>

<mosaic_0001>
module attributes {stable_mosaic.version = 11 : i64} {
  func.func @_se_gate_kernel(%arg0: memref<2x1x32xf32, #tpu.memory_space<vmem>>, %arg1: memref<32x8xf32, #tpu.memory_space<vmem>>, %arg2: memref<1x8xf32, #tpu.memory_space<vmem>>, %arg3: memref<1x8xf32, #tpu.memory_space<vmem>>, %arg4: memref<8x32xf32, #tpu.memory_space<vmem>>, %arg5: memref<2x1x32xf32, #tpu.memory_space<vmem>>) attributes {dimension_semantics = [], scalar_prefetch = 0 : i64, scratch_operands = 0 : i64, tpu.core_type = #tpu.core_type<tc>} {
    %c0 = arith.constant 0 : index
    %c0_0 = arith.constant 0 : index
    %c0_1 = arith.constant 0 : index
    %0 = vector.load %arg0[%c0, %c0_0, %c0_1] : memref<2x1x32xf32, #tpu.memory_space<vmem>>, vector<2x1x32xf32>
    %1 = vector.shape_cast %0 : vector<2x1x32xf32> to vector<2x32xf32>
    %c0_2 = arith.constant 0 : index
    %c0_3 = arith.constant 0 : index
    %2 = vector.load %arg1[%c0_2, %c0_3] : memref<32x8xf32, #tpu.memory_space<vmem>>, vector<32x8xf32>
    %cst = arith.constant dense<0.000000e+00> : vector<2x8xf32>
    %3 = tpu.matmul %1, %2, %cst {dimension_numbers = #tpu.dot_dimension_numbers<[1], [0], [0], [1], [0, 0, 1, 1], [], []>} : vector<2x32xf32>, vector<32x8xf32>, vector<2x8xf32> -> vector<2x8xf32>
    %c0_4 = arith.constant 0 : index
    %c0_5 = arith.constant 0 : index
    %4 = vector.load %arg2[%c0_4, %c0_5] : memref<1x8xf32, #tpu.memory_space<vmem>>, vector<1x8xf32>
    %5 = vector.broadcast %4 : vector<1x8xf32> to vector<2x8xf32>
    %6 = arith.mulf %3, %5 : vector<2x8xf32>
    %c0_6 = arith.constant 0 : index
    %c0_7 = arith.constant 0 : index
    %7 = vector.load %arg3[%c0_6, %c0_7] : memref<1x8xf32, #tpu.memory_space<vmem>>, vector<1x8xf32>
    %8 = vector.broadcast %7 : vector<1x8xf32> to vector<2x8xf32>
    %9 = arith.addf %6, %8 : vector<2x8xf32>
    %cst_8 = arith.constant 0.000000e+00 : f32
    %10 = vector.broadcast %cst_8 : f32 to vector<2x8xf32>
    %11 = arith.maximumf %9, %10 : vector<2x8xf32>
    %c0_9 = arith.constant 0 : index
    %c0_10 = arith.constant 0 : index
    %12 = vector.load %arg4[%c0_9, %c0_10] : memref<8x32xf32, #tpu.memory_space<vmem>>, vector<8x32xf32>
    %cst_11 = arith.constant dense<0.000000e+00> : vector<2x32xf32>
    %13 = tpu.matmul %11, %12, %cst_11 {dimension_numbers = #tpu.dot_dimension_numbers<[1], [0], [0], [1], [0, 0, 1, 1], [], []>} : vector<2x8xf32>, vector<8x32xf32>, vector<2x32xf32> -> vector<2x32xf32>
    %cst_12 = arith.constant 3.000000e+00 : f32
    %14 = vector.broadcast %cst_12 : f32 to vector<2x32xf32>
    %15 = arith.addf %13, %14 : vector<2x32xf32>
    %cst_13 = arith.constant 6.000000e+00 : f32
    %16 = vector.broadcast %cst_13 : f32 to vector<2x32xf32>
    %17 = arith.divf %15, %16 : vector<2x32xf32>
    %cst_14 = arith.constant 0.000000e+00 : f32
    %cst_15 = arith.constant 1.000000e+00 : f32
    %18 = vector.broadcast %cst_14 : f32 to vector<2x32xf32>
    %19 = arith.maximumf %18, %17 : vector<2x32xf32>
    %20 = vector.broadcast %cst_15 : f32 to vector<2x32xf32>
    %21 = arith.minimumf %20, %19 : vector<2x32xf32>
    %22 = vector.shape_cast %21 : vector<2x32xf32> to vector<2x1x32xf32>
    %c0_16 = arith.constant 0 : index
    %c0_17 = arith.constant 0 : index
    %c0_18 = arith.constant 0 : index
    %23 = vector.load %arg5[%c0_16, %c0_17, %c0_18] : memref<2x1x32xf32, #tpu.memory_space<vmem>>, vector<2x1x32xf32>
    tpu.vector_store %arg5[%c0_16, %c0_17, %c0_18], %22 {strides = array<i32>} : memref<2x1x32xf32, #tpu.memory_space<vmem>>, vector<2x1x32xf32>,
    return
  }
}

module attributes {stable_mosaic.version = 11 : i64} {
  func.func @_se_scale_conv3_add_silu_kernel(%arg0: i32, %arg1: i32, %arg2: memref<1x256x32xf32, #tpu.memory_space<vmem>>, %arg3: memref<1x1x32xf32, #tpu.memory_space<vmem>>, %arg4: memref<32x8xbf16, #tpu.memory_space<vmem>>, %arg5: memref<1x8xf32, #tpu.memory_space<vmem>>, %arg6: memref<1x8xf32, #tpu.memory_space<vmem>>, %arg7: memref<1x256x8xf32, #tpu.memory_space<vmem>>, %arg8: memref<1x256x8xf32, #tpu.memory_space<vmem>>) attributes {dimension_semantics = [#tpu.dimension_semantics<parallel>, #tpu.dimension_semantics<parallel>], iteration_bounds = array<i64: 2, 1>, scalar_prefetch = 0 : i64, scratch_operands = 0 : i64, tpu.core_type = #tpu.core_type<tc>, window_params = [{transform_indices = @transform_0, window_bounds = array<i64: 1, 256, 32>}, {transform_indices = @transform_1, window_bounds = array<i64: 1, 1, 32>}, {pipeline_mode = #tpu.pipeline_mode<synchronous>, transform_indices = @transform_2, window_bounds = array<i64: 32, 8>}, {pipeline_mode = #tpu.pipeline_mode<synchronous>, transform_indices = @transform_3, window_bounds = array<i64: 1, 8>}, {pipeline_mode = #tpu.pipeline_mode<synchronous>, transform_indices = @transform_4, window_bounds = array<i64: 1, 8>}, {transform_indices = @transform_5, window_bounds = array<i64: 1, 256, 8>}, {transform_indices = @transform_6, window_bounds = array<i64: 1, 256, 8>}]} {
    %c0 = arith.constant 0 : index
    %c0_0 = arith.constant 0 : index
    %c0_1 = arith.constant 0 : index
    %0 = vector.load %arg2[%c0, %c0_0, %c0_1] : memref<1x256x32xf32, #tpu.memory_space<vmem>>, vector<1x256x32xf32>
    %1 = vector.shape_cast %0 : vector<1x256x32xf32> to vector<256x32xf32>
    %c0_2 = arith.constant 0 : index
    %c0_3 = arith.constant 0 : index
    %c0_4 = arith.constant 0 : index
    %2 = vector.load %arg3[%c0_2, %c0_3, %c0_4] : memref<1x1x32xf32, #tpu.memory_space<vmem>>, vector<1x1x32xf32>
    %3 = vector.shape_cast %2 : vector<1x1x32xf32> to vector<1x32xf32>
    %4 = vector.broadcast %3 : vector<1x32xf32> to vector<256x32xf32>
    %5 = arith.mulf %1, %4 : vector<256x32xf32>
    %6 = arith.truncf %5 : vector<256x32xf32> to vector<256x32xbf16>
    %c0_5 = arith.constant 0 : index
    %c0_6 = arith.constant 0 : index
    %7 = vector.load %arg4[%c0_5, %c0_6] : memref<32x8xbf16, #tpu.memory_space<vmem>>, vector<32x8xbf16>
    %cst = arith.constant dense<0.000000e+00> : vector<256x8xf32>
    %8 = tpu.matmul %6, %7, %cst {dimension_numbers = #tpu.dot_dimension_numbers<[1], [0], [0], [1], [0, 0, 1, 1], [], []>} : vector<256x32xbf16>, vector<32x8xbf16>, vector<256x8xf32> -> vector<256x8xf32>
    %c0_7 = arith.constant 0 : index
    %c0_8 = arith.constant 0 : index
    %9 = vector.load %arg5[%c0_7, %c0_8] : memref<1x8xf32, #tpu.memory_space<vmem>>, vector<1x8xf32>
    %10 = vector.broadcast %9 : vector<1x8xf32> to vector<256x8xf32>
    %11 = arith.mulf %8, %10 : vector<256x8xf32>
    %c0_9 = arith.constant 0 : index
    %c0_10 = arith.constant 0 : index
    %12 = vector.load %arg6[%c0_9, %c0_10] : memref<1x8xf32, #tpu.memory_space<vmem>>, vector<1x8xf32>
    %13 = vector.broadcast %12 : vector<1x8xf32> to vector<256x8xf32>
    %14 = arith.addf %11, %13 : vector<256x8xf32>
    %c0_11 = arith.constant 0 : index
    %c0_12 = arith.constant 0 : index
    %c0_13 = arith.constant 0 : index
    %15 = vector.load %arg7[%c0_11, %c0_12, %c0_13] : memref<1x256x8xf32, #tpu.memory_space<vmem>>, vector<1x256x8xf32>
    %16 = vector.shape_cast %15 : vector<1x256x8xf32> to vector<256x8xf32>
    %17 = arith.addf %14, %16 : vector<256x8xf32>
    %18 = arith.negf %17 : vector<256x8xf32>
    %19 = math.exp %18 : vector<256x8xf32>
    %cst_14 = arith.constant 1.000000e+00 : f32
    %20 = vector.broadcast %cst_14 : f32 to vector<256x8xf32>
    %21 = arith.addf %20, %19 : vector<256x8xf32>
    %22 = arith.divf %20, %21 : vector<256x8xf32>
    %23 = arith.mulf %17, %22 : vector<256x8xf32>
    %c0_15 = arith.constant 0 : index
    %c0_16 = arith.constant 0 : index
    %c0_17 = arith.constant 0 : index
    %24 = vector.load %arg8[%c0_15, %c0_16, %c0_17] : memref<1x256x8xf32, #tpu.memory_space<vmem>>, vector<1x256x8xf32>
    %25 = vector.shape_cast %24 : vector<1x256x8xf32> to vector<256x8xf32>
    %26 = vector.shape_cast %23 : vector<256x8xf32> to vector<1x256x8xf32>
    tpu.vector_store %arg8[%c0_15, %c0_16, %c0_17], %26 {strides = array<i32>} : memref<1x256x8xf32, #tpu.memory_space<vmem>>, vector<1x256x8xf32>,
    return
  }
  func.func @transform_0(%arg0: i32, %arg1: i32) -> (i32, i32, i32) {
    %c0_i32 = arith.constant 0 : i32
    %c0_i32_0 = arith.constant 0 : i32
    return %arg0, %arg1, %c0_i32 : i32, i32, i32
  }
  func.func @transform_1(%arg0: i32, %arg1: i32) -> (i32, i32, i32) {
    %c0_i32 = arith.constant 0 : i32
    %c0_i32_0 = arith.constant 0 : i32
    %c0_i32_1 = arith.constant 0 : i32
    return %arg0, %c0_i32, %c0_i32_0 : i32, i32, i32
  }
  func.func @transform_2(%arg0: i32, %arg1: i32) -> (i32, i32) {
    %c0_i32 = arith.constant 0 : i32
    %c0_i32_0 = arith.constant 0 : i32
    %c0_i32_1 = arith.constant 0 : i32
    return %c0_i32, %c0_i32_0 : i32, i32
  }
  func.func @transform_3(%arg0: i32, %arg1: i32) -> (i32, i32) {
    %c0_i32 = arith.constant 0 : i32
    %c0_i32_0 = arith.constant 0 : i32
    %c0_i32_1 = arith.constant 0 : i32
    return %c0_i32, %c0_i32_0 : i32, i32
  }
  func.func @transform_4(%arg0: i32, %arg1: i32) -> (i32, i32) {
    %c0_i32 = arith.constant 0 : i32
    %c0_i32_0 = arith.constant 0 : i32
    %c0_i32_1 = arith.constant 0 : i32
    return %c0_i32, %c0_i32_0 : i32, i32
  }
  func.func @transform_5(%arg0: i32, %arg1: i32) -> (i32, i32, i32) {
    %c0_i32 = arith.constant 0 : i32
    %c0_i32_0 = arith.constant 0 : i32
    return %arg0, %arg1, %c0_i32 : i32, i32, i32
  }
  func.func @transform_6(%arg0: i32, %arg1: i32) -> (i32, i32, i32) {
    %c0_i32 = arith.constant 0 : i32
    %c0_i32_0 = arith.constant 0 : i32
    return %arg0, %arg1, %c0_i32 : i32, i32, i32
  }
}

module attributes {stable_mosaic.version = 11 : i64} {
  func.func @_expand_dw_gap_kernel(%arg0: i32, %arg1: memref<1x256x8xf32, #tpu.memory_space<vmem>>, %arg2: memref<8x32xbf16, #tpu.memory_space<vmem>>, %arg3: memref<1x32xf32, #tpu.memory_space<vmem>>, %arg4: memref<1x32xf32, #tpu.memory_space<vmem>>, %arg5: memref<9x32xf32, #tpu.memory_space<vmem>>, %arg6: memref<1x32xf32, #tpu.memory_space<vmem>>, %arg7: memref<1x32xf32, #tpu.memory_space<vmem>>, %arg8: memref<1x256x32xf32, #tpu.memory_space<vmem>>, %arg9: memref<1x1x32xf32, #tpu.memory_space<vmem>>) attributes {dimension_semantics = [#tpu.dimension_semantics<parallel>], iteration_bounds = array<i64: 2>, scalar_prefetch = 0 : i64, scratch_operands = 0 : i64, tpu.core_type = #tpu.core_type<tc>, window_params = [{transform_indices = @transform_0, window_bounds = array<i64: 1, 256, 8>}, {pipeline_mode = #tpu.pipeline_mode<synchronous>, transform_indices = @transform_1, window_bounds = array<i64: 8, 32>}, {pipeline_mode = #tpu.pipeline_mode<synchronous>, transform_indices = @transform_2, window_bounds = array<i64: 1, 32>}, {pipeline_mode = #tpu.pipeline_mode<synchronous>, transform_indices = @transform_3, window_bounds = array<i64: 1, 32>}, {pipeline_mode = #tpu.pipeline_mode<synchronous>, transform_indices = @transform_4, window_bounds = array<i64: 9, 32>}, {pipeline_mode = #tpu.pipeline_mode<synchronous>, transform_indices = @transform_5, window_bounds = array<i64: 1, 32>}, {pipeline_mode = #tpu.pipeline_mode<synchronous>, transform_indices = @transform_6, window_bounds = array<i64: 1, 32>}, {transform_indices = @transform_7, window_bounds = array<i64: 1, 256, 32>}, {transform_indices = @transform_8, window_bounds = array<i64: 1, 1, 32>}]} {
    %c0 = arith.constant 0 : index
    %c0_0 = arith.constant 0 : index
    %c0_1 = arith.constant 0 : index
    %0 = vector.load %arg1[%c0, %c0_0, %c0_1] : memref<1x256x8xf32, #tpu.memory_space<vmem>>, vector<1x256x8xf32>
    %1 = vector.shape_cast %0 : vector<1x256x8xf32> to vector<256x8xf32>
    %2 = arith.truncf %1 : vector<256x8xf32> to vector<256x8xbf16>
    %c0_2 = arith.constant 0 : index
    %c0_3 = arith.constant 0 : index
    %3 = vector.load %arg2[%c0_2, %c0_3] : memref<8x32xbf16, #tpu.memory_space<vmem>>, vector<8x32xbf16>
    %cst = arith.constant dense<0.000000e+00> : vector<256x32xf32>
    %4 = tpu.matmul %2, %3, %cst {dimension_numbers = #tpu.dot_dimension_numbers<[1], [0], [0], [1], [0, 0, 1, 1], [], []>} : vector<256x8xbf16>, vector<8x32xbf16>, vector<256x32xf32> -> vector<256x32xf32>
    %c0_4 = arith.constant 0 : index
    %c0_5 = arith.constant 0 : index
    %5 = vector.load %arg3[%c0_4, %c0_5] : memref<1x32xf32, #tpu.memory_space<vmem>>, vector<1x32xf32>
    %6 = vector.broadcast %5 : vector<1x32xf32> to vector<256x32xf32>
    %7 = arith.mulf %4, %6 : vector<256x32xf32>
    %c0_6 = arith.constant 0 : index
    %c0_7 = arith.constant 0 : index
    %8 = vector.load %arg4[%c0_6, %c0_7] : memref<1x32xf32, #tpu.memory_space<vmem>>, vector<1x32xf32>
    %9 = vector.broadcast %8 : vector<1x32xf32> to vector<256x32xf32>
    %10 = arith.addf %7, %9 : vector<256x32xf32>
    %11 = arith.negf %10 : vector<256x32xf32>
    %12 = math.exp %11 : vector<256x32xf32>
    %cst_8 = arith.constant 1.000000e+00 : f32
    %13 = vector.broadcast %cst_8 : f32 to vector<256x32xf32>
    %14 = arith.addf %13, %12 : vector<256x32xf32>
    %15 = arith.divf %13, %14 : vector<256x32xf32>
    %16 = arith.mulf %10, %15 : vector<256x32xf32>
    %17 = tpu.iota {dimensions = array<i32: 0>} : vector<256x1xi32>
    %c16_i32 = arith.constant 16 : i32
    %c0_i32 = arith.constant 0 : i32
    %18 = arith.cmpi eq, %c16_i32, %c0_i32 : i32
    %c1_i32 = arith.constant 1 : i32
    %19 = arith.select %18, %c1_i32, %c16_i32 : i32
    %20 = vector.broadcast %19 : i32 to vector<256x1xi32>
    %21 = arith.remsi %17, %20 : vector<256x1xi32>
    %c0_i32_9 = arith.constant 0 : i32
    %22 = vector.broadcast %c0_i32_9 : i32 to vector<256x1xi32>
    %23 = arith.cmpi ne, %21, %22 : vector<256x1xi32>
    %c0_i32_10 = arith.constant 0 : i32
    %24 = vector.broadcast %c0_i32_10 : i32 to vector<256x1xi32>
    %25 = arith.cmpi slt, %21, %24 : vector<256x1xi32>
    %c0_i32_11 = arith.constant 0 : i32
    %26 = arith.cmpi slt, %19, %c0_i32_11 : i32
    %27 = vector.broadcast %26 : i1 to vector<256x1xi1>
    %28 = vector.broadcast %27 : vector<256x1xi1> to vector<256x1xi1>
    %29 = arith.xori %25, %28 : vector<256x1xi1>
    %30 = arith.andi %29, %23 : vector<256x1xi1>
    %31 = vector.broadcast %19 : i32 to vector<256x1xi32>
    %32 = arith.addi %21, %31 : vector<256x1xi32>
    %33 = arith.select %30, %32, %21 : vector<256x1xi1>, vector<256x1xi32>
    %c-1_i32 = arith.constant -1 : i32
    %34 = vector.broadcast %c-1_i32 : i32 to vector<256x1xi32>
    %35 = arith.addi %33, %34 : vector<256x1xi32>
    %c0_i32_12 = arith.constant 0 : i32
    %36 = vector.broadcast %c0_i32_12 : i32 to vector<256x1xi32>
    %37 = arith.cmpi sge, %35, %36 : vector<256x1xi32>
    %c-1_i32_13 = arith.constant -1 : i32
    %38 = vector.broadcast %c-1_i32_13 : i32 to vector<256x1xi32>
    %39 = arith.addi %33, %38 : vector<256x1xi32>
    %c16_i32_14 = arith.constant 16 : i32
    %40 = vector.broadcast %c16_i32_14 : i32 to vector<256x1xi32>
    %41 = arith.cmpi slt, %39, %40 : vector<256x1xi32>
    %42 = arith.andi %37, %41 : vector<256x1xi1>
    %43 = arith.extui %42 : vector<256x1xi1> to vector<256x1xi32>
    %44 = arith.sitofp %43 : vector<256x1xi32> to vector<256x1xf32>
    %c0_i32_15 = arith.constant 0 : i32
    %45 = vector.broadcast %c0_i32_15 : i32 to vector<256x1xi32>
    %46 = arith.addi %33, %45 : vector<256x1xi32>
    %c0_i32_16 = arith.constant 0 : i32
    %47 = vector.broadcast %c0_i32_16 : i32 to vector<256x1xi32>
    %48 = arith.cmpi sge, %46, %47 : vector<256x1xi32>
    %c0_i32_17 = arith.constant 0 : i32
    %49 = vector.broadcast %c0_i32_17 : i32 to vector<256x1xi32>
    %50 = arith.addi %33, %49 : vector<256x1xi32>
    %c16_i32_18 = arith.constant 16 : i32
    %51 = vector.broadcast %c16_i32_18 : i32 to vector<256x1xi32>
    %52 = arith.cmpi slt, %50, %51 : vector<256x1xi32>
    %53 = arith.andi %48, %52 : vector<256x1xi1>
    %54 = arith.extui %53 : vector<256x1xi1> to vector<256x1xi32>
    %55 = arith.sitofp %54 : vector<256x1xi32> to vector<256x1xf32>
    %c1_i32_19 = arith.constant 1 : i32
    %56 = vector.broadcast %c1_i32_19 : i32 to vector<256x1xi32>
    %57 = arith.addi %33, %56 : vector<256x1xi32>
    %c0_i32_20 = arith.constant 0 : i32
    %58 = vector.broadcast %c0_i32_20 : i32 to vector<256x1xi32>
    %59 = arith.cmpi sge, %57, %58 : vector<256x1xi32>
    %c1_i32_21 = arith.constant 1 : i32
    %60 = vector.broadcast %c1_i32_21 : i32 to vector<256x1xi32>
    %61 = arith.addi %33, %60 : vector<256x1xi32>
    %c16_i32_22 = arith.constant 16 : i32
    %62 = vector.broadcast %c16_i32_22 : i32 to vector<256x1xi32>
    %63 = arith.cmpi slt, %61, %62 : vector<256x1xi32>
    %64 = arith.andi %59, %63 : vector<256x1xi1>
    %65 = arith.extui %64 : vector<256x1xi1> to vector<256x1xi32>
    %66 = arith.sitofp %65 : vector<256x1xi32> to vector<256x1xf32>
    %cst_23 = arith.constant 0.000000e+00 : f32
    %67 = vector.broadcast %cst_23 : f32 to vector<256x32xf32>
    %cst_24 = arith.constant 0.000000e+00 : f32
    %68 = vector.broadcast %cst_24 : f32 to vector<17x32xf32>
    %69 = vector.extract_strided_slice %16 {offsets = [0, 0], sizes = [239, 32], strides = [1, 1]} : vector<256x32xf32> to vector<239x32xf32>
    %70 = tpu.concatenate %68, %69 in 0 : vector<17x32xf32>, vector<239x32xf32> -> vector<256x32xf32>
    %71 = vector.broadcast %44 : vector<256x1xf32> to vector<256x32xf32>
    %72 = arith.mulf %70, %71 : vector<256x32xf32>
    %c0_25 = arith.constant 0 : index
    %c0_26 = arith.constant 0 : index
    %73 = vector.load %arg5[%c0_25, %c0_26] : memref<9x32xf32, #tpu.memory_space<vmem>>, vector<1x32xf32>
    %74 = vector.shape_cast %73 : vector<1x32xf32> to vector<32xf32>
    %75 = vector.shape_cast %74 : vector<32xf32> to vector<1x32xf32>
    %76 = vector.broadcast %75 : vector<1x32xf32> to vector<256x32xf32>
    %77 = arith.mulf %72, %76 : vector<256x32xf32>
    %78 = arith.addf %67, %77 : vector<256x32xf32>
    %cst_27 = arith.constant 0.000000e+00 : f32
    %79 = vector.broadcast %cst_27 : f32 to vector<16x32xf32>
    %80 = vector.extract_strided_slice %16 {offsets = [0, 0], sizes = [240, 32], strides = [1, 1]} : vector<256x32xf32> to vector<240x32xf32>
    %81 = tpu.concatenate %79, %80 in 0 : vector<16x32xf32>, vector<240x32xf32> -> vector<256x32xf32>
    %82 = vector.broadcast %55 : vector<256x1xf32> to vector<256x32xf32>
    %83 = arith.mulf %81, %82 : vector<256x32xf32>
    %c1 = arith.constant 1 : index
    %c0_28 = arith.constant 0 : index
    %84 = vector.load %arg5[%c1, %c0_28] : memref<9x32xf32, #tpu.memory_space<vmem>>, vector<1x32xf32>
    %85 = vector.shape_cast %84 : vector<1x32xf32> to vector<32xf32>
    %86 = vector.shape_cast %85 : vector<32xf32> to vector<1x32xf32>
    %87 = vector.broadcast %86 : vector<1x32xf32> to vector<256x32xf32>
    %88 = arith.mulf %83, %87 : vector<256x32xf32>
    %89 = arith.addf %78, %88 : vector<256x32xf32>
    %cst_29 = arith.constant 0.000000e+00 : f32
    %90 = vector.broadcast %cst_29 : f32 to vector<15x32xf32>
    %91 = vector.extract_strided_slice %16 {offsets = [0, 0], sizes = [241, 32], strides = [1, 1]} : vector<256x32xf32> to vector<241x32xf32>
    %92 = tpu.concatenate %90, %91 in 0 : vector<15x32xf32>, vector<241x32xf32> -> vector<256x32xf32>
    %93 = vector.broadcast %66 : vector<256x1xf32> to vector<256x32xf32>
    %94 = arith.mulf %92, %93 : vector<256x32xf32>
    %c2 = arith.constant 2 : index
    %c0_30 = arith.constant 0 : index
    %95 = vector.load %arg5[%c2, %c0_30] : memref<9x32xf32, #tpu.memory_space<vmem>>, vector<1x32xf32>
    %96 = vector.shape_cast %95 : vector<1x32xf32> to vector<32xf32>
    %97 = vector.shape_cast %96 : vector<32xf32> to vector<1x32xf32>
    %98 = vector.broadcast %97 : vector<1x32xf32> to vector<256x32xf32>
    %99 = arith.mulf %94, %98 : vector<256x32xf32>
    %100 = arith.addf %89, %99 : vector<256x32xf32>
    %cst_31 = arith.constant 0.000000e+00 : f32
    %101 = vector.broadcast %cst_31 : f32 to vector<1x32xf32>
    %102 = vector.extract_strided_slice %16 {offsets = [0, 0], sizes = [255, 32], strides = [1, 1]} : vector<256x32xf32> to vector<255x32xf32>
    %103 = tpu.concatenate %101, %102 in 0 : vector<1x32xf32>, vector<255x32xf32> -> vector<256x32xf32>
    %104 = vector.broadcast %44 : vector<256x1xf32> to vector<256x32xf32>
    %105 = arith.mulf %103, %104 : vector<256x32xf32>
    %c3 = arith.constant 3 : index
    %c0_32 = arith.constant 0 : index
    %106 = vector.load %arg5[%c3, %c0_32] : memref<9x32xf32, #tpu.memory_space<vmem>>, vector<1x32xf32>
    %107 = vector.shape_cast %106 : vector<1x32xf32> to vector<32xf32>
    %108 = vector.shape_cast %107 : vector<32xf32> to vector<1x32xf32>
    %109 = vector.broadcast %108 : vector<1x32xf32> to vector<256x32xf32>
    %110 = arith.mulf %105, %109 : vector<256x32xf32>
    %111 = arith.addf %100, %110 : vector<256x32xf32>
    %112 = vector.broadcast %55 : vector<256x1xf32> to vector<256x32xf32>
    %113 = arith.mulf %16, %112 : vector<256x32xf32>
    %c4 = arith.constant 4 : index
    %c0_33 = arith.constant 0 : index
    %114 = vector.load %arg5[%c4, %c0_33] : memref<9x32xf32, #tpu.memory_space<vmem>>, vector<1x32xf32>
    %115 = vector.shape_cast %114 : vector<1x32xf32> to vector<32xf32>
    %116 = vector.shape_cast %115 : vector<32xf32> to vector<1x32xf32>
    %117 = vector.broadcast %116 : vector<1x32xf32> to vector<256x32xf32>
    %118 = arith.mulf %113, %117 : vector<256x32xf32>
    %119 = arith.addf %111, %118 : vector<256x32xf32>
    %cst_34 = arith.constant 0.000000e+00 : f32
    %120 = vector.broadcast %cst_34 : f32 to vector<1x32xf32>
    %121 = vector.extract_strided_slice %16 {offsets = [1, 0], sizes = [255, 32], strides = [1, 1]} : vector<256x32xf32> to vector<255x32xf32>
    %122 = tpu.concatenate %121, %120 in 0 : vector<255x32xf32>, vector<1x32xf32> -> vector<256x32xf32>
    %123 = vector.broadcast %66 : vector<256x1xf32> to vector<256x32xf32>
    %124 = arith.mulf %122, %123 : vector<256x32xf32>
    %c5 = arith.constant 5 : index
    %c0_35 = arith.constant 0 : index
    %125 = vector.load %arg5[%c5, %c0_35] : memref<9x32xf32, #tpu.memory_space<vmem>>, vector<1x32xf32>
    %126 = vector.shape_cast %125 : vector<1x32xf32> to vector<32xf32>
    %127 = vector.shape_cast %126 : vector<32xf32> to vector<1x32xf32>
    %128 = vector.broadcast %127 : vector<1x32xf32> to vector<256x32xf32>
    %129 = arith.mulf %124, %128 : vector<256x32xf32>
    %130 = arith.addf %119, %129 : vector<256x32xf32>
    %cst_36 = arith.constant 0.000000e+00 : f32
    %131 = vector.broadcast %cst_36 : f32 to vector<15x32xf32>
    %132 = vector.extract_strided_slice %16 {offsets = [15, 0], sizes = [241, 32], strides = [1, 1]} : vector<256x32xf32> to vector<241x32xf32>
    %133 = tpu.concatenate %132, %131 in 0 : vector<241x32xf32>, vector<15x32xf32> -> vector<256x32xf32>
    %134 = vector.broadcast %44 : vector<256x1xf32> to vector<256x32xf32>
    %135 = arith.mulf %133, %134 : vector<256x32xf32>
    %c6 = arith.constant 6 : index
    %c0_37 = arith.constant 0 : index
    %136 = vector.load %arg5[%c6, %c0_37] : memref<9x32xf32, #tpu.memory_space<vmem>>, vector<1x32xf32>
    %137 = vector.shape_cast %136 : vector<1x32xf32> to vector<32xf32>
    %138 = vector.shape_cast %137 : vector<32xf32> to vector<1x32xf32>
    %139 = vector.broadcast %138 : vector<1x32xf32> to vector<256x32xf32>
    %140 = arith.mulf %135, %139 : vector<256x32xf32>
    %141 = arith.addf %130, %140 : vector<256x32xf32>
    %cst_38 = arith.constant 0.000000e+00 : f32
    %142 = vector.broadcast %cst_38 : f32 to vector<16x32xf32>
    %143 = vector.extract_strided_slice %16 {offsets = [16, 0], sizes = [240, 32], strides = [1, 1]} : vector<256x32xf32> to vector<240x32xf32>
    %144 = tpu.concatenate %143, %142 in 0 : vector<240x32xf32>, vector<16x32xf32> -> vector<256x32xf32>
    %145 = vector.broadcast %55 : vector<256x1xf32> to vector<256x32xf32>
    %146 = arith.mulf %144, %145 : vector<256x32xf32>
    %c7 = arith.constant 7 : index
    %c0_39 = arith.constant 0 : index
    %147 = vector.load %arg5[%c7, %c0_39] : memref<9x32xf32, #tpu.memory_space<vmem>>, vector<1x32xf32>
    %148 = vector.shape_cast %147 : vector<1x32xf32> to vector<32xf32>
    %149 = vector.shape_cast %148 : vector<32xf32> to vector<1x32xf32>
    %150 = vector.broadcast %149 : vector<1x32xf32> to vector<256x32xf32>
    %151 = arith.mulf %146, %150 : vector<256x32xf32>
    %152 = arith.addf %141, %151 : vector<256x32xf32>
    %cst_40 = arith.constant 0.000000e+00 : f32
    %153 = vector.broadcast %cst_40 : f32 to vector<17x32xf32>
    %154 = vector.extract_strided_slice %16 {offsets = [17, 0], sizes = [239, 32], strides = [1, 1]} : vector<256x32xf32> to vector<239x32xf32>
    %155 = tpu.concatenate %154, %153 in 0 : vector<239x32xf32>, vector<17x32xf32> -> vector<256x32xf32>
    %156 = vector.broadcast %66 : vector<256x1xf32> to vector<256x32xf32>
    %157 = arith.mulf %155, %156 : vector<256x32xf32>
    %c8 = arith.constant 8 : index
    %c0_41 = arith.constant 0 : index
    %158 = vector.load %arg5[%c8, %c0_41] : memref<9x32xf32, #tpu.memory_space<vmem>>, vector<1x32xf32>
    %159 = vector.shape_cast %158 : vector<1x32xf32> to vector<32xf32>
    %160 = vector.shape_cast %159 : vector<32xf32> to vector<1x32xf32>
    %161 = vector.broadcast %160 : vector<1x32xf32> to vector<256x32xf32>
    %162 = arith.mulf %157, %161 : vector<256x32xf32>
    %163 = arith.addf %152, %162 : vector<256x32xf32>
    %c0_42 = arith.constant 0 : index
    %c0_43 = arith.constant 0 : index
    %164 = vector.load %arg6[%c0_42, %c0_43] : memref<1x32xf32, #tpu.memory_space<vmem>>, vector<1x32xf32>
    %165 = vector.broadcast %164 : vector<1x32xf32> to vector<256x32xf32>
    %166 = arith.mulf %163, %165 : vector<256x32xf32>
    %c0_44 = arith.constant 0 : index
    %c0_45 = arith.constant 0 : index
    %167 = vector.load %arg7[%c0_44, %c0_45] : memref<1x32xf32, #tpu.memory_space<vmem>>, vector<1x32xf32>
    %168 = vector.broadcast %167 : vector<1x32xf32> to vector<256x32xf32>
    %169 = arith.addf %166, %168 : vector<256x32xf32>
    %170 = arith.negf %169 : vector<256x32xf32>
    %171 = math.exp %170 : vector<256x32xf32>
    %cst_46 = arith.constant 1.000000e+00 : f32
    %172 = vector.broadcast %cst_46 : f32 to vector<256x32xf32>
    %173 = arith.addf %172, %171 : vector<256x32xf32>
    %174 = arith.divf %172, %173 : vector<256x32xf32>
    %175 = arith.mulf %169, %174 : vector<256x32xf32>
    %c0_47 = arith.constant 0 : index
    %c0_48 = arith.constant 0 : index
    %c0_49 = arith.constant 0 : index
    %176 = vector.load %arg8[%c0_47, %c0_48, %c0_49] : memref<1x256x32xf32, #tpu.memory_space<vmem>>, vector<1x256x32xf32>
    %177 = vector.shape_cast %176 : vector<1x256x32xf32> to vector<256x32xf32>
    %178 = vector.shape_cast %175 : vector<256x32xf32> to vector<1x256x32xf32>
    tpu.vector_store %arg8[%c0_47, %c0_48, %c0_49], %178 {strides = array<i32>} : memref<1x256x32xf32, #tpu.memory_space<vmem>>, vector<1x256x32xf32>,
    %cst_50 = arith.constant dense<0.000000e+00> : vector<32xf32>
    %179 = vector.multi_reduction <add>, %175, %cst_50 [0] : vector<256x32xf32> to vector<32xf32>
    %180 = vector.shape_cast %179 : vector<32xf32> to vector<1x32xf32>
    %cst_51 = arith.constant 2.560000e+02 : f32
    %181 = vector.broadcast %cst_51 : f32 to vector<1x32xf32>
    %182 = arith.divf %180, %181 : vector<1x32xf32>
    %c0_52 = arith.constant 0 : index
    %c0_53 = arith.constant 0 : index
    %c0_54 = arith.constant 0 : index
    %183 = vector.load %arg9[%c0_52, %c0_53, %c0_54] : memref<1x1x32xf32, #tpu.memory_space<vmem>>, vector<1x1x32xf32>
    %184 = vector.shape_cast %183 : vector<1x1x32xf32> to vector<1x32xf32>
    %185 = vector.shape_cast %182 : vector<1x32xf32> to vector<1x1x32xf32>
    tpu.vector_store %arg9[%c0_52, %c0_53, %c0_54], %185 {strides = array<i32>} : memref<1x1x32xf32, #tpu.memory_space<vmem>>, vector<1x1x32xf32>,
    return
  }
  func.func @transform_0(%arg0: i32) -> (i32, i32, i32) {
    %c0_i32 = arith.constant 0 : i32
    %c0_i32_0 = arith.constant 0 : i32
    %c0_i32_1 = arith.constant 0 : i32
    return %arg0, %c0_i32, %c0_i32_0 : i32, i32, i32
  }
  func.func @transform_1(%arg0: i32) -> (i32, i32) {
    %c0_i32 = arith.constant 0 : i32
    %c0_i32_0 = arith.constant 0 : i32
    %c0_i32_1 = arith.constant 0 : i32
    return %c0_i32, %c0_i32_0 : i32, i32
  }
  func.func @transform_2(%arg0: i32) -> (i32, i32) {
    %c0_i32 = arith.constant 0 : i32
    %c0_i32_0 = arith.constant 0 : i32
    %c0_i32_1 = arith.constant 0 : i32
    return %c0_i32, %c0_i32_0 : i32, i32
  }
  func.func @transform_3(%arg0: i32) -> (i32, i32) {
    %c0_i32 = arith.constant 0 : i32
    %c0_i32_0 = arith.constant 0 : i32
    %c0_i32_1 = arith.constant 0 : i32
    return %c0_i32, %c0_i32_0 : i32, i32
  }
  func.func @transform_4(%arg0: i32) -> (i32, i32) {
    %c0_i32 = arith.constant 0 : i32
    %c0_i32_0 = arith.constant 0 : i32
    %c0_i32_1 = arith.constant 0 : i32
    return %c0_i32, %c0_i32_0 : i32, i32
  }
  func.func @transform_5(%arg0: i32) -> (i32, i32) {
    %c0_i32 = arith.constant 0 : i32
    %c0_i32_0 = arith.constant 0 : i32
    %c0_i32_1 = arith.constant 0 : i32
    return %c0_i32, %c0_i32_0 : i32, i32
  }
  func.func @transform_6(%arg0: i32) -> (i32, i32) {
    %c0_i32 = arith.constant 0 : i32
    %c0_i32_0 = arith.constant 0 : i32
    %c0_i32_1 = arith.constant 0 : i32
    return %c0_i32, %c0_i32_0 : i32, i32
  }
  func.func @transform_7(%arg0: i32) -> (i32, i32, i32) {
    %c0_i32 = arith.constant 0 : i32
    %c0_i32_0 = arith.constant 0 : i32
    %c0_i32_1 = arith.constant 0 : i32
    return %arg0, %c0_i32, %c0_i32_0 : i32, i32, i32
  }
  func.func @transform_8(%arg0: i32) -> (i32, i32, i32) {
    %c0_i32 = arith.constant 0 : i32
    %c0_i32_0 = arith.constant 0 : i32
    %c0_i32_1 = arith.constant 0 : i32
    return %arg0, %c0_i32, %c0_i32_0 : i32, i32, i32
  }
}

</mosaic_0001>

<llo_original>
// kernel: mobilenet_block.4
$region0: #{mobilenet_block.4}
  #allocation0 [shape = 'u32[]', space=smem, size = 0x4, offset = 0x4, fixed_abs, tag = 'smem constant byte address 0x4 - core index']
  #allocation1 [shape = 'u32[144,128]{1,0:T(1,128)}', space=vmem, size = 0x12000, scoped, tag = 'internal scratch']
  %s0 = inlined_call_operand.vmem [shape: f32[2,1,32], index: 0, kind: input, shape index: {}]
  %s1 = inlined_call_operand.vmem [shape: f32[32,8], index: 1, kind: input, shape index: {}]
  %s2 = inlined_call_operand.vmem [shape: f32[1,8], index: 2, kind: input, shape index: {}]
  %s3 = inlined_call_operand.vmem [shape: f32[1,8], index: 3, kind: input, shape index: {}]
  %s4 = inlined_call_operand.vmem [shape: f32[8,32], index: 4, kind: input, shape index: {}]
  %s5 = inlined_call_operand.vmem [shape: f32[2,1,32], index: 5, kind: output, shape index: {}]
  %s6 = sld [smem:[#allocation0]]
  $region30: #{mobilenet_block.4} parent=0
    _
  %s8 = ssub.s32 1, %s6
  %s9 = scalar_select 0, %s8, %s6
  // Predicated region
  $region2: #{mobilenet_block.4} parent=0 // pred_check
    _
  $region3: #{mobilenet_block.4} parent=0 // pred_check_branch
    %11 = sbr.rel (0) target = $region5
  $region4: #{mobilenet_block.4} parent=0 // pred_region
    _
  $region5: #{mobilenet_block.4} parent=0 // pred_fallthru
    _
  // Predicated region
  $region6: #{mobilenet_block.4} parent=0 // pred_check
    _
  $region7: #{mobilenet_block.4} parent=0 // pred_check_branch
    %13 = sbr.rel (0) target = $region9
  $region8: #{mobilenet_block.4} parent=0 // pred_region
    _
  $region9: #{mobilenet_block.4} parent=0 // pred_fallthru
    _
  // Predicated region
  $region10: #{mobilenet_block.4} parent=0 // pred_check
    _
  $region11: #{mobilenet_block.4} parent=0 // pred_check_branch
    %15 = sbr.rel (0) target = $region13
  $region12: #{mobilenet_block.4} parent=0 // pred_region
    _
  $region13: #{mobilenet_block.4} parent=0 // pred_fallthru
    _
  // Predicated region
  $region14: #{mobilenet_block.4} parent=0 // pred_check
    _
  $region15: #{mobilenet_block.4} parent=0 // pred_check_branch
    %17 = sbr.rel (0) target = $region17
  $region16: #{mobilenet_block.4} parent=0 // pred_region
    _
  $region17: #{mobilenet_block.4} parent=0 // pred_fallthru
    _
  // Predicated region
  $region18: #{mobilenet_block.4} parent=0 // pred_check
    _
  $region19: #{mobilenet_block.4} parent=0 // pred_check_branch
    %19 = sbr.rel (0) target = $region21
  $region20: #{mobilenet_block.4} parent=0 // pred_region
    _
  $region21: #{mobilenet_block.4} parent=0 // pred_fallthru
    _
  %v20 = vld [vmem:[%s0] sm:$0x1]
  %v21 = vld [vmem:[%s0 + $0x1] sm:$0x1]
  %v22 = vld [vmem:[%s1] sm:$0xff]
  %v23 = vld [vmem:[%s1 + $0x8] sm:$0xff]
  %v24 = vld [vmem:[%s1 + $0x10] sm:$0xff]
  %v25 = vld [vmem:[%s1 + $0x18] sm:$0xff]
  %v28 = vcombine.low %v20, %v21
  %v30 = vunpack.c.l.s4 1966171168
  %v31 = vunpack.c.0.s8 %v30
  %v32 = vlaneseq
  %v33 = vshrl.u32 %v32, 7
  %v34 = vsub.s32 %v31, %v33
  %v35 = vrot.slane %v28, %v34
  %v37 = vunpack.c.l.s4 1966171168
  %v38 = vunpack.c.0.s8 %v37
  %v39 = vlaneseq
  %v40 = vshrl.u32 %v39, 7
  %v41 = vsub.s32 %v38, %v40
  %v42 = vrot.slane %v35, %v41
  %vm43 = vcmask 261120
  %v44 = vsel %vm43, %v42, 0
  %46 = vmatprep.subr.mxu0 0.0
  %47 = vmatpush1.msra.mxu0 0.0
  %48 = vmatprep.subr.mxu0 0.0
  %49 = vmatpush1.msra.mxu0 0.0
  %50 = vmatprep.subr.mxu0 0.0
  %51 = vmatpush1.msra.mxu0 0.0
  %52 = vmatprep.subr.mxu0 0.0
  %53 = vmatpush1.msra.mxu0 0.0
  %54 = vmatprep.subr.mxu0 0.0
  %55 = vmatpush1.msra.mxu0 0.0
  %56 = vmatprep.subr.mxu0 0.0
  %57 = vmatpush1.msra.mxu0 0.0
  %58 = vmatprep.subr.mxu0 0.0
  %59 = vmatpush1.msra.mxu0 0.0
  %60 = vmatprep.subr.mxu0 0.0
  %61 = vmatpush1.msra.mxu0 0.0
  %62 = vmatprep.subr.mxu0 0.0
  %63 = vmatpush1.msra.mxu0 0.0
  %64 = vmatprep.subr.mxu0 0.0
  %65 = vmatpush1.msra.mxu0 0.0
  %66 = vmatprep.subr.mxu0 0.0
  %67 = vmatpush1.msra.mxu0 0.0
  %68 = vmatprep.subr.mxu0 0.0
  %69 = vmatpush1.msra.mxu0 0.0
  %70 = vmatprep.subr.mxu0 0.0
  %71 = vmatpush1.msra.mxu0 %v25
  %72 = vmatprep.subr.mxu0 0.0
  %73 = vmatpush1.msra.mxu0 %v24
  %74 = vmatprep.subr.mxu0 0.0
  %75 = vmatpush1.msra.mxu0 %v23
  %76 = vmatprep.subr.mxu0 0.0
  %77 = vmatpush1.msra.mxu0 %v22
  %78 = vmatprep.subr.mxu0 0.0
  %79 = vmatpush2.msra.mxu0 0.0
  %80 = vmatprep.subr.mxu0 0.0
  %81 = vmatpush2.msra.mxu0 0.0
  %82 = vmatprep.subr.mxu0 0.0
  %83 = vmatpush2.msra.mxu0 0.0
  %84 = vmatprep.subr.mxu0 0.0
  %85 = vmatpush2.msra.mxu0 0.0
  %86 = vmatprep.subr.mxu0 0.0
  %87 = vmatpush2.msra.mxu0 0.0
  %88 = vmatprep.subr.mxu0 0.0
  %89 = vmatpush2.msra.mxu0 0.0
  %90 = vmatprep.subr.mxu0 0.0
  %91 = vmatpush2.msra.mxu0 0.0
  %92 = vmatprep.subr.mxu0 0.0
  %93 = vmatpush2.msra.mxu0 0.0
  %94 = vmatprep.subr.mxu0 0.0
  %95 = vmatpush2.msra.mxu0 0.0
  %96 = vmatprep.subr.mxu0 0.0
  %97 = vmatpush2.msra.mxu0 0.0
  %98 = vmatprep.subr.mxu0 0.0
  %99 = vmatpush2.msra.mxu0 0.0
  %100 = vmatprep.subr.mxu0 0.0
  %101 = vmatpush2.msra.mxu0 0.0
  %102 = vmatprep.subr.mxu0 0.0
  %103 = vmatpush2.msra.mxu0 0.0
  %104 = vmatprep.subr.mxu0 0.0
  %105 = vmatpush2.msra.mxu0 0.0
  %106 = vmatprep.subr.mxu0 0.0
  %107 = vmatpush2.msra.mxu0 0.0
  %108 = vmatprep.subr.mxu0 0.0
  %109 = vmatpush2.msra.mxu0 0.0
  %110 = vmatprep.mubr.f32.mxu0 0.0
  %111 = vmatmul.mubr.f32.gmra.mxu0 %v44
  %v112 = vpop.f32.mrf.mxu0
  %v113 = vadd.f32 0.0, %v112
  %v114 = vpop.f32.mrf.mxu0
  %115 = vdwg.mxu0
  %v116 = vld [vmem:[%s2] sm:$0x1]
  %v118 = vlaneseq
  %v119 = vshrl.u32 %v118, 7
  %v120 = vsub.s32 0, %v119
  %v121 = vrot.slane %v116, %v120
  %v123 = vmul.f32 %v113, %v121
  %v124 = vld [vmem:[%s3] sm:$0x1]
  %v126 = vlaneseq
  %v127 = vshrl.u32 %v126, 7
  %v128 = vsub.s32 0, %v127
  %v129 = vrot.slane %v124, %v128
  %v131 = vadd.f32 %v123, %v129
  %v132 = vmax.f32 %v131, 0.0
  %v133 = vld [vmem:[%s4] sm:$0xff]
  %vm134 = vcmask 64512
  %v136 = vsel %vm134, %v132, 0
  %138 = vmatprep.subr.mxu0 0.0
  %139 = vmatpush1.msra.mxu0 0.0
  %140 = vmatprep.subr.mxu0 0.0
  %141 = vmatpush1.msra.mxu0 0.0
  %142 = vmatprep.subr.mxu0 0.0
  %143 = vmatpush1.msra.mxu0 0.0
  %144 = vmatprep.subr.mxu0 0.0
  %145 = vmatpush1.msra.mxu0 0.0
  %146 = vmatprep.subr.mxu0 0.0
  %147 = vmatpush1.msra.mxu0 0.0
  %148 = vmatprep.subr.mxu0 0.0
  %149 = vmatpush1.msra.mxu0 0.0
  %150 = vmatprep.subr.mxu0 0.0
  %151 = vmatpush1.msra.mxu0 0.0
  %152 = vmatprep.subr.mxu0 0.0
  %153 = vmatpush1.msra.mxu0 0.0
  %154 = vmatprep.subr.mxu0 0.0
  %155 = vmatpush1.msra.mxu0 0.0
  %156 = vmatprep.subr.mxu0 0.0
  %157 = vmatpush1.msra.mxu0 0.0
  %158 = vmatprep.subr.mxu0 0.0
  %159 = vmatpush1.msra.mxu0 0.0
  %160 = vmatprep.subr.mxu0 0.0
  %161 = vmatpush1.msra.mxu0 0.0
  %162 = vmatprep.subr.mxu0 0.0
  %163 = vmatpush1.msra.mxu0 0.0
  %164 = vmatprep.subr.mxu0 0.0
  %165 = vmatpush1.msra.mxu0 0.0
  %166 = vmatprep.subr.mxu0 0.0
  %167 = vmatpush1.msra.mxu0 0.0
  %168 = vmatprep.subr.mxu0 0.0
  %169 = vmatpush1.msra.mxu0 %v133
  %170 = vmatprep.subr.mxu0 0.0
  %171 = vmatpush2.msra.mxu0 0.0
  %172 = vmatprep.subr.mxu0 0.0
  %173 = vmatpush2.msra.mxu0 0.0
  %174 = vmatprep.subr.mxu0 0.0
  %175 = vmatpush2.msra.mxu0 0.0
  %176 = vmatprep.subr.mxu0 0.0
  %177 = vmatpush2.msra.mxu0 0.0
  %178 = vmatprep.subr.mxu0 0.0
  %179 = vmatpush2.msra.mxu0 0.0
  %180 = vmatprep.subr.mxu0 0.0
  %181 = vmatpush2.msra.mxu0 0.0
  %182 = vmatprep.subr.mxu0 0.0
  %183 = vmatpush2.msra.mxu0 0.0
  %184 = vmatprep.subr.mxu0 0.0
  %185 = vmatpush2.msra.mxu0 0.0
  %186 = vmatprep.subr.mxu0 0.0
  %187 = vmatpush2.msra.mxu0 0.0
  %188 = vmatprep.subr.mxu0 0.0
  %189 = vmatpush2.msra.mxu0 0.0
  %190 = vmatprep.subr.mxu0 0.0
  %191 = vmatpush2.msra.mxu0 0.0
  %192 = vmatprep.subr.mxu0 0.0
  %193 = vmatpush2.msra.mxu0 0.0
  %194 = vmatprep.subr.mxu0 0.0
  %195 = vmatpush2.msra.mxu0 0.0
  %196 = vmatprep.subr.mxu0 0.0
  %197 = vmatpush2.msra.mxu0 0.0
  %198 = vmatprep.subr.mxu0 0.0
  %199 = vmatpush2.msra.mxu0 0.0
  %200 = vmatprep.subr.mxu0 0.0
  %201 = vmatpush2.msra.mxu0 0.0
  %202 = vmatprep.mubr.f32.mxu0 0.0
  %203 = vmatmul.mubr.f32.gmra.mxu0 %v136
  %v204 = vpop.f32.mrf.mxu0
  %v205 = vadd.f32 3.0, %v204
  %v206 = vpop.f32.mrf.mxu0
  %207 = vdwg.mxu0
  %v208 = vrcp.pop 6.0
  %v209 = vmul.f32 %v205, %v208
  %v210 = vmax.f32 %v209, 0.0
  %v211 = vmin.f32 %v210, 1.0
  %v214 = vunpack.c.l.s4 1966171168
  %v215 = vunpack.c.0.s8 %v214
  %v216 = vlaneseq
  %v217 = vshrl.u32 %v216, 7
  %v218 = vsub.s32 %v215, %v217
  %v219 = vrot.slane %v211, %v218
  %v220 = vcombine.high %v219, %v219
  %v222 = vunpack.c.l.s4 1966171168
  %v223 = vunpack.c.0.s8 %v222
  %v224 = vlaneseq
  %v225 = vshrl.u32 %v224, 7
  %v226 = vsub.s32 %v223, %v225
  %v227 = vrot.slane %v219, %v226
  %v229 = vunpack.c.l.s4 1966171168
  %v230 = vunpack.c.0.s8 %v229
  %v231 = vlaneseq
  %v232 = vshrl.u32 %v231, 7
  %v233 = vsub.s32 %v230, %v232
  %v234 = vrot.slane %v220, %v233
  %vm237 = vcmask 253952
  %238 = vst.msk [vmem:[%s5] sm:$0x1] %vm237, %v227
  %239 = vst.msk [vmem:[%s5 + $0x1] sm:$0x1] %vm237, %v234
  // Predicated region
  $region22: #{mobilenet_block.4} parent=0 // pred_check
    _
  $region23: #{mobilenet_block.4} parent=0 // pred_check_branch
    %241 = sbr.rel (0) target = $region25
  $region24: #{mobilenet_block.4} parent=0 // pred_region
    _
  $region25: #{mobilenet_block.4} parent=0 // pred_fallthru
    _
  // Predicated region
  $region26: #{mobilenet_block.4} parent=0 // pred_check
    _
  $region27: #{mobilenet_block.4} parent=0 // pred_check_branch
    %243 = sbr.rel (0) target = $region29
  $region28: #{mobilenet_block.4} parent=0 // pred_region
    _
  $region29: #{mobilenet_block.4} parent=0 // pred_fallthru
    _

// kernel: mobilenet_block.5
$region0: #{mobilenet_block.5}
  #allocation0 [shape = 'u32[]', space=smem, size = 0x4, offset = 0x4, fixed_abs, tag = 'smem constant byte address 0x4 - core index']
  #allocation1 [shape = 'u32[144,128]{1,0:T(1,128)}', space=vmem, size = 0x12000, scoped, tag = 'internal scratch']
  %s0 = inlined_call_operand.vmem [shape: f32[2,256,32], index: 0, kind: input, shape index: {}]
  %s1 = inlined_call_operand.vmem [shape: f32[2,1,32], index: 1, kind: input, shape index: {}]
  %s2 = inlined_call_operand.vmem [shape: bf16[32,8], index: 2, kind: input, shape index: {}]
  %s3 = inlined_call_operand.vmem [shape: f32[1,8], index: 3, kind: input, shape index: {}]
  %s4 = inlined_call_operand.vmem [shape: f32[1,8], index: 4, kind: input, shape index: {}]
  %s5 = inlined_call_operand.vmem [shape: f32[2,256,8], index: 5, kind: input, shape index: {}]
  %s6 = inlined_call_operand.vmem [shape: f32[2,256,8], index: 6, kind: output, shape index: {}]
  %s7 = sld [smem:[#allocation0]]
  $region57: #{mobilenet_block.5} parent=0
    _
  %s9 = ssub.s32 1, %s7
  %s10 = scalar_select 0, %s9, %s7
  loop: start=0, step=1, limit=4
  $region2: #{mobilenet_block.5} parent=0 // loop_pre_header
    _
  $region3: #{mobilenet_block.5} parent=0 // loop_header
    %s12 = sphi 0, %s16
    %p13 = scmp.ge.s32.totalorder %s12, 4
    %s19 = sphi 0, %s31
    %s20 = sphi 0, %s27
    %s21 = sphi 0, %s19
    %s22 = sphi 0, %s20
    %s23 = sphi 0, %s21
    %s24 = sphi 0, %s22
    %s36 = sphi 0, %s38
    %s39 = sphi 0, %s36
    %s40 = sphi 0, %s39
    %s56 = sphi 0, %s40
    %s62 = sphi 0, %s64
    %s65 = sphi 0, %s62
    %s66 = sphi 0, %s65
    %s82 = sphi 0, %s66
    %s86 = sphi 0, %s86
    %s88 = sphi 0, %s86
    %s89 = sphi 0, %s88
    %s103 = sphi 0, %s89
    %s107 = sphi 0, %s107
    %s109 = sphi 0, %s107
    %s110 = sphi 0, %s109
    %s124 = sphi 0, %s110
    %s128 = sphi 0, %s128
    %s130 = sphi 0, %s128
    %s131 = sphi 0, %s130
    %s145 = sphi 0, %s131
    %s153 = sphi 0, %s155
    %s156 = sphi 0, %s153
    %s157 = sphi 0, %s156
    %s173 = sphi 0, %s157
    %s181 = sphi 0, %s183
    %s184 = sphi 0, %s181
    %s185 = sphi 0, %s184
    %s201 = sphi 0, %s185
  $region4: #{mobilenet_block.5} parent=0 // loop_header_branch
    %15 = sbr.rel (%p13) target = $region8
  $region5: #{mobilenet_block.5} parent=0 // loop_body
    %s17 = ssub.s32 %s12, 1
    %s18 = ssub.s32 %s12, 2
    %s25 = sadd.s32 1, %s20
    %p26 = scmp.ge.s32.totalorder %s25, 1
    %s27 = scalar_select %p26, 0, %s25
    %s28 = sadd.s32 1, %s19
    %s29 = scalar_select %p26, %s28, %s19
    %p30 = scmp.ge.s32.totalorder %s29, 2
    %s31 = scalar_select %p30, 0, %s29
    %s32 = ssub.s32 %s19, %s31
    %s33 = ssub.s32 %s20, %s27
    %s34 = sor.u32 %s32, %s33
    %p35 = scmp.eq.s32.totalorder %s34, 0
    %s37 = sadd.s32 %s36, 1
    %s38 = scalar_select %p35, %s36, %s37
    %p41 = pneg %p35
    %p42 = scmp.eq.s32.totalorder %s12, 1
    %p43 = por %p41, %p42
    %p44 = scmp.ne.s32.totalorder %s36, %s39
    %p45 = scmp.eq.s32.totalorder %s12, 0
    %p46 = por %p44, %p45
    %p47 = scmp.ne.s32.totalorder %s36, %s39
    %p48 = scmp.eq.s32.totalorder %s17, 1
    %p49 = por %p47, %p48
    %p50 = scmp.ne.s32.totalorder %s39, %s40
    %p51 = scmp.eq.s32.totalorder %s17, 0
    %p52 = por %p50, %p51
    %p53 = scmp.ne.s32.totalorder %s39, %s40
    %p54 = scmp.eq.s32.totalorder %s18, 1
    %p55 = por %p53, %p54
    %p57 = scmp.ne.s32.totalorder %s40, %s56
    %p58 = scmp.eq.s32.totalorder %s18, 0
    %p59 = por %p57, %p58
    %s60 = ssub.s32 %s19, %s31
    %p61 = scmp.eq.s32.totalorder %s60, 0
    %s63 = sadd.s32 %s62, 1
    %s64 = scalar_select %p61, %s62, %s63
    %p67 = pneg %p61
    %p68 = scmp.eq.s32.totalorder %s12, 1
    %p69 = por %p67, %p68
    %p70 = scmp.ne.s32.totalorder %s62, %s65
    %p71 = scmp.eq.s32.totalorder %s12, 0
    %p72 = por %p70, %p71
    %p73 = scmp.ne.s32.totalorder %s62, %s65
    %p74 = scmp.eq.s32.totalorder %s17, 1
    %p75 = por %p73, %p74
    %p76 = scmp.ne.s32.totalorder %s65, %s66
    %p77 = scmp.eq.s32.totalorder %s17, 0
    %p78 = por %p76, %p77
    %p79 = scmp.ne.s32.totalorder %s65, %s66
    %p80 = scmp.eq.s32.totalorder %s18, 1
    %p81 = por %p79, %p80
    %p83 = scmp.ne.s32.totalorder %s66, %s82
    %p84 = scmp.eq.s32.totalorder %s18, 0
    %p85 = por %p83, %p84
    %s87 = sadd.s32 %s86, 1
    %p90 = scmp.eq.s32.totalorder %s12, 1
    %p91 = scmp.ne.s32.totalorder %s86, %s88
    %p92 = scmp.eq.s32.totalorder %s12, 0
    %p93 = por %p91, %p92
    %p94 = scmp.ne.s32.totalorder %s86, %s88
    %p95 = scmp.eq.s32.totalorder %s17, 1
    %p96 = por %p94, %p95
    %p97 = scmp.ne.s32.totalorder %s88, %s89
    %p98 = scmp.eq.s32.totalorder %s17, 0
    %p99 = por %p97, %p98
    %p100 = scmp.ne.s32.totalorder %s88, %s89
    %p101 = scmp.eq.s32.totalorder %s18, 1
    %p102 = por %p100, %p101
    %p104 = scmp.ne.s32.totalorder %s89, %s103
    %p105 = scmp.eq.s32.totalorder %s18, 0
    %p106 = por %p104, %p105
    %s108 = sadd.s32 %s107, 1
    %p111 = scmp.eq.s32.totalorder %s12, 1
    %p112 = scmp.ne.s32.totalorder %s107, %s109
    %p113 = scmp.eq.s32.totalorder %s12, 0
    %p114 = por %p112, %p113
    %p115 = scmp.ne.s32.totalorder %s107, %s109
    %p116 = scmp.eq.s32.totalorder %s17, 1
    %p117 = por %p115, %p116
    %p118 = scmp.ne.s32.totalorder %s109, %s110
    %p119 = scmp.eq.s32.totalorder %s17, 0
    %p120 = por %p118, %p119
    %p121 = scmp.ne.s32.totalorder %s109, %s110
    %p122 = scmp.eq.s32.totalorder %s18, 1
    %p123 = por %p121, %p122
    %p125 = scmp.ne.s32.totalorder %s110, %s124
    %p126 = scmp.eq.s32.totalorder %s18, 0
    %p127 = por %p125, %p126
    %s129 = sadd.s32 %s128, 1
    %p132 = scmp.eq.s32.totalorder %s12, 1
    %p133 = scmp.ne.s32.totalorder %s128, %s130
    %p134 = scmp.eq.s32.totalorder %s12, 0
    %p135 = por %p133, %p134
    %p136 = scmp.ne.s32.totalorder %s128, %s130
    %p137 = scmp.eq.s32.totalorder %s17, 1
    %p138 = por %p136, %p137
    %p139 = scmp.ne.s32.totalorder %s130, %s131
    %p140 = scmp.eq.s32.totalorder %s17, 0
    %p141 = por %p139, %p140
    %p142 = scmp.ne.s32.totalorder %s130, %s131
    %p143 = scmp.eq.s32.totalorder %s18, 1
    %p144 = por %p142, %p143
    %p146 = scmp.ne.s32.totalorder %s131, %s145
    %p147 = scmp.eq.s32.totalorder %s18, 0
    %p148 = por %p146, %p147
    %s149 = ssub.s32 %s19, %s31
    %s150 = ssub.s32 %s20, %s27
    %s151 = sor.u32 %s149, %s150
    %p152 = scmp.eq.s32.totalorder %s151, 0
    %s154 = sadd.s32 %s153, 1
    %s155 = scalar_select %p152, %s153, %s154
    %p158 = pneg %p152
    %p159 = scmp.eq.s32.totalorder %s12, 1
    %p160 = por %p158, %p159
    %p161 = scmp.ne.s32.totalorder %s153, %s156
    %p162 = scmp.eq.s32.totalorder %s12, 0
    %p163 = por %p161, %p162
    %p164 = scmp.ne.s32.totalorder %s153, %s156
    %p165 = scmp.eq.s32.totalorder %s17, 1
    %p166 = por %p164, %p165
    %p167 = scmp.ne.s32.totalorder %s156, %s157
    %p168 = scmp.eq.s32.totalorder %s17, 0
    %p169 = por %p167, %p168
    %p170 = scmp.ne.s32.totalorder %s156, %s157
    %p171 = scmp.eq.s32.totalorder %s18, 1
    %p172 = por %p170, %p171
    %p174 = scmp.ne.s32.totalorder %s157, %s173
    %p175 = scmp.eq.s32.totalorder %s18, 0
    %p176 = por %p174, %p175
    %s177 = ssub.s32 %s19, %s31
    %s178 = ssub.s32 %s20, %s27
    %s179 = sor.u32 %s177, %s178
    %p180 = scmp.eq.s32.totalorder %s179, 0
    %s182 = sadd.s32 %s181, 1
    %s183 = scalar_select %p180, %s181, %s182
    %p186 = pneg %p180
    %p187 = scmp.eq.s32.totalorder %s12, 1
    %p188 = por %p186, %p187
    %p189 = scmp.ne.s32.totalorder %s181, %s184
    %p190 = scmp.eq.s32.totalorder %s12, 0
    %p191 = por %p189, %p190
    %p192 = scmp.ne.s32.totalorder %s181, %s184
    %p193 = scmp.eq.s32.totalorder %s17, 1
    %p194 = por %p192, %p193
    %p195 = scmp.ne.s32.totalorder %s184, %s185
    %p196 = scmp.eq.s32.totalorder %s17, 0
    %p197 = por %p195, %p196
    %p198 = scmp.ne.s32.totalorder %s184, %s185
    %p199 = scmp.eq.s32.totalorder %s18, 1
    %p200 = por %p198, %p199
    %p202 = scmp.ne.s32.totalorder %s185, %s201
    %p203 = scmp.eq.s32.totalorder %s18, 0
    %p204 = por %p202, %p203
    %p205 = scmp.le.s32.totalorder 1, %s12
    %p206 = scmp.lt.s32.totalorder %s12, 3
    %p207 = pnand %p205, %p206
    %p208 = pneg %p207
    // Predicated region
    $region9: #{mobilenet_block.5} parent=5 // pred_check
      _
    $region10: #{mobilenet_block.5} parent=5 // pred_check_branch
      %210 = sbr.rel (%p207) target = $region12
    $region11: #{mobilenet_block.5} parent=5 // pred_region
      %s211 = ssub.s32 %s12, 1
      // Predicated region
      $region13: #{mobilenet_block.5} parent=11 // pred_check
        %p212 = pneg %p99
      $region14: #{mobilenet_block.5} parent=11 // pred_check_branch
        %214 = sbr.rel (%p212) target = $region16
      $region15: #{mobilenet_block.5} parent=11 // pred_region
        _
      $region16: #{mobilenet_block.5} parent=11 // pred_fallthru
        _
      // Predicated region
      $region17: #{mobilenet_block.5} parent=11 // pred_check
        %p215 = pneg %p120
      $region18: #{mobilenet_block.5} parent=11 // pred_check_branch
        %217 = sbr.rel (%p215) target = $region20
      $region19: #{mobilenet_block.5} parent=11 // pred_region
        _
      $region20: #{mobilenet_block.5} parent=11 // pred_fallthru
        _
      // Predicated region
      $region21: #{mobilenet_block.5} parent=11 // pred_check
        %p218 = pneg %p141
      $region22: #{mobilenet_block.5} parent=11 // pred_check_branch
        %220 = sbr.rel (%p218) target = $region24
      $region23: #{mobilenet_block.5} parent=11 // pred_region
        _
      $region24: #{mobilenet_block.5} parent=11 // pred_fallthru
        _
    $region12: #{mobilenet_block.5} parent=5 // pred_fallthru
      _
    %p221 = scmp.lt.s32.totalorder %s12, 2
    // Predicated region
    $region25: #{mobilenet_block.5} parent=5 // pred_check
      %p222 = pneg %p221
    $region26: #{mobilenet_block.5} parent=5 // pred_check_branch
      %224 = sbr.rel (%p222) target = $region28
    $region27: #{mobilenet_block.5} parent=5 // pred_region
      // Predicated region
      $region29: #{mobilenet_block.5} parent=27 // pred_check
        %p225 = pneg %p46
      $region30: #{mobilenet_block.5} parent=27 // pred_check_branch
        %227 = sbr.rel (%p225) target = $region32
      $region31: #{mobilenet_block.5} parent=27 // pred_region
        %s228 = smul.u32 32, %s20
        %p229 = scmp.lt.s32.totalorder %s19, 1
        %s230 = scalar_select %p229, %s19, 1
        %p231 = scmp.lt.s32.totalorder %s228, 31
        %s232 = scalar_select %p231, %s228, 31
        %s233 = smul.addr %s230, 32
        %s234 = sadd.s32 %s232, %s233
        %s235 = smul.addr %s234, 8
        %s236 = scalar_lea.vmem %s0, %s235
        %s237 = smul.u32 32, %s20
      $region32: #{mobilenet_block.5} parent=27 // pred_fallthru
        _
      // Predicated region
      $region33: #{mobilenet_block.5} parent=27 // pred_check
        %p238 = pneg %p72
      $region34: #{mobilenet_block.5} parent=27 // pred_check_branch
        %240 = sbr.rel (%p238) target = $region36
      $region35: #{mobilenet_block.5} parent=27 // pred_region
        %p241 = scmp.lt.s32.totalorder %s19, 1
        %s242 = scalar_select %p241, %s19, 1
        %s243 = scalar_lea.vmem %s1, %s242
      $region36: #{mobilenet_block.5} parent=27 // pred_fallthru
        _
      // Predicated region
      $region37: #{mobilenet_block.5} parent=27 // pred_check
        %p244 = pneg %p163
      $region38: #{mobilenet_block.5} parent=27 // pred_check_branch
        %246 = sbr.rel (%p244) target = $region40
      $region39: #{mobilenet_block.5} parent=27 // pred_region
        %s247 = smul.u32 32, %s20
        %p248 = scmp.lt.s32.totalorder %s19, 1
        %s249 = scalar_select %p248, %s19, 1
        %p250 = scmp.lt.s32.totalorder %s247, 31
        %s251 = scalar_select %p250, %s247, 31
        %s252 = smul.addr %s249, 32
        %s253 = sadd.s32 %s251, %s252
        %s254 = smul.addr %s253, 8
        %s255 = scalar_lea.vmem %s5, %s254
        %s256 = smul.u32 32, %s20
      $region40: #{mobilenet_block.5} parent=27 // pred_fallthru
        _
    $region28: #{mobilenet_block.5} parent=5 // pred_fallthru
      _
    %p257 = scmp.le.s32.totalorder 1, %s12
    %p258 = scmp.lt.s32.totalorder %s12, 3
    %p259 = pnand %p257, %p258
    %p260 = pneg %p259
    // Predicated region
    $region41: #{mobilenet_block.5} parent=5 // pred_check
      _
    $region42: #{mobilenet_block.5} parent=5 // pred_check_branch
      %262 = sbr.rel (%p259) target = $region44
    $region43: #{mobilenet_block.5} parent=5 // pred_region
      %s263 = ssub.s32 %s12, 1
      %s264 = smul.u32 32, %s22
      %p265 = scmp.lt.s32.totalorder %s21, 1
      %s266 = scalar_select %p265, %s21, 1
      %p267 = scmp.lt.s32.totalorder %s264, 31
      %s268 = scalar_select %p267, %s264, 31
      %s269 = smul.addr %s266, 32
      %s270 = sadd.s32 %s268, %s269
      %s271 = smul.addr %s270, 8
      %s272 = scalar_lea.vmem %s0, %s271
      %p273 = pneg %p52
      %p274 = pneg %p49
      %p275 = scmp.lt.s32.totalorder %s21, 1
      %s276 = scalar_select %p275, %s21, 1
      %s277 = scalar_lea.vmem %s1, %s276
      %p278 = pneg %p78
      %p279 = pneg %p75
      %p280 = pneg %p99
      %p281 = pneg %p96
      %p282 = pneg %p120
      %p283 = pneg %p117
      %p284 = pneg %p141
      %p285 = pneg %p138
      %s286 = smul.u32 32, %s22
      %p287 = scmp.lt.s32.totalorder %s21, 1
      %s288 = scalar_select %p287, %s21, 1
      %p289 = scmp.lt.s32.totalorder %s286, 31
      %s290 = scalar_select %p289, %s286, 31
      %s291 = smul.addr %s288, 32
      %s292 = sadd.s32 %s290, %s291
      %s293 = smul.addr %s292, 8
      %s294 = scalar_lea.vmem %s5, %s293
      %p295 = pneg %p169
      %p296 = pneg %p166
      %p297 = pneg %p197
      %p298 = pneg %p194
      %s299 = smul.u32 32, %s22
      %p300 = scmp.lt.s32.totalorder %s21, 1
      %s301 = scalar_select %p300, %s21, 1
      %p302 = scmp.lt.s32.totalorder %s299, 31
      %s303 = scalar_select %p302, %s299, 31
      %s304 = smul.addr %s301, 32
      %s305 = sadd.s32 %s303, %s304
      %s306 = smul.addr %s305, 8
      %s307 = scalar_lea.vmem %s6, %s306
      %s308 = smul.u32 32, %s22
      %p309 = scmp.lt.s32.totalorder %s21, 1
      %s310 = scalar_select %p309, %s21, 1
      %p311 = scmp.lt.s32.totalorder %s308, 31
      %s312 = scalar_select %p311, %s308, 31
      %s313 = smul.addr %s310, 32
      %s314 = sadd.s32 %s312, %s313
      %s315 = smul.addr %s314, 8
      %s316 = scalar_lea.vmem %s0, %s315
      %s317 = smul.u32 32, %s22
      %p318 = scmp.lt.s32.totalorder %s21, 1
      %s319 = scalar_select %p318, %s21, 1
      %s320 = scalar_lea.vmem %s1, %s319
      %s321 = smul.u32 32, %s22
      %p322 = scmp.lt.s32.totalorder %s21, 1
      %s323 = scalar_select %p322, %s21, 1
      %p324 = scmp.lt.s32.totalorder %s321, 31
      %s325 = scalar_select %p324, %s321, 31
      %s326 = smul.addr %s323, 32
      %s327 = sadd.s32 %s325, %s326
      %s328 = smul.addr %s327, 8
      %s329 = scalar_lea.vmem %s5, %s328
      %s330 = smul.u32 32, %s22
      %s331 = smul.u32 32, %s22
      %p332 = scmp.lt.s32.totalorder %s21, 1
      %s333 = scalar_select %p332, %s21, 1
      %p334 = scmp.lt.s32.totalorder %s331, 31
      %s335 = scalar_select %p334, %s331, 31
      %s336 = smul.addr %s333, 32
      %s337 = sadd.s32 %s335, %s336
      %s338 = smul.addr %s337, 8
      %s339 = scalar_lea.vmem %s6, %s338
      %s340 = smul.u32 32, %s22
      %v342 = vld [vmem:[%s316] sm:$0xff]
      %v343 = vld [vmem:[%s316 + $0x8] sm:$0xff]
      %v344 = vld [vmem:[%s316 + $0x10] sm:$0xff]
      %v345 = vld [vmem:[%s316 + $0x18] sm:$0xff]
      %v346 = vld [vmem:[%s316 + $0x20] sm:$0xff]
      %v347 = vld [vmem:[%s316 + $0x28] sm:$0xff]
      %v348 = vld [vmem:[%s316 + $0x30] sm:$0xff]
      %v349 = vld [vmem:[%s316 + $0x38] sm:$0xff]
      %v350 = vld [vmem:[%s316 + $0x40] sm:$0xff]
      %v351 = vld [vmem:[%s316 + $0x48] sm:$0xff]
      %v352 = vld [vmem:[%s316 + $0x50] sm:$0xff]
      %v353 = vld [vmem:[%s316 + $0x58] sm:$0xff]
      %v354 = vld [vmem:[%s316 + $0x60] sm:$0xff]
      %v355 = vld [vmem:[%s316 + $0x68] sm:$0xff]
      %v356 = vld [vmem:[%s316 + $0x70] sm:$0xff]
      %v357 = vld [vmem:[%s316 + $0x78] sm:$0xff]
      %v358 = vld [vmem:[%s316 + $0x80] sm:$0xff]
      %v359 = vld [vmem:[%s316 + $0x88] sm:$0xff]
      %v360 = vld [vmem:[%s316 + $0x90] sm:$0xff]
      %v361 = vld [vmem:[%s316 + $0x98] sm:$0xff]
      %v362 = vld [vmem:[%s316 + $0xa0] sm:$0xff]
      %v363 = vld [vmem:[%s316 + $0xa8] sm:$0xff]
      %v364 = vld [vmem:[%s316 + $0xb0] sm:$0xff]
      %v365 = vld [vmem:[%s316 + $0xb8] sm:$0xff]
      %v366 = vld [vmem:[%s316 + $0xc0] sm:$0xff]
      %v367 = vld [vmem:[%s316 + $0xc8] sm:$0xff]
      %v368 = vld [vmem:[%s316 + $0xd0] sm:$0xff]
      %v369 = vld [vmem:[%s316 + $0xd8] sm:$0xff]
      %v370 = vld [vmem:[%s316 + $0xe0] sm:$0xff]
      %v371 = vld [vmem:[%s316 + $0xe8] sm:$0xff]
      %v372 = vld [vmem:[%s316 + $0xf0] sm:$0xff]
      %v373 = vld [vmem:[%s316 + $0xf8] sm:$0xff]
      %v374 = vld [vmem:[%s320] sm:$0x1]
      %v376 = vlaneseq
      %v377 = vshrl.u32 %v376, 7
      %v378 = vsub.s32 0, %v377
      %v379 = vrot.slane %v374, %v378
      %v381 = vmul.f32 %v342, %v379
      %v382 = vmul.f32 %v343, %v379
      %v383 = vmul.f32 %v344, %v379
      %v384 = vmul.f32 %v345, %v379
      %v385 = vmul.f32 %v346, %v379
      %v386 = vmul.f32 %v347, %v379
      %v387 = vmul.f32 %v348, %v379
      %v388 = vmul.f32 %v349, %v379
      %v389 = vmul.f32 %v350, %v379
      %v390 = vmul.f32 %v351, %v379
      %v391 = vmul.f32 %v352, %v379
      %v392 = vmul.f32 %v353, %v379
      %v393 = vmul.f32 %v354, %v379
      %v394 = vmul.f32 %v355, %v379
      %v395 = vmul.f32 %v356, %v379
      %v396 = vmul.f32 %v357, %v379
      %v397 = vmul.f32 %v358, %v379
      %v398 = vmul.f32 %v359, %v379
      %v399 = vmul.f32 %v360, %v379
      %v400 = vmul.f32 %v361, %v379
      %v401 = vmul.f32 %v362, %v379
      %v402 = vmul.f32 %v363, %v379
      %v403 = vmul.f32 %v364, %v379
      %v404 = vmul.f32 %v365, %v379
      %v405 = vmul.f32 %v366, %v379
      %v406 = vmul.f32 %v367, %v379
      %v407 = vmul.f32 %v368, %v379
      %v408 = vmul.f32 %v369, %v379
      %v409 = vmul.f32 %v370, %v379
      %v410 = vmul.f32 %v371, %v379
      %v411 = vmul.f32 %v372, %v379
      %v412 = vmul.f32 %v373, %v379
      %v413 = vpack.c.bf16 %v382, %v381
      %v414 = vpack.c.bf16 %v384, %v383
      %v415 = vpack.c.bf16 %v386, %v385
      %v416 = vpack.c.bf16 %v388, %v387
      %v417 = vpack.c.bf16 %v390, %v389
      %v418 = vpack.c.bf16 %v392, %v391
      %v419 = vpack.c.bf16 %v394, %v393
      %v420 = vpack.c.bf16 %v396, %v395
      %v421 = vpack.c.bf16 %v398, %v397
      %v422 = vpack.c.bf16 %v400, %v399
      %v423 = vpack.c.bf16 %v402, %v401
      %v424 = vpack.c.bf16 %v404, %v403
      %v425 = vpack.c.bf16 %v406, %v405
      %v426 = vpack.c.bf16 %v408, %v407
      %v427 = vpack.c.bf16 %v410, %v409
      %v428 = vpack.c.bf16 %v412, %v411
      %v429 = vld [vmem:[%s2] sm:$0xf]
      %v430 = vld [vmem:[%s2 + $0x4] sm:$0xf]
      %v431 = vld [vmem:[%s2 + $0x8] sm:$0xf]
      %v432 = vld [vmem:[%s2 + $0xc] sm:$0xf]
      %v437 = vunpack.c.l.b16 %v429
      %v438 = vunpack.c.l.b16 %v430
      %v439 = vunpack.c.l.b16 %v431
      %v440 = vunpack.c.l.b16 %v432
      %v441 = vpack.c.b16 %v438, %v437
      %v442 = vpack.c.b16 %v440, %v439
      %vm445 = vcmask 261120
      %v447 = vsel %vm445, %v413, 0
      %v450 = vsel %vm445, %v414, 0
      %v453 = vsel %vm445, %v415, 0
      %v456 = vsel %vm445, %v416, 0
      %v459 = vsel %vm445, %v417, 0
      %v462 = vsel %vm445, %v418, 0
      %v465 = vsel %vm445, %v419, 0
      %v468 = vsel %vm445, %v420, 0
      %v471 = vsel %vm445, %v421, 0
      %v474 = vsel %vm445, %v422, 0
      %v477 = vsel %vm445, %v423, 0
      %v480 = vsel %vm445, %v424, 0
      %v483 = vsel %vm445, %v425, 0
      %v486 = vsel %vm445, %v426, 0
      %v489 = vsel %vm445, %v427, 0
      %v492 = vsel %vm445, %v428, 0
      %494 = vmatprep.subr.bf16.mxu0 0
      %495 = vmatpush1.bf16.msra.mxu0 0
      %496 = vmatprep.subr.bf16.mxu0 0
      %497 = vmatpush1.bf16.msra.mxu0 0
      %498 = vmatprep.subr.bf16.mxu0 0
      %499 = vmatpush1.bf16.msra.mxu0 0
      %500 = vmatprep.subr.bf16.mxu0 0
      %501 = vmatpush1.bf16.msra.mxu0 0
      %502 = vmatprep.subr.bf16.mxu0 0
      %503 = vmatpush1.bf16.msra.mxu0 0
      %504 = vmatprep.subr.bf16.mxu0 0
      %505 = vmatpush1.bf16.msra.mxu0 0
      %506 = vmatprep.subr.bf16.mxu0 0
      %507 = vmatpush1.bf16.msra.mxu0 %v442
      %508 = vmatprep.subr.bf16.mxu0 0
      %509 = vmatpush1.bf16.msra.mxu0 %v441
      %510 = vmatprep.subr.bf16.mxu0 0
      %511 = vmatpush2.bf16.msra.mxu0 0
      %512 = vmatprep.subr.bf16.mxu0 0
      %513 = vmatpush2.bf16.msra.mxu0 0
      %514 = vmatprep.subr.bf16.mxu0 0
      %515 = vmatpush2.bf16.msra.mxu0 0
      %516 = vmatprep.subr.bf16.mxu0 0
      %517 = vmatpush2.bf16.msra.mxu0 0
      %518 = vmatprep.subr.bf16.mxu0 0
      %519 = vmatpush2.bf16.msra.mxu0 0
      %520 = vmatprep.subr.bf16.mxu0 0
      %521 = vmatpush2.bf16.msra.mxu0 0
      %522 = vmatprep.subr.bf16.mxu0 0
      %523 = vmatpush2.bf16.msra.mxu0 0
      %524 = vmatprep.subr.bf16.mxu0 0
      %525 = vmatpush2.bf16.msra.mxu0 0
      %526 = vmatprep.mubr.bf16.mxu0 0
      %527 = vmatmul.mubr.bf16.gmra.mxu0 %v447
      %v528 = vpop.f32.mrf.mxu0
      %v529 = vadd.f32 0.0, %v528
      %v530 = vpop.f32.mrf.mxu0
      %v531 = vpop.f32.mrf.mxu0
      %v532 = vadd.f32 0.0, %v531
      %v533 = vpop.f32.mrf.mxu0
      %534 = vmatprep.mubr.bf16.mxu0 0
      %535 = vmatmul.mubr.bf16.gmra.mxu0 %v450
      %v536 = vpop.f32.mrf.mxu0
      %v537 = vadd.f32 0.0, %v536
      %v538 = vpop.f32.mrf.mxu0
      %v539 = vpop.f32.mrf.mxu0
      %v540 = vadd.f32 0.0, %v539
      %v541 = vpop.f32.mrf.mxu0
      %542 = vmatprep.mubr.bf16.mxu0 0
      %543 = vmatmul.mubr.bf16.gmra.mxu0 %v453
      %v544 = vpop.f32.mrf.mxu0
      %v545 = vadd.f32 0.0, %v544
      %v546 = vpop.f32.mrf.mxu0
      %v547 = vpop.f32.mrf.mxu0
      %v548 = vadd.f32 0.0, %v547
      %v549 = vpop.f32.mrf.mxu0
      %550 = vmatprep.mubr.bf16.mxu0 0
      %551 = vmatmul.mubr.bf16.gmra.mxu0 %v456
      %v552 = vpop.f32.mrf.mxu0
      %v553 = vadd.f32 0.0, %v552
      %v554 = vpop.f32.mrf.mxu0
      %v555 = vpop.f32.mrf.mxu0
      %v556 = vadd.f32 0.0, %v555
      %v557 = vpop.f32.mrf.mxu0
      %558 = vmatprep.mubr.bf16.mxu0 0
      %559 = vmatmul.mubr.bf16.gmra.mxu0 %v459
      %v560 = vpop.f32.mrf.mxu0
      %v561 = vadd.f32 0.0, %v560
      %v562 = vpop.f32.mrf.mxu0
      %v563 = vpop.f32.mrf.mxu0
      %v564 = vadd.f32 0.0, %v563
      %v565 = vpop.f32.mrf.mxu0
      %566 = vmatprep.mubr.bf16.mxu0 0
      %567 = vmatmul.mubr.bf16.gmra.mxu0 %v462
      %v568 = vpop.f32.mrf.mxu0
      %v569 = vadd.f32 0.0, %v568
      %v570 = vpop.f32.mrf.mxu0
      %v571 = vpop.f32.mrf.mxu0
      %v572 = vadd.f32 0.0, %v571
      %v573 = vpop.f32.mrf.mxu0
      %574 = vmatprep.mubr.bf16.mxu0 0
      %575 = vmatmul.mubr.bf16.gmra.mxu0 %v465
      %v576 = vpop.f32.mrf.mxu0
      %v577 = vadd.f32 0.0, %v576
      %v578 = vpop.f32.mrf.mxu0
      %v579 = vpop.f32.mrf.mxu0
      %v580 = vadd.f32 0.0, %v579
      %v581 = vpop.f32.mrf.mxu0
      %582 = vmatprep.mubr.bf16.mxu0 0
      %583 = vmatmul.mubr.bf16.gmra.mxu0 %v468
      %v584 = vpop.f32.mrf.mxu0
      %v585 = vadd.f32 0.0, %v584
      %v586 = vpop.f32.mrf.mxu0
      %v587 = vpop.f32.mrf.mxu0
      %v588 = vadd.f32 0.0, %v587
      %v589 = vpop.f32.mrf.mxu0
      %590 = vmatprep.mubr.bf16.mxu0 0
      %591 = vmatmul.mubr.bf16.gmra.mxu0 %v471
      %v592 = vpop.f32.mrf.mxu0
      %v593 = vadd.f32 0.0, %v592
      %v594 = vpop.f32.mrf.mxu0
      %v595 = vpop.f32.mrf.mxu0
      %v596 = vadd.f32 0.0, %v595
      %v597 = vpop.f32.mrf.mxu0
      %598 = vmatprep.mubr.bf16.mxu0 0
      %599 = vmatmul.mubr.bf16.gmra.mxu0 %v474
      %v600 = vpop.f32.mrf.mxu0
      %v601 = vadd.f32 0.0, %v600
      %v602 = vpop.f32.mrf.mxu0
      %v603 = vpop.f32.mrf.mxu0
      %v604 = vadd.f32 0.0, %v603
      %v605 = vpop.f32.mrf.mxu0
      %606 = vmatprep.mubr.bf16.mxu0 0
      %607 = vmatmul.mubr.bf16.gmra.mxu0 %v477
      %v608 = vpop.f32.mrf.mxu0
      %v609 = vadd.f32 0.0, %v608
      %v610 = vpop.f32.mrf.mxu0
      %v611 = vpop.f32.mrf.mxu0
      %v612 = vadd.f32 0.0, %v611
      %v613 = vpop.f32.mrf.mxu0
      %614 = vmatprep.mubr.bf16.mxu0 0
      %615 = vmatmul.mubr.bf16.gmra.mxu0 %v480
      %v616 = vpop.f32.mrf.mxu0
      %v617 = vadd.f32 0.0, %v616
      %v618 = vpop.f32.mrf.mxu0
      %v619 = vpop.f32.mrf.mxu0
      %v620 = vadd.f32 0.0, %v619
      %v621 = vpop.f32.mrf.mxu0
      %622 = vmatprep.mubr.bf16.mxu0 0
      %623 = vmatmul.mubr.bf16.gmra.mxu0 %v483
      %v624 = vpop.f32.mrf.mxu0
      %v625 = vadd.f32 0.0, %v624
      %v626 = vpop.f32.mrf.mxu0
      %v627 = vpop.f32.mrf.mxu0
      %v628 = vadd.f32 0.0, %v627
      %v629 = vpop.f32.mrf.mxu0
      %630 = vmatprep.mubr.bf16.mxu0 0
      %631 = vmatmul.mubr.bf16.gmra.mxu0 %v486
      %v632 = vpop.f32.mrf.mxu0
      %v633 = vadd.f32 0.0, %v632
      %v634 = vpop.f32.mrf.mxu0
      %v635 = vpop.f32.mrf.mxu0
      %v636 = vadd.f32 0.0, %v635
      %v637 = vpop.f32.mrf.mxu0
      %638 = vmatprep.mubr.bf16.mxu0 0
      %639 = vmatmul.mubr.bf16.gmra.mxu0 %v489
      %v640 = vpop.f32.mrf.mxu0
      %v641 = vadd.f32 0.0, %v640
      %v642 = vpop.f32.mrf.mxu0
      %v643 = vpop.f32.mrf.mxu0
      %v644 = vadd.f32 0.0, %v643
      %v645 = vpop.f32.mrf.mxu0
      %646 = vmatprep.mubr.bf16.mxu0 0
      %647 = vmatmul.mubr.bf16.gmra.mxu0 %v492
      %v648 = vpop.f32.mrf.mxu0
      %v649 = vadd.f32 0.0, %v648
      %v650 = vpop.f32.mrf.mxu0
      %v651 = vpop.f32.mrf.mxu0
      %v652 = vadd.f32 0.0, %v651
      %v653 = vpop.f32.mrf.mxu0
      %654 = vdwg.mxu0
      %v655 = vld [vmem:[%s3] sm:$0x1]
      %v657 = vlaneseq
      %v658 = vshrl.u32 %v657, 7
      %v659 = vsub.s32 0, %v658
      %v660 = vrot.slane %v655, %v659
      %v662 = vmul.f32 %v529, %v660
      %v663 = vmul.f32 %v532, %v660
      %v664 = vmul.f32 %v537, %v660
      %v665 = vmul.f32 %v540, %v660
      %v666 = vmul.f32 %v545, %v660
      %v667 = vmul.f32 %v548, %v660
      %v668 = vmul.f32 %v553, %v660
      %v669 = vmul.f32 %v556, %v660
      %v670 = vmul.f32 %v561, %v660
      %v671 = vmul.f32 %v564, %v660
      %v672 = vmul.f32 %v569, %v660
      %v673 = vmul.f32 %v572, %v660
      %v674 = vmul.f32 %v577, %v660
      %v675 = vmul.f32 %v580, %v660
      %v676 = vmul.f32 %v585, %v660
      %v677 = vmul.f32 %v588, %v660
      %v678 = vmul.f32 %v593, %v660
      %v679 = vmul.f32 %v596, %v660
      %v680 = vmul.f32 %v601, %v660
      %v681 = vmul.f32 %v604, %v660
      %v682 = vmul.f32 %v609, %v660
      %v683 = vmul.f32 %v612, %v660
      %v684 = vmul.f32 %v617, %v660
      %v685 = vmul.f32 %v620, %v660
      %v686 = vmul.f32 %v625, %v660
      %v687 = vmul.f32 %v628, %v660
      %v688 = vmul.f32 %v633, %v660
      %v689 = vmul.f32 %v636, %v660
      %v690 = vmul.f32 %v641, %v660
      %v691 = vmul.f32 %v644, %v660
      %v692 = vmul.f32 %v649, %v660
      %v693 = vmul.f32 %v652, %v660
      %v694 = vld [vmem:[%s4] sm:$0x1]
      %v696 = vlaneseq
      %v697 = vshrl.u32 %v696, 7
      %v698 = vsub.s32 0, %v697
      %v699 = vrot.slane %v694, %v698
      %v701 = vadd.f32 %v662, %v699
      %v702 = vadd.f32 %v663, %v699
      %v703 = vadd.f32 %v664, %v699
      %v704 = vadd.f32 %v665, %v699
      %v705 = vadd.f32 %v666, %v699
      %v706 = vadd.f32 %v667, %v699
      %v707 = vadd.f32 %v668, %v699
      %v708 = vadd.f32 %v669, %v699
      %v709 = vadd.f32 %v670, %v699
      %v710 = vadd.f32 %v671, %v699
      %v711 = vadd.f32 %v672, %v699
      %v712 = vadd.f32 %v673, %v699
      %v713 = vadd.f32 %v674, %v699
      %v714 = vadd.f32 %v675, %v699
      %v715 = vadd.f32 %v676, %v699
      %v716 = vadd.f32 %v677, %v699
      %v717 = vadd.f32 %v678, %v699
      %v718 = vadd.f32 %v679, %v699
      %v719 = vadd.f32 %v680, %v699
      %v720 = vadd.f32 %v681, %v699
      %v721 = vadd.f32 %v682, %v699
      %v722 = vadd.f32 %v683, %v699
      %v723 = vadd.f32 %v684, %v699
      %v724 = vadd.f32 %v685, %v699
      %v725 = vadd.f32 %v686, %v699
      %v726 = vadd.f32 %v687, %v699
      %v727 = vadd.f32 %v688, %v699
      %v728 = vadd.f32 %v689, %v699
      %v729 = vadd.f32 %v690, %v699
      %v730 = vadd.f32 %v691, %v699
      %v731 = vadd.f32 %v692, %v699
      %v732 = vadd.f32 %v693, %v699
      %v733 = vld [vmem:[%s329] sm:$0xff]
      %v734 = vld [vmem:[%s329 + $0x8] sm:$0xff]
      %v735 = vld [vmem:[%s329 + $0x10] sm:$0xff]
      %v736 = vld [vmem:[%s329 + $0x18] sm:$0xff]
      %v737 = vld [vmem:[%s329 + $0x20] sm:$0xff]
      %v738 = vld [vmem:[%s329 + $0x28] sm:$0xff]
      %v739 = vld [vmem:[%s329 + $0x30] sm:$0xff]
      %v740 = vld [vmem:[%s329 + $0x38] sm:$0xff]
      %v741 = vld [vmem:[%s329 + $0x40] sm:$0xff]
      %v742 = vld [vmem:[%s329 + $0x48] sm:$0xff]
      %v743 = vld [vmem:[%s329 + $0x50] sm:$0xff]
      %v744 = vld [vmem:[%s329 + $0x58] sm:$0xff]
      %v745 = vld [vmem:[%s329 + $0x60] sm:$0xff]
      %v746 = vld [vmem:[%s329 + $0x68] sm:$0xff]
      %v747 = vld [vmem:[%s329 + $0x70] sm:$0xff]
      %v748 = vld [vmem:[%s329 + $0x78] sm:$0xff]
      %v749 = vld [vmem:[%s329 + $0x80] sm:$0xff]
      %v750 = vld [vmem:[%s329 + $0x88] sm:$0xff]
      %v751 = vld [vmem:[%s329 + $0x90] sm:$0xff]
      %v752 = vld [vmem:[%s329 + $0x98] sm:$0xff]
      %v753 = vld [vmem:[%s329 + $0xa0] sm:$0xff]
      %v754 = vld [vmem:[%s329 + $0xa8] sm:$0xff]
      %v755 = vld [vmem:[%s329 + $0xb0] sm:$0xff]
      %v756 = vld [vmem:[%s329 + $0xb8] sm:$0xff]
      %v757 = vld [vmem:[%s329 + $0xc0] sm:$0xff]
      %v758 = vld [vmem:[%s329 + $0xc8] sm:$0xff]
      %v759 = vld [vmem:[%s329 + $0xd0] sm:$0xff]
      %v760 = vld [vmem:[%s329 + $0xd8] sm:$0xff]
      %v761 = vld [vmem:[%s329 + $0xe0] sm:$0xff]
      %v762 = vld [vmem:[%s329 + $0xe8] sm:$0xff]
      %v763 = vld [vmem:[%s329 + $0xf0] sm:$0xff]
      %v764 = vld [vmem:[%s329 + $0xf8] sm:$0xff]
      %v765 = vadd.f32 %v701, %v733
      %v766 = vadd.f32 %v702, %v734
      %v767 = vadd.f32 %v703, %v735
      %v768 = vadd.f32 %v704, %v736
      %v769 = vadd.f32 %v705, %v737
      %v770 = vadd.f32 %v706, %v738
      %v771 = vadd.f32 %v707, %v739
      %v772 = vadd.f32 %v708, %v740
      %v773 = vadd.f32 %v709, %v741
      %v774 = vadd.f32 %v710, %v742
      %v775 = vadd.f32 %v711, %v743
      %v776 = vadd.f32 %v712, %v744
      %v777 = vadd.f32 %v713, %v745
      %v778 = vadd.f32 %v714, %v746
      %v779 = vadd.f32 %v715, %v747
      %v780 = vadd.f32 %v716, %v748
      %v781 = vadd.f32 %v717, %v749
      %v782 = vadd.f32 %v718, %v750
      %v783 = vadd.f32 %v719, %v751
      %v784 = vadd.f32 %v720, %v752
      %v785 = vadd.f32 %v721, %v753
      %v786 = vadd.f32 %v722, %v754
      %v787 = vadd.f32 %v723, %v755
      %v788 = vadd.f32 %v724, %v756
      %v789 = vadd.f32 %v725, %v757
      %v790 = vadd.f32 %v726, %v758
      %v791 = vadd.f32 %v727, %v759
      %v792 = vadd.f32 %v728, %v760
      %v793 = vadd.f32 %v729, %v761
      %v794 = vadd.f32 %v730, %v762
      %v795 = vadd.f32 %v731, %v763
      %v796 = vadd.f32 %v732, %v764
      %v797 = vxor.u32 %v765, 2147483648
      %v798 = vxor.u32 %v766, 2147483648
      %v799 = vxor.u32 %v767, 2147483648
      %v800 = vxor.u32 %v768, 2147483648
      %v801 = vxor.u32 %v769, 2147483648
      %v802 = vxor.u32 %v770, 2147483648
      %v803 = vxor.u32 %v771, 2147483648
      %v804 = vxor.u32 %v772, 2147483648
      %v805 = vxor.u32 %v773, 2147483648
      %v806 = vxor.u32 %v774, 2147483648
      %v807 = vxor.u32 %v775, 2147483648
      %v808 = vxor.u32 %v776, 2147483648
      %v809 = vxor.u32 %v777, 2147483648
      %v810 = vxor.u32 %v778, 2147483648
      %v811 = vxor.u32 %v779, 2147483648
      %v812 = vxor.u32 %v780, 2147483648
      %v813 = vxor.u32 %v781, 2147483648
      %v814 = vxor.u32 %v782, 2147483648
      %v815 = vxor.u32 %v783, 2147483648
      %v816 = vxor.u32 %v784, 2147483648
      %v817 = vxor.u32 %v785, 2147483648
      %v818 = vxor.u32 %v786, 2147483648
      %v819 = vxor.u32 %v787, 2147483648
      %v820 = vxor.u32 %v788, 2147483648
      %v821 = vxor.u32 %v789, 2147483648
      %v822 = vxor.u32 %v790, 2147483648
      %v823 = vxor.u32 %v791, 2147483648
      %v824 = vxor.u32 %v792, 2147483648
      %v825 = vxor.u32 %v793, 2147483648
      %v826 = vxor.u32 %v794, 2147483648
      %v827 = vxor.u32 %v795, 2147483648
      %v828 = vxor.u32 %v796, 2147483648
      %v829 = vmul.f32 %v797, 1.442695
      %v830 = vpow.pop %v829
      %v831 = vmul.f32 %v798, 1.442695
      %v832 = vpow.pop %v831
      %v833 = vmul.f32 %v799, 1.442695
      %v834 = vpow.pop %v833
      %v835 = vmul.f32 %v800, 1.442695
      %v836 = vpow.pop %v835
      %v837 = vmul.f32 %v801, 1.442695
      %v838 = vpow.pop %v837
      %v839 = vmul.f32 %v802, 1.442695
      %v840 = vpow.pop %v839
      %v841 = vmul.f32 %v803, 1.442695
      %v842 = vpow.pop %v841
      %v843 = vmul.f32 %v804, 1.442695
      %v844 = vpow.pop %v843
      %v845 = vmul.f32 %v805, 1.442695
      %v846 = vpow.pop %v845
      %v847 = vmul.f32 %v806, 1.442695
      %v848 = vpow.pop %v847
      %v849 = vmul.f32 %v807, 1.442695
      %v850 = vpow.pop %v849
      %v851 = vmul.f32 %v808, 1.442695
      %v852 = vpow.pop %v851
      %v853 = vmul.f32 %v809, 1.442695
      %v854 = vpow.pop %v853
      %v855 = vmul.f32 %v810, 1.442695
      %v856 = vpow.pop %v855
      %v857 = vmul.f32 %v811, 1.442695
      %v858 = vpow.pop %v857
      %v859 = vmul.f32 %v812, 1.442695
      %v860 = vpow.pop %v859
      %v861 = vmul.f32 %v813, 1.442695
      %v862 = vpow.pop %v861
      %v863 = vmul.f32 %v814, 1.442695
      %v864 = vpow.pop %v863
      %v865 = vmul.f32 %v815, 1.442695
      %v866 = vpow.pop %v865
      %v867 = vmul.f32 %v816, 1.442695
      %v868 = vpow.pop %v867
      %v869 = vmul.f32 %v817, 1.442695
      %v870 = vpow.pop %v869
      %v871 = vmul.f32 %v818, 1.442695
      %v872 = vpow.pop %v871
      %v873 = vmul.f32 %v819, 1.442695
      %v874 = vpow.pop %v873
      %v875 = vmul.f32 %v820, 1.442695
      %v876 = vpow.pop %v875
      %v877 = vmul.f32 %v821, 1.442695
      %v878 = vpow.pop %v877
      %v879 = vmul.f32 %v822, 1.442695
      %v880 = vpow.pop %v879
      %v881 = vmul.f32 %v823, 1.442695
      %v882 = vpow.pop %v881
      %v883 = vmul.f32 %v824, 1.442695
      %v884 = vpow.pop %v883
      %v885 = vmul.f32 %v825, 1.442695
      %v886 = vpow.pop %v885
      %v887 = vmul.f32 %v826, 1.442695
      %v888 = vpow.pop %v887
      %v889 = vmul.f32 %v827, 1.442695
      %v890 = vpow.pop %v889
      %v891 = vmul.f32 %v828, 1.442695
      %v892 = vpow.pop %v891
      %v893 = vadd.f32 %v830, 1.0
      %v894 = vadd.f32 %v832, 1.0
      %v895 = vadd.f32 %v834, 1.0
      %v896 = vadd.f32 %v836, 1.0
      %v897 = vadd.f32 %v838, 1.0
      %v898 = vadd.f32 %v840, 1.0
      %v899 = vadd.f32 %v842, 1.0
      %v900 = vadd.f32 %v844, 1.0
      %v901 = vadd.f32 %v846, 1.0
      %v902 = vadd.f32 %v848, 1.0
      %v903 = vadd.f32 %v850, 1.0
      %v904 = vadd.f32 %v852, 1.0
      %v905 = vadd.f32 %v854, 1.0
      %v906 = vadd.f32 %v856, 1.0
      %v907 = vadd.f32 %v858, 1.0
      %v908 = vadd.f32 %v860, 1.0
      %v909 = vadd.f32 %v862, 1.0
      %v910 = vadd.f32 %v864, 1.0
      %v911 = vadd.f32 %v866, 1.0
      %v912 = vadd.f32 %v868, 1.0
      %v913 = vadd.f32 %v870, 1.0
      %v914 = vadd.f32 %v872, 1.0
      %v915 = vadd.f32 %v874, 1.0
      %v916 = vadd.f32 %v876, 1.0
      %v917 = vadd.f32 %v878, 1.0
      %v918 = vadd.f32 %v880, 1.0
      %v919 = vadd.f32 %v882, 1.0
      %v920 = vadd.f32 %v884, 1.0
      %v921 = vadd.f32 %v886, 1.0
      %v922 = vadd.f32 %v888, 1.0
      %v923 = vadd.f32 %v890, 1.0
      %v924 = vadd.f32 %v892, 1.0
      %v925 = vrcp.pop %v893
      %v926 = vmul.f32 1.0, %v925
      %v927 = vrcp.pop %v894
      %v928 = vmul.f32 1.0, %v927
      %v929 = vrcp.pop %v895
      %v930 = vmul.f32 1.0, %v929
      %v931 = vrcp.pop %v896
      %v932 = vmul.f32 1.0, %v931
      %v933 = vrcp.pop %v897
      %v934 = vmul.f32 1.0, %v933
      %v935 = vrcp.pop %v898
      %v936 = vmul.f32 1.0, %v935
      %v937 = vrcp.pop %v899
      %v938 = vmul.f32 1.0, %v937
      %v939 = vrcp.pop %v900
      %v940 = vmul.f32 1.0, %v939
      %v941 = vrcp.pop %v901
      %v942 = vmul.f32 1.0, %v941
      %v943 = vrcp.pop %v902
      %v944 = vmul.f32 1.0, %v943
      %v945 = vrcp.pop %v903
      %v946 = vmul.f32 1.0, %v945
      %v947 = vrcp.pop %v904
      %v948 = vmul.f32 1.0, %v947
      %v949 = vrcp.pop %v905
      %v950 = vmul.f32 1.0, %v949
      %v951 = vrcp.pop %v906
      %v952 = vmul.f32 1.0, %v951
      %v953 = vrcp.pop %v907
      %v954 = vmul.f32 1.0, %v953
      %v955 = vrcp.pop %v908
      %v956 = vmul.f32 1.0, %v955
      %v957 = vrcp.pop %v909
      %v958 = vmul.f32 1.0, %v957
      %v959 = vrcp.pop %v910
      %v960 = vmul.f32 1.0, %v959
      %v961 = vrcp.pop %v911
      %v962 = vmul.f32 1.0, %v961
      %v963 = vrcp.pop %v912
      %v964 = vmul.f32 1.0, %v963
      %v965 = vrcp.pop %v913
      %v966 = vmul.f32 1.0, %v965
      %v967 = vrcp.pop %v914
      %v968 = vmul.f32 1.0, %v967
      %v969 = vrcp.pop %v915
      %v970 = vmul.f32 1.0, %v969
      %v971 = vrcp.pop %v916
      %v972 = vmul.f32 1.0, %v971
      %v973 = vrcp.pop %v917
      %v974 = vmul.f32 1.0, %v973
      %v975 = vrcp.pop %v918
      %v976 = vmul.f32 1.0, %v975
      %v977 = vrcp.pop %v919
      %v978 = vmul.f32 1.0, %v977
      %v979 = vrcp.pop %v920
      %v980 = vmul.f32 1.0, %v979
      %v981 = vrcp.pop %v921
      %v982 = vmul.f32 1.0, %v981
      %v983 = vrcp.pop %v922
      %v984 = vmul.f32 1.0, %v983
      %v985 = vrcp.pop %v923
      %v986 = vmul.f32 1.0, %v985
      %v987 = vrcp.pop %v924
      %v988 = vmul.f32 1.0, %v987
      %v989 = vmul.f32 %v765, %v926
      %v990 = vmul.f32 %v766, %v928
      %v991 = vmul.f32 %v767, %v930
      %v992 = vmul.f32 %v768, %v932
      %v993 = vmul.f32 %v769, %v934
      %v994 = vmul.f32 %v770, %v936
      %v995 = vmul.f32 %v771, %v938
      %v996 = vmul.f32 %v772, %v940
      %v997 = vmul.f32 %v773, %v942
      %v998 = vmul.f32 %v774, %v944
      %v999 = vmul.f32 %v775, %v946
      %v1000 = vmul.f32 %v776, %v948
      %v1001 = vmul.f32 %v777, %v950
      %v1002 = vmul.f32 %v778, %v952
      %v1003 = vmul.f32 %v779, %v954
      %v1004 = vmul.f32 %v780, %v956
      %v1005 = vmul.f32 %v781, %v958
      %v1006 = vmul.f32 %v782, %v960
      %v1007 = vmul.f32 %v783, %v962
      %v1008 = vmul.f32 %v784, %v964
      %v1009 = vmul.f32 %v785, %v966
      %v1010 = vmul.f32 %v786, %v968
      %v1011 = vmul.f32 %v787, %v970
      %v1012 = vmul.f32 %v788, %v972
      %v1013 = vmul.f32 %v789, %v974
      %v1014 = vmul.f32 %v790, %v976
      %v1015 = vmul.f32 %v791, %v978
      %v1016 = vmul.f32 %v792, %v980
      %v1017 = vmul.f32 %v793, %v982
      %v1018 = vmul.f32 %v794, %v984
      %v1019 = vmul.f32 %v795, %v986
      %v1020 = vmul.f32 %v796, %v988
      %vm1021 = vcmask 64512
      %1022 = vst.msk [vmem:[%s339] sm:$0xff] %vm1021, %v989
      %1023 = vst.msk [vmem:[%s339 + $0x8] sm:$0xff] %vm1021, %v990
      %1024 = vst.msk [vmem:[%s339 + $0x10] sm:$0xff] %vm1021, %v991
      %1025 = vst.msk [vmem:[%s339 + $0x18] sm:$0xff] %vm1021, %v992
      %1026 = vst.msk [vmem:[%s339 + $0x20] sm:$0xff] %vm1021, %v993
      %1027 = vst.msk [vmem:[%s339 + $0x28] sm:$0xff] %vm1021, %v994
      %1028 = vst.msk [vmem:[%s339 + $0x30] sm:$0xff] %vm1021, %v995
      %1029 = vst.msk [vmem:[%s339 + $0x38] sm:$0xff] %vm1021, %v996
      %1030 = vst.msk [vmem:[%s339 + $0x40] sm:$0xff] %vm1021, %v997
      %1031 = vst.msk [vmem:[%s339 + $0x48] sm:$0xff] %vm1021, %v998
      %1032 = vst.msk [vmem:[%s339 + $0x50] sm:$0xff] %vm1021, %v999
      %1033 = vst.msk [vmem:[%s339 + $0x58] sm:$0xff] %vm1021, %v1000
      %1034 = vst.msk [vmem:[%s339 + $0x60] sm:$0xff] %vm1021, %v1001
      %1035 = vst.msk [vmem:[%s339 + $0x68] sm:$0xff] %vm1021, %v1002
      %1036 = vst.msk [vmem:[%s339 + $0x70] sm:$0xff] %vm1021, %v1003
      %1037 = vst.msk [vmem:[%s339 + $0x78] sm:$0xff] %vm1021, %v1004
      %1038 = vst.msk [vmem:[%s339 + $0x80] sm:$0xff] %vm1021, %v1005
      %1039 = vst.msk [vmem:[%s339 + $0x88] sm:$0xff] %vm1021, %v1006
      %1040 = vst.msk [vmem:[%s339 + $0x90] sm:$0xff] %vm1021, %v1007
      %1041 = vst.msk [vmem:[%s339 + $0x98] sm:$0xff] %vm1021, %v1008
      %1042 = vst.msk [vmem:[%s339 + $0xa0] sm:$0xff] %vm1021, %v1009
      %1043 = vst.msk [vmem:[%s339 + $0xa8] sm:$0xff] %vm1021, %v1010
      %1044 = vst.msk [vmem:[%s339 + $0xb0] sm:$0xff] %vm1021, %v1011
      %1045 = vst.msk [vmem:[%s339 + $0xb8] sm:$0xff] %vm1021, %v1012
      %1046 = vst.msk [vmem:[%s339 + $0xc0] sm:$0xff] %vm1021, %v1013
      %1047 = vst.msk [vmem:[%s339 + $0xc8] sm:$0xff] %vm1021, %v1014
      %1048 = vst.msk [vmem:[%s339 + $0xd0] sm:$0xff] %vm1021, %v1015
      %1049 = vst.msk [vmem:[%s339 + $0xd8] sm:$0xff] %vm1021, %v1016
      %1050 = vst.msk [vmem:[%s339 + $0xe0] sm:$0xff] %vm1021, %v1017
      %1051 = vst.msk [vmem:[%s339 + $0xe8] sm:$0xff] %vm1021, %v1018
      %1052 = vst.msk [vmem:[%s339 + $0xf0] sm:$0xff] %vm1021, %v1019
      %1053 = vst.msk [vmem:[%s339 + $0xf8] sm:$0xff] %vm1021, %v1020
      %s1054 = smul.u32 32, %s22
      %p1055 = scmp.lt.s32.totalorder %s21, 1
      %s1056 = scalar_select %p1055, %s21, 1
      %p1057 = scmp.lt.s32.totalorder %s1054, 31
      %s1058 = scalar_select %p1057, %s1054, 31
      %s1059 = smul.addr %s1056, 32
      %s1060 = sadd.s32 %s1058, %s1059
      %s1061 = smul.addr %s1060, 8
      %s1062 = scalar_lea.vmem %s6, %s1061
      // Predicated region
      $region45: #{mobilenet_block.5} parent=43 // pred_check
        %p1063 = pneg %p194
      $region46: #{mobilenet_block.5} parent=43 // pred_check_branch
        %1065 = sbr.rel (%p1063) target = $region48
      $region47: #{mobilenet_block.5} parent=43 // pred_region
        %s1066 = smul.u32 32, %s22
      $region48: #{mobilenet_block.5} parent=43 // pred_fallthru
        _
    $region44: #{mobilenet_block.5} parent=5 // pred_fallthru
      _
    %p1067 = scmp.le.s32.totalorder 2, %s12
    // Predicated region
    $region49: #{mobilenet_block.5} parent=5 // pred_check
      %p1068 = pneg %p1067
    $region50: #{mobilenet_block.5} parent=5 // pred_check_branch
      %1070 = sbr.rel (%p1068) target = $region52
    $region51: #{mobilenet_block.5} parent=5 // pred_region
      %s1071 = ssub.s32 %s12, 2
      // Predicated region
      $region53: #{mobilenet_block.5} parent=51 // pred_check
        %p1072 = pneg %p200
      $region54: #{mobilenet_block.5} parent=51 // pred_check_branch
        %1074 = sbr.rel (%p1072) target = $region56
      $region55: #{mobilenet_block.5} parent=51 // pred_region
        %s1075 = smul.u32 32, %s24
        %p1076 = scmp.lt.s32.totalorder %s23, 1
        %s1077 = scalar_select %p1076, %s23, 1
        %p1078 = scmp.lt.s32.totalorder %s1075, 31
        %s1079 = scalar_select %p1078, %s1075, 31
        %s1080 = smul.addr %s1077, 32
        %s1081 = sadd.s32 %s1079, %s1080
        %s1082 = smul.addr %s1081, 8
        %s1083 = scalar_lea.vmem %s6, %s1082
      $region56: #{mobilenet_block.5} parent=51 // pred_fallthru
        _
    $region52: #{mobilenet_block.5} parent=5 // pred_fallthru
      _
  $region6: #{mobilenet_block.5} parent=0 // loop_footer
    %s16 = sadd.s32 1, %s12
  $region7: #{mobilenet_block.5} parent=0 // loop_footer_branch
    %11 = sbr.rel target = $region3
  $region8: #{mobilenet_block.5} parent=0 // loop_exit
    _

// kernel: mobilenet_block.3
$region0: #{mobilenet_block.3}
  #allocation0 [shape = 'u32[]', space=smem, size = 0x4, offset = 0x4, fixed_abs, tag = 'smem constant byte address 0x4 - core index']
  #allocation1 [shape = 'u32[144,128]{1,0:T(1,128)}', space=vmem, size = 0x12000, scoped, tag = 'internal scratch']
  %s0 = inlined_call_operand.vmem [shape: f32[2,256,8], index: 0, kind: input, shape index: {}]
  %s1 = inlined_call_operand.vmem [shape: bf16[8,32], index: 1, kind: input, shape index: {}]
  %s2 = inlined_call_operand.vmem [shape: f32[1,32], index: 2, kind: input, shape index: {}]
  %s3 = inlined_call_operand.vmem [shape: f32[1,32], index: 3, kind: input, shape index: {}]
  %s4 = inlined_call_operand.vmem [shape: f32[9,32], index: 4, kind: input, shape index: {}]
  %s5 = inlined_call_operand.vmem [shape: f32[1,32], index: 5, kind: input, shape index: {}]
  %s6 = inlined_call_operand.vmem [shape: f32[1,32], index: 6, kind: input, shape index: {}]
  %s7 = inlined_call_operand.vmem [shape: f32[2,256,32], index: 7, kind: output, shape index: {0}]
  %s8 = inlined_call_operand.vmem [shape: f32[2,1,32], index: 8, kind: output, shape index: {1}]
  %9 = xla_tuple %s7, %s8
  %s10 = sld [smem:[#allocation0]]
  $region69: #{mobilenet_block.3} parent=0
    _
  %s12 = ssub.s32 1, %s10
  %s13 = scalar_select 0, %s12, %s10
  loop: start=0, step=1, limit=4
  $region2: #{mobilenet_block.3} parent=0 // loop_pre_header
    _
  $region3: #{mobilenet_block.3} parent=0 // loop_header
    %s15 = sphi 0, %s19
    %p16 = scmp.ge.s32.totalorder %s15, 4
    %s25 = sphi 0, %s27
    %s28 = sphi 0, %s25
    %s29 = sphi 0, %s28
    %s45 = sphi 0, %s29
    %s49 = sphi 0, %s49
    %s51 = sphi 0, %s49
    %s52 = sphi 0, %s51
    %s66 = sphi 0, %s52
    %s70 = sphi 0, %s70
    %s72 = sphi 0, %s70
    %s73 = sphi 0, %s72
    %s87 = sphi 0, %s73
    %s91 = sphi 0, %s91
    %s93 = sphi 0, %s91
    %s94 = sphi 0, %s93
    %s108 = sphi 0, %s94
    %s112 = sphi 0, %s112
    %s114 = sphi 0, %s112
    %s115 = sphi 0, %s114
    %s129 = sphi 0, %s115
    %s133 = sphi 0, %s133
    %s135 = sphi 0, %s133
    %s136 = sphi 0, %s135
    %s150 = sphi 0, %s136
    %s154 = sphi 0, %s154
    %s156 = sphi 0, %s154
    %s157 = sphi 0, %s156
    %s171 = sphi 0, %s157
    %s177 = sphi 0, %s179
    %s180 = sphi 0, %s177
    %s181 = sphi 0, %s180
    %s197 = sphi 0, %s181
    %s203 = sphi 0, %s205
    %s206 = sphi 0, %s203
    %s207 = sphi 0, %s206
    %s223 = sphi 0, %s207
  $region4: #{mobilenet_block.3} parent=0 // loop_header_branch
    %18 = sbr.rel (%p16) target = $region8
  $region5: #{mobilenet_block.3} parent=0 // loop_body
    %s20 = ssub.s32 %s15, 1
    %s21 = ssub.s32 %s15, 2
    %s22 = sadd.s32 %s15, 1
    %s23 = ssub.s32 %s15, %s22
    %p24 = scmp.eq.s32.totalorder %s23, 0
    %s26 = sadd.s32 %s25, 1
    %s27 = scalar_select %p24, %s25, %s26
    %p30 = pneg %p24
    %p31 = scmp.eq.s32.totalorder %s15, 1
    %p32 = por %p30, %p31
    %p33 = scmp.ne.s32.totalorder %s25, %s28
    %p34 = scmp.eq.s32.totalorder %s15, 0
    %p35 = por %p33, %p34
    %p36 = scmp.ne.s32.totalorder %s25, %s28
    %p37 = scmp.eq.s32.totalorder %s20, 1
    %p38 = por %p36, %p37
    %p39 = scmp.ne.s32.totalorder %s28, %s29
    %p40 = scmp.eq.s32.totalorder %s20, 0
    %p41 = por %p39, %p40
    %p42 = scmp.ne.s32.totalorder %s28, %s29
    %p43 = scmp.eq.s32.totalorder %s21, 1
    %p44 = por %p42, %p43
    %p46 = scmp.ne.s32.totalorder %s29, %s45
    %p47 = scmp.eq.s32.totalorder %s21, 0
    %p48 = por %p46, %p47
    %s50 = sadd.s32 %s49, 1
    %p53 = scmp.eq.s32.totalorder %s15, 1
    %p54 = scmp.ne.s32.totalorder %s49, %s51
    %p55 = scmp.eq.s32.totalorder %s15, 0
    %p56 = por %p54, %p55
    %p57 = scmp.ne.s32.totalorder %s49, %s51
    %p58 = scmp.eq.s32.totalorder %s20, 1
    %p59 = por %p57, %p58
    %p60 = scmp.ne.s32.totalorder %s51, %s52
    %p61 = scmp.eq.s32.totalorder %s20, 0
    %p62 = por %p60, %p61
    %p63 = scmp.ne.s32.totalorder %s51, %s52
    %p64 = scmp.eq.s32.totalorder %s21, 1
    %p65 = por %p63, %p64
    %p67 = scmp.ne.s32.totalorder %s52, %s66
    %p68 = scmp.eq.s32.totalorder %s21, 0
    %p69 = por %p67, %p68
    %s71 = sadd.s32 %s70, 1
    %p74 = scmp.eq.s32.totalorder %s15, 1
    %p75 = scmp.ne.s32.totalorder %s70, %s72
    %p76 = scmp.eq.s32.totalorder %s15, 0
    %p77 = por %p75, %p76
    %p78 = scmp.ne.s32.totalorder %s70, %s72
    %p79 = scmp.eq.s32.totalorder %s20, 1
    %p80 = por %p78, %p79
    %p81 = scmp.ne.s32.totalorder %s72, %s73
    %p82 = scmp.eq.s32.totalorder %s20, 0
    %p83 = por %p81, %p82
    %p84 = scmp.ne.s32.totalorder %s72, %s73
    %p85 = scmp.eq.s32.totalorder %s21, 1
    %p86 = por %p84, %p85
    %p88 = scmp.ne.s32.totalorder %s73, %s87
    %p89 = scmp.eq.s32.totalorder %s21, 0
    %p90 = por %p88, %p89
    %s92 = sadd.s32 %s91, 1
    %p95 = scmp.eq.s32.totalorder %s15, 1
    %p96 = scmp.ne.s32.totalorder %s91, %s93
    %p97 = scmp.eq.s32.totalorder %s15, 0
    %p98 = por %p96, %p97
    %p99 = scmp.ne.s32.totalorder %s91, %s93
    %p100 = scmp.eq.s32.totalorder %s20, 1
    %p101 = por %p99, %p100
    %p102 = scmp.ne.s32.totalorder %s93, %s94
    %p103 = scmp.eq.s32.totalorder %s20, 0
    %p104 = por %p102, %p103
    %p105 = scmp.ne.s32.totalorder %s93, %s94
    %p106 = scmp.eq.s32.totalorder %s21, 1
    %p107 = por %p105, %p106
    %p109 = scmp.ne.s32.totalorder %s94, %s108
    %p110 = scmp.eq.s32.totalorder %s21, 0
    %p111 = por %p109, %p110
    %s113 = sadd.s32 %s112, 1
    %p116 = scmp.eq.s32.totalorder %s15, 1
    %p117 = scmp.ne.s32.totalorder %s112, %s114
    %p118 = scmp.eq.s32.totalorder %s15, 0
    %p119 = por %p117, %p118
    %p120 = scmp.ne.s32.totalorder %s112, %s114
    %p121 = scmp.eq.s32.totalorder %s20, 1
    %p122 = por %p120, %p121
    %p123 = scmp.ne.s32.totalorder %s114, %s115
    %p124 = scmp.eq.s32.totalorder %s20, 0
    %p125 = por %p123, %p124
    %p126 = scmp.ne.s32.totalorder %s114, %s115
    %p127 = scmp.eq.s32.totalorder %s21, 1
    %p128 = por %p126, %p127
    %p130 = scmp.ne.s32.totalorder %s115, %s129
    %p131 = scmp.eq.s32.totalorder %s21, 0
    %p132 = por %p130, %p131
    %s134 = sadd.s32 %s133, 1
    %p137 = scmp.eq.s32.totalorder %s15, 1
    %p138 = scmp.ne.s32.totalorder %s133, %s135
    %p139 = scmp.eq.s32.totalorder %s15, 0
    %p140 = por %p138, %p139
    %p141 = scmp.ne.s32.totalorder %s133, %s135
    %p142 = scmp.eq.s32.totalorder %s20, 1
    %p143 = por %p141, %p142
    %p144 = scmp.ne.s32.totalorder %s135, %s136
    %p145 = scmp.eq.s32.totalorder %s20, 0
    %p146 = por %p144, %p145
    %p147 = scmp.ne.s32.totalorder %s135, %s136
    %p148 = scmp.eq.s32.totalorder %s21, 1
    %p149 = por %p147, %p148
    %p151 = scmp.ne.s32.totalorder %s136, %s150
    %p152 = scmp.eq.s32.totalorder %s21, 0
    %p153 = por %p151, %p152
    %s155 = sadd.s32 %s154, 1
    %p158 = scmp.eq.s32.totalorder %s15, 1
    %p159 = scmp.ne.s32.totalorder %s154, %s156
    %p160 = scmp.eq.s32.totalorder %s15, 0
    %p161 = por %p159, %p160
    %p162 = scmp.ne.s32.totalorder %s154, %s156
    %p163 = scmp.eq.s32.totalorder %s20, 1
    %p164 = por %p162, %p163
    %p165 = scmp.ne.s32.totalorder %s156, %s157
    %p166 = scmp.eq.s32.totalorder %s20, 0
    %p167 = por %p165, %p166
    %p168 = scmp.ne.s32.totalorder %s156, %s157
    %p169 = scmp.eq.s32.totalorder %s21, 1
    %p170 = por %p168, %p169
    %p172 = scmp.ne.s32.totalorder %s157, %s171
    %p173 = scmp.eq.s32.totalorder %s21, 0
    %p174 = por %p172, %p173
    %s175 = ssub.s32 %s15, %s22
    %p176 = scmp.eq.s32.totalorder %s175, 0
    %s178 = sadd.s32 %s177, 1
    %s179 = scalar_select %p176, %s177, %s178
    %p182 = pneg %p176
    %p183 = scmp.eq.s32.totalorder %s15, 1
    %p184 = por %p182, %p183
    %p185 = scmp.ne.s32.totalorder %s177, %s180
    %p186 = scmp.eq.s32.totalorder %s15, 0
    %p187 = por %p185, %p186
    %p188 = scmp.ne.s32.totalorder %s177, %s180
    %p189 = scmp.eq.s32.totalorder %s20, 1
    %p190 = por %p188, %p189
    %p191 = scmp.ne.s32.totalorder %s180, %s181
    %p192 = scmp.eq.s32.totalorder %s20, 0
    %p193 = por %p191, %p192
    %p194 = scmp.ne.s32.totalorder %s180, %s181
    %p195 = scmp.eq.s32.totalorder %s21, 1
    %p196 = por %p194, %p195
    %p198 = scmp.ne.s32.totalorder %s181, %s197
    %p199 = scmp.eq.s32.totalorder %s21, 0
    %p200 = por %p198, %p199
    %s201 = ssub.s32 %s15, %s22
    %p202 = scmp.eq.s32.totalorder %s201, 0
    %s204 = sadd.s32 %s203, 1
    %s205 = scalar_select %p202, %s203, %s204
    %p208 = pneg %p202
    %p209 = scmp.eq.s32.totalorder %s15, 1
    %p210 = por %p208, %p209
    %p211 = scmp.ne.s32.totalorder %s203, %s206
    %p212 = scmp.eq.s32.totalorder %s15, 0
    %p213 = por %p211, %p212
    %p214 = scmp.ne.s32.totalorder %s203, %s206
    %p215 = scmp.eq.s32.totalorder %s20, 1
    %p216 = por %p214, %p215
    %p217 = scmp.ne.s32.totalorder %s206, %s207
    %p218 = scmp.eq.s32.totalorder %s20, 0
    %p219 = por %p217, %p218
    %p220 = scmp.ne.s32.totalorder %s206, %s207
    %p221 = scmp.eq.s32.totalorder %s21, 1
    %p222 = por %p220, %p221
    %p224 = scmp.ne.s32.totalorder %s207, %s223
    %p225 = scmp.eq.s32.totalorder %s21, 0
    %p226 = por %p224, %p225
    %p227 = scmp.le.s32.totalorder 1, %s15
    %p228 = scmp.lt.s32.totalorder %s15, 3
    %p229 = pnand %p227, %p228
    %p230 = pneg %p229
    // Predicated region
    $region9: #{mobilenet_block.3} parent=5 // pred_check
      _
    $region10: #{mobilenet_block.3} parent=5 // pred_check_branch
      %232 = sbr.rel (%p229) target = $region12
    $region11: #{mobilenet_block.3} parent=5 // pred_region
      %s233 = ssub.s32 %s15, 1
      // Predicated region
      $region13: #{mobilenet_block.3} parent=11 // pred_check
        %p234 = pneg %p62
      $region14: #{mobilenet_block.3} parent=11 // pred_check_branch
        %236 = sbr.rel (%p234) target = $region16
      $region15: #{mobilenet_block.3} parent=11 // pred_region
        _
      $region16: #{mobilenet_block.3} parent=11 // pred_fallthru
        _
      // Predicated region
      $region17: #{mobilenet_block.3} parent=11 // pred_check
        %p237 = pneg %p83
      $region18: #{mobilenet_block.3} parent=11 // pred_check_branch
        %239 = sbr.rel (%p237) target = $region20
      $region19: #{mobilenet_block.3} parent=11 // pred_region
        _
      $region20: #{mobilenet_block.3} parent=11 // pred_fallthru
        _
      // Predicated region
      $region21: #{mobilenet_block.3} parent=11 // pred_check
        %p240 = pneg %p104
      $region22: #{mobilenet_block.3} parent=11 // pred_check_branch
        %242 = sbr.rel (%p240) target = $region24
      $region23: #{mobilenet_block.3} parent=11 // pred_region
        _
      $region24: #{mobilenet_block.3} parent=11 // pred_fallthru
        _
      // Predicated region
      $region25: #{mobilenet_block.3} parent=11 // pred_check
        %p243 = pneg %p125
      $region26: #{mobilenet_block.3} parent=11 // pred_check_branch
        %245 = sbr.rel (%p243) target = $region28
      $region27: #{mobilenet_block.3} parent=11 // pred_region
        _
      $region28: #{mobilenet_block.3} parent=11 // pred_fallthru
        _
      // Predicated region
      $region29: #{mobilenet_block.3} parent=11 // pred_check
        %p246 = pneg %p146
      $region30: #{mobilenet_block.3} parent=11 // pred_check_branch
        %248 = sbr.rel (%p246) target = $region32
      $region31: #{mobilenet_block.3} parent=11 // pred_region
        _
      $region32: #{mobilenet_block.3} parent=11 // pred_fallthru
        _
      // Predicated region
      $region33: #{mobilenet_block.3} parent=11 // pred_check
        %p249 = pneg %p167
      $region34: #{mobilenet_block.3} parent=11 // pred_check_branch
        %251 = sbr.rel (%p249) target = $region36
      $region35: #{mobilenet_block.3} parent=11 // pred_region
        _
      $region36: #{mobilenet_block.3} parent=11 // pred_fallthru
        _
    $region12: #{mobilenet_block.3} parent=5 // pred_fallthru
      _
    %p252 = scmp.lt.s32.totalorder %s15, 2
    // Predicated region
    $region37: #{mobilenet_block.3} parent=5 // pred_check
      %p253 = pneg %p252
    $region38: #{mobilenet_block.3} parent=5 // pred_check_branch
      %255 = sbr.rel (%p253) target = $region40
    $region39: #{mobilenet_block.3} parent=5 // pred_region
      // Predicated region
      $region41: #{mobilenet_block.3} parent=39 // pred_check
        %p256 = pneg %p35
      $region42: #{mobilenet_block.3} parent=39 // pred_check_branch
        %258 = sbr.rel (%p256) target = $region44
      $region43: #{mobilenet_block.3} parent=39 // pred_region
        %p259 = scmp.lt.s32.totalorder %s15, 1
        %s260 = scalar_select %p259, %s15, 1
        %s261 = smul.addr %s260, 32
        %s262 = smul.addr %s261, 8
        %s263 = scalar_lea.vmem %s0, %s262
      $region44: #{mobilenet_block.3} parent=39 // pred_fallthru
        _
    $region40: #{mobilenet_block.3} parent=5 // pred_fallthru
      _
    %p264 = scmp.le.s32.totalorder 1, %s15
    %p265 = scmp.lt.s32.totalorder %s15, 3
    %p266 = pnand %p264, %p265
    %p267 = pneg %p266
    // Predicated region
    $region45: #{mobilenet_block.3} parent=5 // pred_check
      _
    $region46: #{mobilenet_block.3} parent=5 // pred_check_branch
      %269 = sbr.rel (%p266) target = $region48
    $region47: #{mobilenet_block.3} parent=5 // pred_region
      %s270 = ssub.s32 %s15, 1
      %p271 = scmp.lt.s32.totalorder %s20, 1
      %s272 = scalar_select %p271, %s20, 1
      %s273 = smul.addr %s272, 32
      %s274 = smul.addr %s273, 8
      %s275 = scalar_lea.vmem %s0, %s274
      %p276 = pneg %p41
      %p277 = pneg %p38
      %p278 = pneg %p62
      %p279 = pneg %p59
      %p280 = pneg %p83
      %p281 = pneg %p80
      %p282 = pneg %p104
      %p283 = pneg %p101
      %p284 = pneg %p125
      %p285 = pneg %p122
      %p286 = pneg %p146
      %p287 = pneg %p143
      %p288 = pneg %p167
      %p289 = pneg %p164
      %p290 = pneg %p193
      %p291 = pneg %p190
      %p292 = scmp.lt.s32.totalorder %s20, 1
      %s293 = scalar_select %p292, %s20, 1
      %s294 = smul.addr %s293, 32
      %s295 = smul.addr %s294, 8
      %s296 = scalar_lea.vmem %s7, %s295
      %p297 = pneg %p219
      %p298 = pneg %p216
      %p299 = scmp.lt.s32.totalorder %s20, 1
      %s300 = scalar_select %p299, %s20, 1
      %s301 = scalar_lea.vmem %s8, %s300
      %p302 = scmp.lt.s32.totalorder %s20, 1
      %s303 = scalar_select %p302, %s20, 1
      %s304 = smul.addr %s303, 32
      %s305 = smul.addr %s304, 8
      %s306 = scalar_lea.vmem %s0, %s305
      %p307 = scmp.lt.s32.totalorder %s20, 1
      %s308 = scalar_select %p307, %s20, 1
      %s309 = smul.addr %s308, 32
      %s310 = smul.addr %s309, 8
      %s311 = scalar_lea.vmem %s7, %s310
      %p312 = scmp.lt.s32.totalorder %s20, 1
      %s313 = scalar_select %p312, %s20, 1
      %s314 = scalar_lea.vmem %s8, %s313
      %v316 = vld [vmem:[%s306] sm:$0xff]
      %v317 = vld [vmem:[%s306 + $0x8] sm:$0xff]
      %v318 = vld [vmem:[%s306 + $0x10] sm:$0xff]
      %v319 = vld [vmem:[%s306 + $0x18] sm:$0xff]
      %v320 = vld [vmem:[%s306 + $0x20] sm:$0xff]
      %v321 = vld [vmem:[%s306 + $0x28] sm:$0xff]
      %v322 = vld [vmem:[%s306 + $0x30] sm:$0xff]
      %v323 = vld [vmem:[%s306 + $0x38] sm:$0xff]
      %v324 = vld [vmem:[%s306 + $0x40] sm:$0xff]
      %v325 = vld [vmem:[%s306 + $0x48] sm:$0xff]
      %v326 = vld [vmem:[%s306 + $0x50] sm:$0xff]
      %v327 = vld [vmem:[%s306 + $0x58] sm:$0xff]
      %v328 = vld [vmem:[%s306 + $0x60] sm:$0xff]
      %v329 = vld [vmem:[%s306 + $0x68] sm:$0xff]
      %v330 = vld [vmem:[%s306 + $0x70] sm:$0xff]
      %v331 = vld [vmem:[%s306 + $0x78] sm:$0xff]
      %v332 = vld [vmem:[%s306 + $0x80] sm:$0xff]
      %v333 = vld [vmem:[%s306 + $0x88] sm:$0xff]
      %v334 = vld [vmem:[%s306 + $0x90] sm:$0xff]
      %v335 = vld [vmem:[%s306 + $0x98] sm:$0xff]
      %v336 = vld [vmem:[%s306 + $0xa0] sm:$0xff]
      %v337 = vld [vmem:[%s306 + $0xa8] sm:$0xff]
      %v338 = vld [vmem:[%s306 + $0xb0] sm:$0xff]
      %v339 = vld [vmem:[%s306 + $0xb8] sm:$0xff]
      %v340 = vld [vmem:[%s306 + $0xc0] sm:$0xff]
      %v341 = vld [vmem:[%s306 + $0xc8] sm:$0xff]
      %v342 = vld [vmem:[%s306 + $0xd0] sm:$0xff]
      %v343 = vld [vmem:[%s306 + $0xd8] sm:$0xff]
      %v344 = vld [vmem:[%s306 + $0xe0] sm:$0xff]
      %v345 = vld [vmem:[%s306 + $0xe8] sm:$0xff]
      %v346 = vld [vmem:[%s306 + $0xf0] sm:$0xff]
      %v347 = vld [vmem:[%s306 + $0xf8] sm:$0xff]
      %v348 = vpack.c.bf16 %v317, %v316
      %v349 = vpack.c.bf16 %v319, %v318
      %v350 = vpack.c.bf16 %v321, %v320
      %v351 = vpack.c.bf16 %v323, %v322
      %v352 = vpack.c.bf16 %v325, %v324
      %v353 = vpack.c.bf16 %v327, %v326
      %v354 = vpack.c.bf16 %v329, %v328
      %v355 = vpack.c.bf16 %v331, %v330
      %v356 = vpack.c.bf16 %v333, %v332
      %v357 = vpack.c.bf16 %v335, %v334
      %v358 = vpack.c.bf16 %v337, %v336
      %v359 = vpack.c.bf16 %v339, %v338
      %v360 = vpack.c.bf16 %v341, %v340
      %v361 = vpack.c.bf16 %v343, %v342
      %v362 = vpack.c.bf16 %v345, %v344
      %v363 = vpack.c.bf16 %v347, %v346
      %v364 = vld [vmem:[%s1] sm:$0xf]
      %vm365 = vcmask 64512
      %v367 = vsel %vm365, %v348, 0
      %v370 = vsel %vm365, %v349, 0
      %v373 = vsel %vm365, %v350, 0
      %v376 = vsel %vm365, %v351, 0
      %v379 = vsel %vm365, %v352, 0
      %v382 = vsel %vm365, %v353, 0
      %v385 = vsel %vm365, %v354, 0
      %v388 = vsel %vm365, %v355, 0
      %v391 = vsel %vm365, %v356, 0
      %v394 = vsel %vm365, %v357, 0
      %v397 = vsel %vm365, %v358, 0
      %v400 = vsel %vm365, %v359, 0
      %v403 = vsel %vm365, %v360, 0
      %v406 = vsel %vm365, %v361, 0
      %v409 = vsel %vm365, %v362, 0
      %v412 = vsel %vm365, %v363, 0
      %vm414 = vcmask 1043456
      %v416 = vsel %vm414, %v364, 0
      %418 = vmatprep.subr.bf16.mxu0 0
      %419 = vmatpush1.bf16.msra.mxu0 0
      %420 = vmatprep.subr.bf16.mxu0 0
      %421 = vmatpush1.bf16.msra.mxu0 0
      %422 = vmatprep.subr.bf16.mxu0 0
      %423 = vmatpush1.bf16.msra.mxu0 0
      %424 = vmatprep.subr.bf16.mxu0 0
      %425 = vmatpush1.bf16.msra.mxu0 0
      %426 = vmatprep.subr.bf16.mxu0 0
      %427 = vmatpush1.bf16.msra.mxu0 0
      %428 = vmatprep.subr.bf16.mxu0 0
      %429 = vmatpush1.bf16.msra.mxu0 0
      %430 = vmatprep.subr.bf16.mxu0 0
      %431 = vmatpush1.bf16.msra.mxu0 0
      %432 = vmatprep.subr.bf16.mxu0 0
      %433 = vmatpush1.bf16.msra.mxu0 %v416
      %434 = vmatprep.subr.bf16.mxu0 0
      %435 = vmatpush2.bf16.msra.mxu0 0
      %436 = vmatprep.subr.bf16.mxu0 0
      %437 = vmatpush2.bf16.msra.mxu0 0
      %438 = vmatprep.subr.bf16.mxu0 0
      %439 = vmatpush2.bf16.msra.mxu0 0
      %440 = vmatprep.subr.bf16.mxu0 0
      %441 = vmatpush2.bf16.msra.mxu0 0
      %442 = vmatprep.subr.bf16.mxu0 0
      %443 = vmatpush2.bf16.msra.mxu0 0
      %444 = vmatprep.subr.bf16.mxu0 0
      %445 = vmatpush2.bf16.msra.mxu0 0
      %446 = vmatprep.subr.bf16.mxu0 0
      %447 = vmatpush2.bf16.msra.mxu0 0
      %448 = vmatprep.subr.bf16.mxu0 0
      %449 = vmatpush2.bf16.msra.mxu0 0
      %450 = vmatprep.mubr.bf16.mxu0 0
      %451 = vmatmul.mubr.bf16.gmra.mxu0 %v367
      %v452 = vpop.f32.mrf.mxu0
      %v453 = vadd.f32 0.0, %v452
      %v454 = vpop.f32.mrf.mxu0
      %v455 = vpop.f32.mrf.mxu0
      %v456 = vadd.f32 0.0, %v455
      %v457 = vpop.f32.mrf.mxu0
      %458 = vmatprep.mubr.bf16.mxu0 0
      %459 = vmatmul.mubr.bf16.gmra.mxu0 %v370
      %v460 = vpop.f32.mrf.mxu0
      %v461 = vadd.f32 0.0, %v460
      %v462 = vpop.f32.mrf.mxu0
      %v463 = vpop.f32.mrf.mxu0
      %v464 = vadd.f32 0.0, %v463
      %v465 = vpop.f32.mrf.mxu0
      %466 = vmatprep.mubr.bf16.mxu0 0
      %467 = vmatmul.mubr.bf16.gmra.mxu0 %v373
      %v468 = vpop.f32.mrf.mxu0
      %v469 = vadd.f32 0.0, %v468
      %v470 = vpop.f32.mrf.mxu0
      %v471 = vpop.f32.mrf.mxu0
      %v472 = vadd.f32 0.0, %v471
      %v473 = vpop.f32.mrf.mxu0
      %474 = vmatprep.mubr.bf16.mxu0 0
      %475 = vmatmul.mubr.bf16.gmra.mxu0 %v376
      %v476 = vpop.f32.mrf.mxu0
      %v477 = vadd.f32 0.0, %v476
      %v478 = vpop.f32.mrf.mxu0
      %v479 = vpop.f32.mrf.mxu0
      %v480 = vadd.f32 0.0, %v479
      %v481 = vpop.f32.mrf.mxu0
      %482 = vmatprep.mubr.bf16.mxu0 0
      %483 = vmatmul.mubr.bf16.gmra.mxu0 %v379
      %v484 = vpop.f32.mrf.mxu0
      %v485 = vadd.f32 0.0, %v484
      %v486 = vpop.f32.mrf.mxu0
      %v487 = vpop.f32.mrf.mxu0
      %v488 = vadd.f32 0.0, %v487
      %v489 = vpop.f32.mrf.mxu0
      %490 = vmatprep.mubr.bf16.mxu0 0
      %491 = vmatmul.mubr.bf16.gmra.mxu0 %v382
      %v492 = vpop.f32.mrf.mxu0
      %v493 = vadd.f32 0.0, %v492
      %v494 = vpop.f32.mrf.mxu0
      %v495 = vpop.f32.mrf.mxu0
      %v496 = vadd.f32 0.0, %v495
      %v497 = vpop.f32.mrf.mxu0
      %498 = vmatprep.mubr.bf16.mxu0 0
      %499 = vmatmul.mubr.bf16.gmra.mxu0 %v385
      %v500 = vpop.f32.mrf.mxu0
      %v501 = vadd.f32 0.0, %v500
      %v502 = vpop.f32.mrf.mxu0
      %v503 = vpop.f32.mrf.mxu0
      %v504 = vadd.f32 0.0, %v503
      %v505 = vpop.f32.mrf.mxu0
      %506 = vmatprep.mubr.bf16.mxu0 0
      %507 = vmatmul.mubr.bf16.gmra.mxu0 %v388
      %v508 = vpop.f32.mrf.mxu0
      %v509 = vadd.f32 0.0, %v508
      %v510 = vpop.f32.mrf.mxu0
      %v511 = vpop.f32.mrf.mxu0
      %v512 = vadd.f32 0.0, %v511
      %v513 = vpop.f32.mrf.mxu0
      %514 = vmatprep.mubr.bf16.mxu0 0
      %515 = vmatmul.mubr.bf16.gmra.mxu0 %v391
      %v516 = vpop.f32.mrf.mxu0
      %v517 = vadd.f32 0.0, %v516
      %v518 = vpop.f32.mrf.mxu0
      %v519 = vpop.f32.mrf.mxu0
      %v520 = vadd.f32 0.0, %v519
      %v521 = vpop.f32.mrf.mxu0
      %522 = vmatprep.mubr.bf16.mxu0 0
      %523 = vmatmul.mubr.bf16.gmra.mxu0 %v394
      %v524 = vpop.f32.mrf.mxu0
      %v525 = vadd.f32 0.0, %v524
      %v526 = vpop.f32.mrf.mxu0
      %v527 = vpop.f32.mrf.mxu0
      %v528 = vadd.f32 0.0, %v527
      %v529 = vpop.f32.mrf.mxu0
      %530 = vmatprep.mubr.bf16.mxu0 0
      %531 = vmatmul.mubr.bf16.gmra.mxu0 %v397
      %v532 = vpop.f32.mrf.mxu0
      %v533 = vadd.f32 0.0, %v532
      %v534 = vpop.f32.mrf.mxu0
      %v535 = vpop.f32.mrf.mxu0
      %v536 = vadd.f32 0.0, %v535
      %v537 = vpop.f32.mrf.mxu0
      %538 = vmatprep.mubr.bf16.mxu0 0
      %539 = vmatmul.mubr.bf16.gmra.mxu0 %v400
      %v540 = vpop.f32.mrf.mxu0
      %v541 = vadd.f32 0.0, %v540
      %v542 = vpop.f32.mrf.mxu0
      %v543 = vpop.f32.mrf.mxu0
      %v544 = vadd.f32 0.0, %v543
      %v545 = vpop.f32.mrf.mxu0
      %546 = vmatprep.mubr.bf16.mxu0 0
      %547 = vmatmul.mubr.bf16.gmra.mxu0 %v403
      %v548 = vpop.f32.mrf.mxu0
      %v549 = vadd.f32 0.0, %v548
      %v550 = vpop.f32.mrf.mxu0
      %v551 = vpop.f32.mrf.mxu0
      %v552 = vadd.f32 0.0, %v551
      %v553 = vpop.f32.mrf.mxu0
      %554 = vmatprep.mubr.bf16.mxu0 0
      %555 = vmatmul.mubr.bf16.gmra.mxu0 %v406
      %v556 = vpop.f32.mrf.mxu0
      %v557 = vadd.f32 0.0, %v556
      %v558 = vpop.f32.mrf.mxu0
      %v559 = vpop.f32.mrf.mxu0
      %v560 = vadd.f32 0.0, %v559
      %v561 = vpop.f32.mrf.mxu0
      %562 = vmatprep.mubr.bf16.mxu0 0
      %563 = vmatmul.mubr.bf16.gmra.mxu0 %v409
      %v564 = vpop.f32.mrf.mxu0
      %v565 = vadd.f32 0.0, %v564
      %v566 = vpop.f32.mrf.mxu0
      %v567 = vpop.f32.mrf.mxu0
      %v568 = vadd.f32 0.0, %v567
      %v569 = vpop.f32.mrf.mxu0
      %570 = vmatprep.mubr.bf16.mxu0 0
      %571 = vmatmul.mubr.bf16.gmra.mxu0 %v412
      %v572 = vpop.f32.mrf.mxu0
      %v573 = vadd.f32 0.0, %v572
      %v574 = vpop.f32.mrf.mxu0
      %v575 = vpop.f32.mrf.mxu0
      %v576 = vadd.f32 0.0, %v575
      %v577 = vpop.f32.mrf.mxu0
      %578 = vdwg.mxu0
      %v579 = vld [vmem:[%s2] sm:$0x1]
      %v581 = vlaneseq
      %v582 = vshrl.u32 %v581, 7
      %v583 = vsub.s32 0, %v582
      %v584 = vrot.slane %v579, %v583
      %v586 = vmul.f32 %v453, %v584
      %v587 = vmul.f32 %v456, %v584
      %v588 = vmul.f32 %v461, %v584
      %v589 = vmul.f32 %v464, %v584
      %v590 = vmul.f32 %v469, %v584
      %v591 = vmul.f32 %v472, %v584
      %v592 = vmul.f32 %v477, %v584
      %v593 = vmul.f32 %v480, %v584
      %v594 = vmul.f32 %v485, %v584
      %v595 = vmul.f32 %v488, %v584
      %v596 = vmul.f32 %v493, %v584
      %v597 = vmul.f32 %v496, %v584
      %v598 = vmul.f32 %v501, %v584
      %v599 = vmul.f32 %v504, %v584
      %v600 = vmul.f32 %v509, %v584
      %v601 = vmul.f32 %v512, %v584
      %v602 = vmul.f32 %v517, %v584
      %v603 = vmul.f32 %v520, %v584
      %v604 = vmul.f32 %v525, %v584
      %v605 = vmul.f32 %v528, %v584
      %v606 = vmul.f32 %v533, %v584
      %v607 = vmul.f32 %v536, %v584
      %v608 = vmul.f32 %v541, %v584
      %v609 = vmul.f32 %v544, %v584
      %v610 = vmul.f32 %v549, %v584
      %v611 = vmul.f32 %v552, %v584
      %v612 = vmul.f32 %v557, %v584
      %v613 = vmul.f32 %v560, %v584
      %v614 = vmul.f32 %v565, %v584
      %v615 = vmul.f32 %v568, %v584
      %v616 = vmul.f32 %v573, %v584
      %v617 = vmul.f32 %v576, %v584
      %v618 = vld [vmem:[%s3] sm:$0x1]
      %v620 = vlaneseq
      %v621 = vshrl.u32 %v620, 7
      %v622 = vsub.s32 0, %v621
      %v623 = vrot.slane %v618, %v622
      %v625 = vadd.f32 %v586, %v623
      %v626 = vadd.f32 %v587, %v623
      %v627 = vadd.f32 %v588, %v623
      %v628 = vadd.f32 %v589, %v623
      %v629 = vadd.f32 %v590, %v623
      %v630 = vadd.f32 %v591, %v623
      %v631 = vadd.f32 %v592, %v623
      %v632 = vadd.f32 %v593, %v623
      %v633 = vadd.f32 %v594, %v623
      %v634 = vadd.f32 %v595, %v623
      %v635 = vadd.f32 %v596, %v623
      %v636 = vadd.f32 %v597, %v623
      %v637 = vadd.f32 %v598, %v623
      %v638 = vadd.f32 %v599, %v623
      %v639 = vadd.f32 %v600, %v623
      %v640 = vadd.f32 %v601, %v623
      %v641 = vadd.f32 %v602, %v623
      %v642 = vadd.f32 %v603, %v623
      %v643 = vadd.f32 %v604, %v623
      %v644 = vadd.f32 %v605, %v623
      %v645 = vadd.f32 %v606, %v623
      %v646 = vadd.f32 %v607, %v623
      %v647 = vadd.f32 %v608, %v623
      %v648 = vadd.f32 %v609, %v623
      %v649 = vadd.f32 %v610, %v623
      %v650 = vadd.f32 %v611, %v623
      %v651 = vadd.f32 %v612, %v623
      %v652 = vadd.f32 %v613, %v623
      %v653 = vadd.f32 %v614, %v623
      %v654 = vadd.f32 %v615, %v623
      %v655 = vadd.f32 %v616, %v623
      %v656 = vadd.f32 %v617, %v623
      %v657 = vxor.u32 %v625, 2147483648
      %v658 = vxor.u32 %v626, 2147483648
      %v659 = vxor.u32 %v627, 2147483648
      %v660 = vxor.u32 %v628, 2147483648
      %v661 = vxor.u32 %v629, 2147483648
      %v662 = vxor.u32 %v630, 2147483648
      %v663 = vxor.u32 %v631, 2147483648
      %v664 = vxor.u32 %v632, 2147483648
      %v665 = vxor.u32 %v633, 2147483648
      %v666 = vxor.u32 %v634, 2147483648
      %v667 = vxor.u32 %v635, 2147483648
      %v668 = vxor.u32 %v636, 2147483648
      %v669 = vxor.u32 %v637, 2147483648
      %v670 = vxor.u32 %v638, 2147483648
      %v671 = vxor.u32 %v639, 2147483648
      %v672 = vxor.u32 %v640, 2147483648
      %v673 = vxor.u32 %v641, 2147483648
      %v674 = vxor.u32 %v642, 2147483648
      %v675 = vxor.u32 %v643, 2147483648
      %v676 = vxor.u32 %v644, 2147483648
      %v677 = vxor.u32 %v645, 2147483648
      %v678 = vxor.u32 %v646, 2147483648
      %v679 = vxor.u32 %v647, 2147483648
      %v680 = vxor.u32 %v648, 2147483648
      %v681 = vxor.u32 %v649, 2147483648
      %v682 = vxor.u32 %v650, 2147483648
      %v683 = vxor.u32 %v651, 2147483648
      %v684 = vxor.u32 %v652, 2147483648
      %v685 = vxor.u32 %v653, 2147483648
      %v686 = vxor.u32 %v654, 2147483648
      %v687 = vxor.u32 %v655, 2147483648
      %v688 = vxor.u32 %v656, 2147483648
      %v689 = vmul.f32 %v657, 1.442695
      %v690 = vpow.pop %v689
      %v691 = vmul.f32 %v658, 1.442695
      %v692 = vpow.pop %v691
      %v693 = vmul.f32 %v659, 1.442695
      %v694 = vpow.pop %v693
      %v695 = vmul.f32 %v660, 1.442695
      %v696 = vpow.pop %v695
      %v697 = vmul.f32 %v661, 1.442695
      %v698 = vpow.pop %v697
      %v699 = vmul.f32 %v662, 1.442695
      %v700 = vpow.pop %v699
      %v701 = vmul.f32 %v663, 1.442695
      %v702 = vpow.pop %v701
      %v703 = vmul.f32 %v664, 1.442695
      %v704 = vpow.pop %v703
      %v705 = vmul.f32 %v665, 1.442695
      %v706 = vpow.pop %v705
      %v707 = vmul.f32 %v666, 1.442695
      %v708 = vpow.pop %v707
      %v709 = vmul.f32 %v667, 1.442695
      %v710 = vpow.pop %v709
      %v711 = vmul.f32 %v668, 1.442695
      %v712 = vpow.pop %v711
      %v713 = vmul.f32 %v669, 1.442695
      %v714 = vpow.pop %v713
      %v715 = vmul.f32 %v670, 1.442695
      %v716 = vpow.pop %v715
      %v717 = vmul.f32 %v671, 1.442695
      %v718 = vpow.pop %v717
      %v719 = vmul.f32 %v672, 1.442695
      %v720 = vpow.pop %v719
      %v721 = vmul.f32 %v673, 1.442695
      %v722 = vpow.pop %v721
      %v723 = vmul.f32 %v674, 1.442695
      %v724 = vpow.pop %v723
      %v725 = vmul.f32 %v675, 1.442695
      %v726 = vpow.pop %v725
      %v727 = vmul.f32 %v676, 1.442695
      %v728 = vpow.pop %v727
      %v729 = vmul.f32 %v677, 1.442695
      %v730 = vpow.pop %v729
      %v731 = vmul.f32 %v678, 1.442695
      %v732 = vpow.pop %v731
      %v733 = vmul.f32 %v679, 1.442695
      %v734 = vpow.pop %v733
      %v735 = vmul.f32 %v680, 1.442695
      %v736 = vpow.pop %v735
      %v737 = vmul.f32 %v681, 1.442695
      %v738 = vpow.pop %v737
      %v739 = vmul.f32 %v682, 1.442695
      %v740 = vpow.pop %v739
      %v741 = vmul.f32 %v683, 1.442695
      %v742 = vpow.pop %v741
      %v743 = vmul.f32 %v684, 1.442695
      %v744 = vpow.pop %v743
      %v745 = vmul.f32 %v685, 1.442695
      %v746 = vpow.pop %v745
      %v747 = vmul.f32 %v686, 1.442695
      %v748 = vpow.pop %v747
      %v749 = vmul.f32 %v687, 1.442695
      %v750 = vpow.pop %v749
      %v751 = vmul.f32 %v688, 1.442695
      %v752 = vpow.pop %v751
      %v753 = vadd.f32 %v690, 1.0
      %v754 = vadd.f32 %v692, 1.0
      %v755 = vadd.f32 %v694, 1.0
      %v756 = vadd.f32 %v696, 1.0
      %v757 = vadd.f32 %v698, 1.0
      %v758 = vadd.f32 %v700, 1.0
      %v759 = vadd.f32 %v702, 1.0
      %v760 = vadd.f32 %v704, 1.0
      %v761 = vadd.f32 %v706, 1.0
      %v762 = vadd.f32 %v708, 1.0
      %v763 = vadd.f32 %v710, 1.0
      %v764 = vadd.f32 %v712, 1.0
      %v765 = vadd.f32 %v714, 1.0
      %v766 = vadd.f32 %v716, 1.0
      %v767 = vadd.f32 %v718, 1.0
      %v768 = vadd.f32 %v720, 1.0
      %v769 = vadd.f32 %v722, 1.0
      %v770 = vadd.f32 %v724, 1.0
      %v771 = vadd.f32 %v726, 1.0
      %v772 = vadd.f32 %v728, 1.0
      %v773 = vadd.f32 %v730, 1.0
      %v774 = vadd.f32 %v732, 1.0
      %v775 = vadd.f32 %v734, 1.0
      %v776 = vadd.f32 %v736, 1.0
      %v777 = vadd.f32 %v738, 1.0
      %v778 = vadd.f32 %v740, 1.0
      %v779 = vadd.f32 %v742, 1.0
      %v780 = vadd.f32 %v744, 1.0
      %v781 = vadd.f32 %v746, 1.0
      %v782 = vadd.f32 %v748, 1.0
      %v783 = vadd.f32 %v750, 1.0
      %v784 = vadd.f32 %v752, 1.0
      %v785 = vrcp.pop %v753
      %v786 = vmul.f32 1.0, %v785
      %v787 = vrcp.pop %v754
      %v788 = vmul.f32 1.0, %v787
      %v789 = vrcp.pop %v755
      %v790 = vmul.f32 1.0, %v789
      %v791 = vrcp.pop %v756
      %v792 = vmul.f32 1.0, %v791
      %v793 = vrcp.pop %v757
      %v794 = vmul.f32 1.0, %v793
      %v795 = vrcp.pop %v758
      %v796 = vmul.f32 1.0, %v795
      %v797 = vrcp.pop %v759
      %v798 = vmul.f32 1.0, %v797
      %v799 = vrcp.pop %v760
      %v800 = vmul.f32 1.0, %v799
      %v801 = vrcp.pop %v761
      %v802 = vmul.f32 1.0, %v801
      %v803 = vrcp.pop %v762
      %v804 = vmul.f32 1.0, %v803
      %v805 = vrcp.pop %v763
      %v806 = vmul.f32 1.0, %v805
      %v807 = vrcp.pop %v764
      %v808 = vmul.f32 1.0, %v807
      %v809 = vrcp.pop %v765
      %v810 = vmul.f32 1.0, %v809
      %v811 = vrcp.pop %v766
      %v812 = vmul.f32 1.0, %v811
      %v813 = vrcp.pop %v767
      %v814 = vmul.f32 1.0, %v813
      %v815 = vrcp.pop %v768
      %v816 = vmul.f32 1.0, %v815
      %v817 = vrcp.pop %v769
      %v818 = vmul.f32 1.0, %v817
      %v819 = vrcp.pop %v770
      %v820 = vmul.f32 1.0, %v819
      %v821 = vrcp.pop %v771
      %v822 = vmul.f32 1.0, %v821
      %v823 = vrcp.pop %v772
      %v824 = vmul.f32 1.0, %v823
      %v825 = vrcp.pop %v773
      %v826 = vmul.f32 1.0, %v825
      %v827 = vrcp.pop %v774
      %v828 = vmul.f32 1.0, %v827
      %v829 = vrcp.pop %v775
      %v830 = vmul.f32 1.0, %v829
      %v831 = vrcp.pop %v776
      %v832 = vmul.f32 1.0, %v831
      %v833 = vrcp.pop %v777
      %v834 = vmul.f32 1.0, %v833
      %v835 = vrcp.pop %v778
      %v836 = vmul.f32 1.0, %v835
      %v837 = vrcp.pop %v779
      %v838 = vmul.f32 1.0, %v837
      %v839 = vrcp.pop %v780
      %v840 = vmul.f32 1.0, %v839
      %v841 = vrcp.pop %v781
      %v842 = vmul.f32 1.0, %v841
      %v843 = vrcp.pop %v782
      %v844 = vmul.f32 1.0, %v843
      %v845 = vrcp.pop %v783
      %v846 = vmul.f32 1.0, %v845
      %v847 = vrcp.pop %v784
      %v848 = vmul.f32 1.0, %v847
      %v849 = vmul.f32 %v625, %v786
      %v850 = vmul.f32 %v626, %v788
      %v851 = vmul.f32 %v627, %v790
      %v852 = vmul.f32 %v628, %v792
      %v853 = vmul.f32 %v629, %v794
      %v854 = vmul.f32 %v630, %v796
      %v855 = vmul.f32 %v631, %v798
      %v856 = vmul.f32 %v632, %v800
      %v857 = vmul.f32 %v633, %v802
      %v858 = vmul.f32 %v634, %v804
      %v859 = vmul.f32 %v635, %v806
      %v860 = vmul.f32 %v636, %v808
      %v861 = vmul.f32 %v637, %v810
      %v862 = vmul.f32 %v638, %v812
      %v863 = vmul.f32 %v639, %v814
      %v864 = vmul.f32 %v640, %v816
      %v865 = vmul.f32 %v641, %v818
      %v866 = vmul.f32 %v642, %v820
      %v867 = vmul.f32 %v643, %v822
      %v868 = vmul.f32 %v644, %v824
      %v869 = vmul.f32 %v645, %v826
      %v870 = vmul.f32 %v646, %v828
      %v871 = vmul.f32 %v647, %v830
      %v872 = vmul.f32 %v648, %v832
      %v873 = vmul.f32 %v649, %v834
      %v874 = vmul.f32 %v650, %v836
      %v875 = vmul.f32 %v651, %v838
      %v876 = vmul.f32 %v652, %v840
      %v877 = vmul.f32 %v653, %v842
      %v878 = vmul.f32 %v654, %v844
      %v879 = vmul.f32 %v655, %v846
      %v880 = vmul.f32 %v656, %v848
      %v881 = vlaneseq
      %v882 = vshrl.u32 %v881, 7
      %v883 = vadd.s32 %v882, 8
      %v884 = vadd.s32 %v882, 16
      %v885 = vadd.s32 %v882, 24
      %v886 = vadd.s32 %v882, 32
      %v887 = vadd.s32 %v882, 40
      %v888 = vadd.s32 %v882, 48
      %v889 = vadd.s32 %v882, 56
      %v890 = vadd.s32 %v882, 64
      %v891 = vadd.s32 %v882, 72
      %v892 = vadd.s32 %v882, 80
      %v893 = vadd.s32 %v882, 88
      %v894 = vadd.s32 %v882, 96
      %v895 = vadd.s32 %v882, 104
      %v896 = vadd.s32 %v882, 112
      %v897 = vadd.s32 %v882, 120
      %v898 = vadd.s32 %v882, 128
      %v899 = vadd.s32 %v882, 136
      %v900 = vadd.s32 %v882, 144
      %v901 = vadd.s32 %v882, 152
      %v902 = vadd.s32 %v882, 160
      %v903 = vadd.s32 %v882, 168
      %v904 = vadd.s32 %v882, 176
      %v905 = vadd.s32 %v882, 184
      %v906 = vadd.s32 %v882, 192
      %v907 = vadd.s32 %v882, 200
      %v908 = vadd.s32 %v882, 208
      %v909 = vadd.s32 %v882, 216
      %v910 = vadd.s32 %v882, 224
      %v911 = vadd.s32 %v882, 232
      %v912 = vadd.s32 %v882, 240
      %v913 = vadd.s32 %v882, 248
      %vm914 = vcmp.lt.s32.totalorder %v882, 0
      %v915 = vsub.s32 0, %v882
      %v916 = vsel %vm914, %v915, %v882
      %v917 = vshrl.u32 %v916, 4
      %v918 = vand.u32 %v916, 15
      %v919 = vsub.s32 0, %v918
      %v920 = vsel %vm914, %v919, %v918
      %vm921 = vcmp.lt.s32.totalorder %v883, 0
      %v922 = vsub.s32 0, %v883
      %v923 = vsel %vm921, %v922, %v883
      %v924 = vshrl.u32 %v923, 4
      %v925 = vand.u32 %v923, 15
      %v926 = vsub.s32 0, %v925
      %v927 = vsel %vm921, %v926, %v925
      %vm928 = vcmp.lt.s32.totalorder %v884, 0
      %v929 = vsub.s32 0, %v884
      %v930 = vsel %vm928, %v929, %v884
      %v931 = vshrl.u32 %v930, 4
      %v932 = vand.u32 %v930, 15
      %v933 = vsub.s32 0, %v932
      %v934 = vsel %vm928, %v933, %v932
      %vm935 = vcmp.lt.s32.totalorder %v885, 0
      %v936 = vsub.s32 0, %v885
      %v937 = vsel %vm935, %v936, %v885
      %v938 = vshrl.u32 %v937, 4
      %v939 = vand.u32 %v937, 15
      %v940 = vsub.s32 0, %v939
      %v941 = vsel %vm935, %v940, %v939
      %vm942 = vcmp.lt.s32.totalorder %v886, 0
      %v943 = vsub.s32 0, %v886
      %v944 = vsel %vm942, %v943, %v886
      %v945 = vshrl.u32 %v944, 4
      %v946 = vand.u32 %v944, 15
      %v947 = vsub.s32 0, %v946
      %v948 = vsel %vm942, %v947, %v946
      %vm949 = vcmp.lt.s32.totalorder %v887, 0
      %v950 = vsub.s32 0, %v887
      %v951 = vsel %vm949, %v950, %v887
      %v952 = vshrl.u32 %v951, 4
      %v953 = vand.u32 %v951, 15
      %v954 = vsub.s32 0, %v953
      %v955 = vsel %vm949, %v954, %v953
      %vm956 = vcmp.lt.s32.totalorder %v888, 0
      %v957 = vsub.s32 0, %v888
      %v958 = vsel %vm956, %v957, %v888
      %v959 = vshrl.u32 %v958, 4
      %v960 = vand.u32 %v958, 15
      %v961 = vsub.s32 0, %v960
      %v962 = vsel %vm956, %v961, %v960
      %vm963 = vcmp.lt.s32.totalorder %v889, 0
      %v964 = vsub.s32 0, %v889
      %v965 = vsel %vm963, %v964, %v889
      %v966 = vshrl.u32 %v965, 4
      %v967 = vand.u32 %v965, 15
      %v968 = vsub.s32 0, %v967
      %v969 = vsel %vm963, %v968, %v967
      %vm970 = vcmp.lt.s32.totalorder %v890, 0
      %v971 = vsub.s32 0, %v890
      %v972 = vsel %vm970, %v971, %v890
      %v973 = vshrl.u32 %v972, 4
      %v974 = vand.u32 %v972, 15
      %v975 = vsub.s32 0, %v974
      %v976 = vsel %vm970, %v975, %v974
      %vm977 = vcmp.lt.s32.totalorder %v891, 0
      %v978 = vsub.s32 0, %v891
      %v979 = vsel %vm977, %v978, %v891
      %v980 = vshrl.u32 %v979, 4
      %v981 = vand.u32 %v979, 15
      %v982 = vsub.s32 0, %v981
      %v983 = vsel %vm977, %v982, %v981
      %vm984 = vcmp.lt.s32.totalorder %v892, 0
      %v985 = vsub.s32 0, %v892
      %v986 = vsel %vm984, %v985, %v892
      %v987 = vshrl.u32 %v986, 4
      %v988 = vand.u32 %v986, 15
      %v989 = vsub.s32 0, %v988
      %v990 = vsel %vm984, %v989, %v988
      %vm991 = vcmp.lt.s32.totalorder %v893, 0
      %v992 = vsub.s32 0, %v893
      %v993 = vsel %vm991, %v992, %v893
      %v994 = vshrl.u32 %v993, 4
      %v995 = vand.u32 %v993, 15
      %v996 = vsub.s32 0, %v995
      %v997 = vsel %vm991, %v996, %v995
      %vm998 = vcmp.lt.s32.totalorder %v894, 0
      %v999 = vsub.s32 0, %v894
      %v1000 = vsel %vm998, %v999, %v894
      %v1001 = vshrl.u32 %v1000, 4
      %v1002 = vand.u32 %v1000, 15
      %v1003 = vsub.s32 0, %v1002
      %v1004 = vsel %vm998, %v1003, %v1002
      %vm1005 = vcmp.lt.s32.totalorder %v895, 0
      %v1006 = vsub.s32 0, %v895
      %v1007 = vsel %vm1005, %v1006, %v895
      %v1008 = vshrl.u32 %v1007, 4
      %v1009 = vand.u32 %v1007, 15
      %v1010 = vsub.s32 0, %v1009
      %v1011 = vsel %vm1005, %v1010, %v1009
      %vm1012 = vcmp.lt.s32.totalorder %v896, 0
      %v1013 = vsub.s32 0, %v896
      %v1014 = vsel %vm1012, %v1013, %v896
      %v1015 = vshrl.u32 %v1014, 4
      %v1016 = vand.u32 %v1014, 15
      %v1017 = vsub.s32 0, %v1016
      %v1018 = vsel %vm1012, %v1017, %v1016
      %vm1019 = vcmp.lt.s32.totalorder %v897, 0
      %v1020 = vsub.s32 0, %v897
      %v1021 = vsel %vm1019, %v1020, %v897
      %v1022 = vshrl.u32 %v1021, 4
      %v1023 = vand.u32 %v1021, 15
      %v1024 = vsub.s32 0, %v1023
      %v1025 = vsel %vm1019, %v1024, %v1023
      %vm1026 = vcmp.lt.s32.totalorder %v898, 0
      %v1027 = vsub.s32 0, %v898
      %v1028 = vsel %vm1026, %v1027, %v898
      %v1029 = vshrl.u32 %v1028, 4
      %v1030 = vand.u32 %v1028, 15
      %v1031 = vsub.s32 0, %v1030
      %v1032 = vsel %vm1026, %v1031, %v1030
      %vm1033 = vcmp.lt.s32.totalorder %v899, 0
      %v1034 = vsub.s32 0, %v899
      %v1035 = vsel %vm1033, %v1034, %v899
      %v1036 = vshrl.u32 %v1035, 4
      %v1037 = vand.u32 %v1035, 15
      %v1038 = vsub.s32 0, %v1037
      %v1039 = vsel %vm1033, %v1038, %v1037
      %vm1040 = vcmp.lt.s32.totalorder %v900, 0
      %v1041 = vsub.s32 0, %v900
      %v1042 = vsel %vm1040, %v1041, %v900
      %v1043 = vshrl.u32 %v1042, 4
      %v1044 = vand.u32 %v1042, 15
      %v1045 = vsub.s32 0, %v1044
      %v1046 = vsel %vm1040, %v1045, %v1044
      %vm1047 = vcmp.lt.s32.totalorder %v901, 0
      %v1048 = vsub.s32 0, %v901
      %v1049 = vsel %vm1047, %v1048, %v901
      %v1050 = vshrl.u32 %v1049, 4
      %v1051 = vand.u32 %v1049, 15
      %v1052 = vsub.s32 0, %v1051
      %v1053 = vsel %vm1047, %v1052, %v1051
      %vm1054 = vcmp.lt.s32.totalorder %v902, 0
      %v1055 = vsub.s32 0, %v902
      %v1056 = vsel %vm1054, %v1055, %v902
      %v1057 = vshrl.u32 %v1056, 4
      %v1058 = vand.u32 %v1056, 15
      %v1059 = vsub.s32 0, %v1058
      %v1060 = vsel %vm1054, %v1059, %v1058
      %vm1061 = vcmp.lt.s32.totalorder %v903, 0
      %v1062 = vsub.s32 0, %v903
      %v1063 = vsel %vm1061, %v1062, %v903
      %v1064 = vshrl.u32 %v1063, 4
      %v1065 = vand.u32 %v1063, 15
      %v1066 = vsub.s32 0, %v1065
      %v1067 = vsel %vm1061, %v1066, %v1065
      %vm1068 = vcmp.lt.s32.totalorder %v904, 0
      %v1069 = vsub.s32 0, %v904
      %v1070 = vsel %vm1068, %v1069, %v904
      %v1071 = vshrl.u32 %v1070, 4
      %v1072 = vand.u32 %v1070, 15
      %v1073 = vsub.s32 0, %v1072
      %v1074 = vsel %vm1068, %v1073, %v1072
      %vm1075 = vcmp.lt.s32.totalorder %v905, 0
      %v1076 = vsub.s32 0, %v905
      %v1077 = vsel %vm1075, %v1076, %v905
      %v1078 = vshrl.u32 %v1077, 4
      %v1079 = vand.u32 %v1077, 15
      %v1080 = vsub.s32 0, %v1079
      %v1081 = vsel %vm1075, %v1080, %v1079
      %vm1082 = vcmp.lt.s32.totalorder %v906, 0
      %v1083 = vsub.s32 0, %v906
      %v1084 = vsel %vm1082, %v1083, %v906
      %v1085 = vshrl.u32 %v1084, 4
      %v1086 = vand.u32 %v1084, 15
      %v1087 = vsub.s32 0, %v1086
      %v1088 = vsel %vm1082, %v1087, %v1086
      %vm1089 = vcmp.lt.s32.totalorder %v907, 0
      %v1090 = vsub.s32 0, %v907
      %v1091 = vsel %vm1089, %v1090, %v907
      %v1092 = vshrl.u32 %v1091, 4
      %v1093 = vand.u32 %v1091, 15
      %v1094 = vsub.s32 0, %v1093
      %v1095 = vsel %vm1089, %v1094, %v1093
      %vm1096 = vcmp.lt.s32.totalorder %v908, 0
      %v1097 = vsub.s32 0, %v908
      %v1098 = vsel %vm1096, %v1097, %v908
      %v1099 = vshrl.u32 %v1098, 4
      %v1100 = vand.u32 %v1098, 15
      %v1101 = vsub.s32 0, %v1100
      %v1102 = vsel %vm1096, %v1101, %v1100
      %vm1103 = vcmp.lt.s32.totalorder %v909, 0
      %v1104 = vsub.s32 0, %v909
      %v1105 = vsel %vm1103, %v1104, %v909
      %v1106 = vshrl.u32 %v1105, 4
      %v1107 = vand.u32 %v1105, 15
      %v1108 = vsub.s32 0, %v1107
      %v1109 = vsel %vm1103, %v1108, %v1107
      %vm1110 = vcmp.lt.s32.totalorder %v910, 0
      %v1111 = vsub.s32 0, %v910
      %v1112 = vsel %vm1110, %v1111, %v910
      %v1113 = vshrl.u32 %v1112, 4
      %v1114 = vand.u32 %v1112, 15
      %v1115 = vsub.s32 0, %v1114
      %v1116 = vsel %vm1110, %v1115, %v1114
      %vm1117 = vcmp.lt.s32.totalorder %v911, 0
      %v1118 = vsub.s32 0, %v911
      %v1119 = vsel %vm1117, %v1118, %v911
      %v1120 = vshrl.u32 %v1119, 4
      %v1121 = vand.u32 %v1119, 15
      %v1122 = vsub.s32 0, %v1121
      %v1123 = vsel %vm1117, %v1122, %v1121
      %vm1124 = vcmp.lt.s32.totalorder %v912, 0
      %v1125 = vsub.s32 0, %v912
      %v1126 = vsel %vm1124, %v1125, %v912
      %v1127 = vshrl.u32 %v1126, 4
      %v1128 = vand.u32 %v1126, 15
      %v1129 = vsub.s32 0, %v1128
      %v1130 = vsel %vm1124, %v1129, %v1128
      %vm1131 = vcmp.lt.s32.totalorder %v913, 0
      %v1132 = vsub.s32 0, %v913
      %v1133 = vsel %vm1131, %v1132, %v913
      %v1134 = vshrl.u32 %v1133, 4
      %v1135 = vand.u32 %v1133, 15
      %v1136 = vsub.s32 0, %v1135
      %v1137 = vsel %vm1131, %v1136, %v1135
      %vm1138 = vcmp.ne.s32.totalorder %v920, 0
      %vm1139 = vcmp.ne.s32.totalorder %v927, 0
      %vm1140 = vcmp.ne.s32.totalorder %v934, 0
      %vm1141 = vcmp.ne.s32.totalorder %v941, 0
      %vm1142 = vcmp.ne.s32.totalorder %v948, 0
      %vm1143 = vcmp.ne.s32.totalorder %v955, 0
      %vm1144 = vcmp.ne.s32.totalorder %v962, 0
      %vm1145 = vcmp.ne.s32.totalorder %v969, 0
      %vm1146 = vcmp.ne.s32.totalorder %v976, 0
      %vm1147 = vcmp.ne.s32.totalorder %v983, 0
      %vm1148 = vcmp.ne.s32.totalorder %v990, 0
      %vm1149 = vcmp.ne.s32.totalorder %v997, 0
      %vm1150 = vcmp.ne.s32.totalorder %v1004, 0
      %vm1151 = vcmp.ne.s32.totalorder %v1011, 0
      %vm1152 = vcmp.ne.s32.totalorder %v1018, 0
      %vm1153 = vcmp.ne.s32.totalorder %v1025, 0
      %vm1154 = vcmp.ne.s32.totalorder %v1032, 0
      %vm1155 = vcmp.ne.s32.totalorder %v1039, 0
      %vm1156 = vcmp.ne.s32.totalorder %v1046, 0
      %vm1157 = vcmp.ne.s32.totalorder %v1053, 0
      %vm1158 = vcmp.ne.s32.totalorder %v1060, 0
      %vm1159 = vcmp.ne.s32.totalorder %v1067, 0
      %vm1160 = vcmp.ne.s32.totalorder %v1074, 0
      %vm1161 = vcmp.ne.s32.totalorder %v1081, 0
      %vm1162 = vcmp.ne.s32.totalorder %v1088, 0
      %vm1163 = vcmp.ne.s32.totalorder %v1095, 0
      %vm1164 = vcmp.ne.s32.totalorder %v1102, 0
      %vm1165 = vcmp.ne.s32.totalorder %v1109, 0
      %vm1166 = vcmp.ne.s32.totalorder %v1116, 0
      %vm1167 = vcmp.ne.s32.totalorder %v1123, 0
      %vm1168 = vcmp.ne.s32.totalorder %v1130, 0
      %vm1169 = vcmp.ne.s32.totalorder %v1137, 0
      %vm1170 = vcmp.lt.s32.totalorder %v920, 0
      %vm1171 = vcmp.lt.s32.totalorder %v927, 0
      %vm1172 = vcmp.lt.s32.totalorder %v934, 0
      %vm1173 = vcmp.lt.s32.totalorder %v941, 0
      %vm1174 = vcmp.lt.s32.totalorder %v948, 0
      %vm1175 = vcmp.lt.s32.totalorder %v955, 0
      %vm1176 = vcmp.lt.s32.totalorder %v962, 0
      %vm1177 = vcmp.lt.s32.totalorder %v969, 0
      %vm1178 = vcmp.lt.s32.totalorder %v976, 0
      %vm1179 = vcmp.lt.s32.totalorder %v983, 0
      %vm1180 = vcmp.lt.s32.totalorder %v990, 0
      %vm1181 = vcmp.lt.s32.totalorder %v997, 0
      %vm1182 = vcmp.lt.s32.totalorder %v1004, 0
      %vm1183 = vcmp.lt.s32.totalorder %v1011, 0
      %vm1184 = vcmp.lt.s32.totalorder %v1018, 0
      %vm1185 = vcmp.lt.s32.totalorder %v1025, 0
      %vm1186 = vcmp.lt.s32.totalorder %v1032, 0
      %vm1187 = vcmp.lt.s32.totalorder %v1039, 0
      %vm1188 = vcmp.lt.s32.totalorder %v1046, 0
      %vm1189 = vcmp.lt.s32.totalorder %v1053, 0
      %vm1190 = vcmp.lt.s32.totalorder %v1060, 0
      %vm1191 = vcmp.lt.s32.totalorder %v1067, 0
      %vm1192 = vcmp.lt.s32.totalorder %v1074, 0
      %vm1193 = vcmp.lt.s32.totalorder %v1081, 0
      %vm1194 = vcmp.lt.s32.totalorder %v1088, 0
      %vm1195 = vcmp.lt.s32.totalorder %v1095, 0
      %vm1196 = vcmp.lt.s32.totalorder %v1102, 0
      %vm1197 = vcmp.lt.s32.totalorder %v1109, 0
      %vm1198 = vcmp.lt.s32.totalorder %v1116, 0
      %vm1199 = vcmp.lt.s32.totalorder %v1123, 0
      %vm1200 = vcmp.lt.s32.totalorder %v1130, 0
      %vm1201 = vcmp.lt.s32.totalorder %v1137, 0
      %vm1202 = vmand %vm1170, %vm1138
      %vm1203 = vmand %vm1171, %vm1139
      %vm1204 = vmand %vm1172, %vm1140
      %vm1205 = vmand %vm1173, %vm1141
      %vm1206 = vmand %vm1174, %vm1142
      %vm1207 = vmand %vm1175, %vm1143
      %vm1208 = vmand %vm1176, %vm1144
      %vm1209 = vmand %vm1177, %vm1145
      %vm1210 = vmand %vm1178, %vm1146
      %vm1211 = vmand %vm1179, %vm1147
      %vm1212 = vmand %vm1180, %vm1148
      %vm1213 = vmand %vm1181, %vm1149
      %vm1214 = vmand %vm1182, %vm1150
      %vm1215 = vmand %vm1183, %vm1151
      %vm1216 = vmand %vm1184, %vm1152
      %vm1217 = vmand %vm1185, %vm1153
      %vm1218 = vmand %vm1186, %vm1154
      %vm1219 = vmand %vm1187, %vm1155
      %vm1220 = vmand %vm1188, %vm1156
      %vm1221 = vmand %vm1189, %vm1157
      %vm1222 = vmand %vm1190, %vm1158
      %vm1223 = vmand %vm1191, %vm1159
      %vm1224 = vmand %vm1192, %vm1160
      %vm1225 = vmand %vm1193, %vm1161
      %vm1226 = vmand %vm1194, %vm1162
      %vm1227 = vmand %vm1195, %vm1163
      %vm1228 = vmand %vm1196, %vm1164
      %vm1229 = vmand %vm1197, %vm1165
      %vm1230 = vmand %vm1198, %vm1166
      %vm1231 = vmand %vm1199, %vm1167
      %vm1232 = vmand %vm1200, %vm1168
      %vm1233 = vmand %vm1201, %vm1169
      %v1234 = vadd.s32 %v920, 16
      %v1235 = vadd.s32 %v927, 16
      %v1236 = vadd.s32 %v934, 16
      %v1237 = vadd.s32 %v941, 16
      %v1238 = vadd.s32 %v948, 16
      %v1239 = vadd.s32 %v955, 16
      %v1240 = vadd.s32 %v962, 16
      %v1241 = vadd.s32 %v969, 16
      %v1242 = vadd.s32 %v976, 16
      %v1243 = vadd.s32 %v983, 16
      %v1244 = vadd.s32 %v990, 16
      %v1245 = vadd.s32 %v997, 16
      %v1246 = vadd.s32 %v1004, 16
      %v1247 = vadd.s32 %v1011, 16
      %v1248 = vadd.s32 %v1018, 16
      %v1249 = vadd.s32 %v1025, 16
      %v1250 = vadd.s32 %v1032, 16
      %v1251 = vadd.s32 %v1039, 16
      %v1252 = vadd.s32 %v1046, 16
      %v1253 = vadd.s32 %v1053, 16
      %v1254 = vadd.s32 %v1060, 16
      %v1255 = vadd.s32 %v1067, 16
      %v1256 = vadd.s32 %v1074, 16
      %v1257 = vadd.s32 %v1081, 16
      %v1258 = vadd.s32 %v1088, 16
      %v1259 = vadd.s32 %v1095, 16
      %v1260 = vadd.s32 %v1102, 16
      %v1261 = vadd.s32 %v1109, 16
      %v1262 = vadd.s32 %v1116, 16
      %v1263 = vadd.s32 %v1123, 16
      %v1264 = vadd.s32 %v1130, 16
      %v1265 = vadd.s32 %v1137, 16
      %v1266 = vsel %vm1202, %v1234, %v920
      %v1267 = vsel %vm1203, %v1235, %v927
      %v1268 = vsel %vm1204, %v1236, %v934
      %v1269 = vsel %vm1205, %v1237, %v941
      %v1270 = vsel %vm1206, %v1238, %v948
      %v1271 = vsel %vm1207, %v1239, %v955
      %v1272 = vsel %vm1208, %v1240, %v962
      %v1273 = vsel %vm1209, %v1241, %v969
      %v1274 = vsel %vm1210, %v1242, %v976
      %v1275 = vsel %vm1211, %v1243, %v983
      %v1276 = vsel %vm1212, %v1244, %v990
      %v1277 = vsel %vm1213, %v1245, %v997
      %v1278 = vsel %vm1214, %v1246, %v1004
      %v1279 = vsel %vm1215, %v1247, %v1011
      %v1280 = vsel %vm1216, %v1248, %v1018
      %v1281 = vsel %vm1217, %v1249, %v1025
      %v1282 = vsel %vm1218, %v1250, %v1032
      %v1283 = vsel %vm1219, %v1251, %v1039
      %v1284 = vsel %vm1220, %v1252, %v1046
      %v1285 = vsel %vm1221, %v1253, %v1053
      %v1286 = vsel %vm1222, %v1254, %v1060
      %v1287 = vsel %vm1223, %v1255, %v1067
      %v1288 = vsel %vm1224, %v1256, %v1074
      %v1289 = vsel %vm1225, %v1257, %v1081
      %v1290 = vsel %vm1226, %v1258, %v1088
      %v1291 = vsel %vm1227, %v1259, %v1095
      %v1292 = vsel %vm1228, %v1260, %v1102
      %v1293 = vsel %vm1229, %v1261, %v1109
      %v1294 = vsel %vm1230, %v1262, %v1116
      %v1295 = vsel %vm1231, %v1263, %v1123
      %v1296 = vsel %vm1232, %v1264, %v1130
      %v1297 = vsel %vm1233, %v1265, %v1137
      %v1298 = vadd.s32 %v1266, 4294967295
      %v1299 = vadd.s32 %v1267, 4294967295
      %v1300 = vadd.s32 %v1268, 4294967295
      %v1301 = vadd.s32 %v1269, 4294967295
      %v1302 = vadd.s32 %v1270, 4294967295
      %v1303 = vadd.s32 %v1271, 4294967295
      %v1304 = vadd.s32 %v1272, 4294967295
      %v1305 = vadd.s32 %v1273, 4294967295
      %v1306 = vadd.s32 %v1274, 4294967295
      %v1307 = vadd.s32 %v1275, 4294967295
      %v1308 = vadd.s32 %v1276, 4294967295
      %v1309 = vadd.s32 %v1277, 4294967295
      %v1310 = vadd.s32 %v1278, 4294967295
      %v1311 = vadd.s32 %v1279, 4294967295
      %v1312 = vadd.s32 %v1280, 4294967295
      %v1313 = vadd.s32 %v1281, 4294967295
      %v1314 = vadd.s32 %v1282, 4294967295
      %v1315 = vadd.s32 %v1283, 4294967295
      %v1316 = vadd.s32 %v1284, 4294967295
      %v1317 = vadd.s32 %v1285, 4294967295
      %v1318 = vadd.s32 %v1286, 4294967295
      %v1319 = vadd.s32 %v1287, 4294967295
      %v1320 = vadd.s32 %v1288, 4294967295
      %v1321 = vadd.s32 %v1289, 4294967295
      %v1322 = vadd.s32 %v1290, 4294967295
      %v1323 = vadd.s32 %v1291, 4294967295
      %v1324 = vadd.s32 %v1292, 4294967295
      %v1325 = vadd.s32 %v1293, 4294967295
      %v1326 = vadd.s32 %v1294, 4294967295
      %v1327 = vadd.s32 %v1295, 4294967295
      %v1328 = vadd.s32 %v1296, 4294967295
      %v1329 = vadd.s32 %v1297, 4294967295
      %vm1330 = vcmp.ge.s32.totalorder %v1298, 0
      %vm1331 = vcmp.ge.s32.totalorder %v1299, 0
      %vm1332 = vcmp.ge.s32.totalorder %v1300, 0
      %vm1333 = vcmp.ge.s32.totalorder %v1301, 0
      %vm1334 = vcmp.ge.s32.totalorder %v1302, 0
      %vm1335 = vcmp.ge.s32.totalorder %v1303, 0
      %vm1336 = vcmp.ge.s32.totalorder %v1304, 0
      %vm1337 = vcmp.ge.s32.totalorder %v1305, 0
      %vm1338 = vcmp.ge.s32.totalorder %v1306, 0
      %vm1339 = vcmp.ge.s32.totalorder %v1307, 0
      %vm1340 = vcmp.ge.s32.totalorder %v1308, 0
      %vm1341 = vcmp.ge.s32.totalorder %v1309, 0
      %vm1342 = vcmp.ge.s32.totalorder %v1310, 0
      %vm1343 = vcmp.ge.s32.totalorder %v1311, 0
      %vm1344 = vcmp.ge.s32.totalorder %v1312, 0
      %vm1345 = vcmp.ge.s32.totalorder %v1313, 0
      %vm1346 = vcmp.ge.s32.totalorder %v1314, 0
      %vm1347 = vcmp.ge.s32.totalorder %v1315, 0
      %vm1348 = vcmp.ge.s32.totalorder %v1316, 0
      %vm1349 = vcmp.ge.s32.totalorder %v1317, 0
      %vm1350 = vcmp.ge.s32.totalorder %v1318, 0
      %vm1351 = vcmp.ge.s32.totalorder %v1319, 0
      %vm1352 = vcmp.ge.s32.totalorder %v1320, 0
      %vm1353 = vcmp.ge.s32.totalorder %v1321, 0
      %vm1354 = vcmp.ge.s32.totalorder %v1322, 0
      %vm1355 = vcmp.ge.s32.totalorder %v1323, 0
      %vm1356 = vcmp.ge.s32.totalorder %v1324, 0
      %vm1357 = vcmp.ge.s32.totalorder %v1325, 0
      %vm1358 = vcmp.ge.s32.totalorder %v1326, 0
      %vm1359 = vcmp.ge.s32.totalorder %v1327, 0
      %vm1360 = vcmp.ge.s32.totalorder %v1328, 0
      %vm1361 = vcmp.ge.s32.totalorder %v1329, 0
      %vm1362 = vcmp.lt.s32.totalorder %v1298, 16
      %vm1363 = vcmp.lt.s32.totalorder %v1299, 16
      %vm1364 = vcmp.lt.s32.totalorder %v1300, 16
      %vm1365 = vcmp.lt.s32.totalorder %v1301, 16
      %vm1366 = vcmp.lt.s32.totalorder %v1302, 16
      %vm1367 = vcmp.lt.s32.totalorder %v1303, 16
      %vm1368 = vcmp.lt.s32.totalorder %v1304, 16
      %vm1369 = vcmp.lt.s32.totalorder %v1305, 16
      %vm1370 = vcmp.lt.s32.totalorder %v1306, 16
      %vm1371 = vcmp.lt.s32.totalorder %v1307, 16
      %vm1372 = vcmp.lt.s32.totalorder %v1308, 16
      %vm1373 = vcmp.lt.s32.totalorder %v1309, 16
      %vm1374 = vcmp.lt.s32.totalorder %v1310, 16
      %vm1375 = vcmp.lt.s32.totalorder %v1311, 16
      %vm1376 = vcmp.lt.s32.totalorder %v1312, 16
      %vm1377 = vcmp.lt.s32.totalorder %v1313, 16
      %vm1378 = vcmp.lt.s32.totalorder %v1314, 16
      %vm1379 = vcmp.lt.s32.totalorder %v1315, 16
      %vm1380 = vcmp.lt.s32.totalorder %v1316, 16
      %vm1381 = vcmp.lt.s32.totalorder %v1317, 16
      %vm1382 = vcmp.lt.s32.totalorder %v1318, 16
      %vm1383 = vcmp.lt.s32.totalorder %v1319, 16
      %vm1384 = vcmp.lt.s32.totalorder %v1320, 16
      %vm1385 = vcmp.lt.s32.totalorder %v1321, 16
      %vm1386 = vcmp.lt.s32.totalorder %v1322, 16
      %vm1387 = vcmp.lt.s32.totalorder %v1323, 16
      %vm1388 = vcmp.lt.s32.totalorder %v1324, 16
      %vm1389 = vcmp.lt.s32.totalorder %v1325, 16
      %vm1390 = vcmp.lt.s32.totalorder %v1326, 16
      %vm1391 = vcmp.lt.s32.totalorder %v1327, 16
      %vm1392 = vcmp.lt.s32.totalorder %v1328, 16
      %vm1393 = vcmp.lt.s32.totalorder %v1329, 16
      %vm1394 = vmand %vm1330, %vm1362
      %vm1395 = vmand %vm1331, %vm1363
      %vm1396 = vmand %vm1332, %vm1364
      %vm1397 = vmand %vm1333, %vm1365
      %vm1398 = vmand %vm1334, %vm1366
      %vm1399 = vmand %vm1335, %vm1367
      %vm1400 = vmand %vm1336, %vm1368
      %vm1401 = vmand %vm1337, %vm1369
      %vm1402 = vmand %vm1338, %vm1370
      %vm1403 = vmand %vm1339, %vm1371
      %vm1404 = vmand %vm1340, %vm1372
      %vm1405 = vmand %vm1341, %vm1373
      %vm1406 = vmand %vm1342, %vm1374
      %vm1407 = vmand %vm1343, %vm1375
      %vm1408 = vmand %vm1344, %vm1376
      %vm1409 = vmand %vm1345, %vm1377
      %vm1410 = vmand %vm1346, %vm1378
      %vm1411 = vmand %vm1347, %vm1379
      %vm1412 = vmand %vm1348, %vm1380
      %vm1413 = vmand %vm1349, %vm1381
      %vm1414 = vmand %vm1350, %vm1382
      %vm1415 = vmand %vm1351, %vm1383
      %vm1416 = vmand %vm1352, %vm1384
      %vm1417 = vmand %vm1353, %vm1385
      %vm1418 = vmand %vm1354, %vm1386
      %vm1419 = vmand %vm1355, %vm1387
      %vm1420 = vmand %vm1356, %vm1388
      %vm1421 = vmand %vm1357, %vm1389
      %vm1422 = vmand %vm1358, %vm1390
      %vm1423 = vmand %vm1359, %vm1391
      %vm1424 = vmand %vm1360, %vm1392
      %vm1425 = vmand %vm1361, %vm1393
      %v1426 = vsel %vm1394, 1, 0
      %v1427 = vsel %vm1395, 1, 0
      %v1428 = vsel %vm1396, 1, 0
      %v1429 = vsel %vm1397, 1, 0
      %v1430 = vsel %vm1398, 1, 0
      %v1431 = vsel %vm1399, 1, 0
      %v1432 = vsel %vm1400, 1, 0
      %v1433 = vsel %vm1401, 1, 0
      %v1434 = vsel %vm1402, 1, 0
      %v1435 = vsel %vm1403, 1, 0
      %v1436 = vsel %vm1404, 1, 0
      %v1437 = vsel %vm1405, 1, 0
      %v1438 = vsel %vm1406, 1, 0
      %v1439 = vsel %vm1407, 1, 0
      %v1440 = vsel %vm1408, 1, 0
      %v1441 = vsel %vm1409, 1, 0
      %v1442 = vsel %vm1410, 1, 0
      %v1443 = vsel %vm1411, 1, 0
      %v1444 = vsel %vm1412, 1, 0
      %v1445 = vsel %vm1413, 1, 0
      %v1446 = vsel %vm1414, 1, 0
      %v1447 = vsel %vm1415, 1, 0
      %v1448 = vsel %vm1416, 1, 0
      %v1449 = vsel %vm1417, 1, 0
      %v1450 = vsel %vm1418, 1, 0
      %v1451 = vsel %vm1419, 1, 0
      %v1452 = vsel %vm1420, 1, 0
      %v1453 = vsel %vm1421, 1, 0
      %v1454 = vsel %vm1422, 1, 0
      %v1455 = vsel %vm1423, 1, 0
      %v1456 = vsel %vm1424, 1, 0
      %v1457 = vsel %vm1425, 1, 0
      %v1458 = vcvt.s32.f32 %v1426
      %v1459 = vcvt.s32.f32 %v1427
      %v1460 = vcvt.s32.f32 %v1428
      %v1461 = vcvt.s32.f32 %v1429
      %v1462 = vcvt.s32.f32 %v1430
      %v1463 = vcvt.s32.f32 %v1431
      %v1464 = vcvt.s32.f32 %v1432
      %v1465 = vcvt.s32.f32 %v1433
      %v1466 = vcvt.s32.f32 %v1434
      %v1467 = vcvt.s32.f32 %v1435
      %v1468 = vcvt.s32.f32 %v1436
      %v1469 = vcvt.s32.f32 %v1437
      %v1470 = vcvt.s32.f32 %v1438
      %v1471 = vcvt.s32.f32 %v1439
      %v1472 = vcvt.s32.f32 %v1440
      %v1473 = vcvt.s32.f32 %v1441
      %v1474 = vcvt.s32.f32 %v1442
      %v1475 = vcvt.s32.f32 %v1443
      %v1476 = vcvt.s32.f32 %v1444
      %v1477 = vcvt.s32.f32 %v1445
      %v1478 = vcvt.s32.f32 %v1446
      %v1479 = vcvt.s32.f32 %v1447
      %v1480 = vcvt.s32.f32 %v1448
      %v1481 = vcvt.s32.f32 %v1449
      %v1482 = vcvt.s32.f32 %v1450
      %v1483 = vcvt.s32.f32 %v1451
      %v1484 = vcvt.s32.f32 %v1452
      %v1485 = vcvt.s32.f32 %v1453
      %v1486 = vcvt.s32.f32 %v1454
      %v1487 = vcvt.s32.f32 %v1455
      %v1488 = vcvt.s32.f32 %v1456
      %v1489 = vcvt.s32.f32 %v1457
      %vm1490 = vcmp.ge.s32.totalorder %v1266, 0
      %vm1491 = vcmp.ge.s32.totalorder %v1267, 0
      %vm1492 = vcmp.ge.s32.totalorder %v1268, 0
      %vm1493 = vcmp.ge.s32.totalorder %v1269, 0
      %vm1494 = vcmp.ge.s32.totalorder %v1270, 0
      %vm1495 = vcmp.ge.s32.totalorder %v1271, 0
      %vm1496 = vcmp.ge.s32.totalorder %v1272, 0
      %vm1497 = vcmp.ge.s32.totalorder %v1273, 0
      %vm1498 = vcmp.ge.s32.totalorder %v1274, 0
      %vm1499 = vcmp.ge.s32.totalorder %v1275, 0
      %vm1500 = vcmp.ge.s32.totalorder %v1276, 0
      %vm1501 = vcmp.ge.s32.totalorder %v1277, 0
      %vm1502 = vcmp.ge.s32.totalorder %v1278, 0
      %vm1503 = vcmp.ge.s32.totalorder %v1279, 0
      %vm1504 = vcmp.ge.s32.totalorder %v1280, 0
      %vm1505 = vcmp.ge.s32.totalorder %v1281, 0
      %vm1506 = vcmp.ge.s32.totalorder %v1282, 0
      %vm1507 = vcmp.ge.s32.totalorder %v1283, 0
      %vm1508 = vcmp.ge.s32.totalorder %v1284, 0
      %vm1509 = vcmp.ge.s32.totalorder %v1285, 0
      %vm1510 = vcmp.ge.s32.totalorder %v1286, 0
      %vm1511 = vcmp.ge.s32.totalorder %v1287, 0
      %vm1512 = vcmp.ge.s32.totalorder %v1288, 0
      %vm1513 = vcmp.ge.s32.totalorder %v1289, 0
      %vm1514 = vcmp.ge.s32.totalorder %v1290, 0
      %vm1515 = vcmp.ge.s32.totalorder %v1291, 0
      %vm1516 = vcmp.ge.s32.totalorder %v1292, 0
      %vm1517 = vcmp.ge.s32.totalorder %v1293, 0
      %vm1518 = vcmp.ge.s32.totalorder %v1294, 0
      %vm1519 = vcmp.ge.s32.totalorder %v1295, 0
      %vm1520 = vcmp.ge.s32.totalorder %v1296, 0
      %vm1521 = vcmp.ge.s32.totalorder %v1297, 0
      %vm1522 = vcmp.lt.s32.totalorder %v1266, 16
      %vm1523 = vcmp.lt.s32.totalorder %v1267, 16
      %vm1524 = vcmp.lt.s32.totalorder %v1268, 16
      %vm1525 = vcmp.lt.s32.totalorder %v1269, 16
      %vm1526 = vcmp.lt.s32.totalorder %v1270, 16
      %vm1527 = vcmp.lt.s32.totalorder %v1271, 16
      %vm1528 = vcmp.lt.s32.totalorder %v1272, 16
      %vm1529 = vcmp.lt.s32.totalorder %v1273, 16
      %vm1530 = vcmp.lt.s32.totalorder %v1274, 16
      %vm1531 = vcmp.lt.s32.totalorder %v1275, 16
      %vm1532 = vcmp.lt.s32.totalorder %v1276, 16
      %vm1533 = vcmp.lt.s32.totalorder %v1277, 16
      %vm1534 = vcmp.lt.s32.totalorder %v1278, 16
      %vm1535 = vcmp.lt.s32.totalorder %v1279, 16
      %vm1536 = vcmp.lt.s32.totalorder %v1280, 16
      %vm1537 = vcmp.lt.s32.totalorder %v1281, 16
      %vm1538 = vcmp.lt.s32.totalorder %v1282, 16
      %vm1539 = vcmp.lt.s32.totalorder %v1283, 16
      %vm1540 = vcmp.lt.s32.totalorder %v1284, 16
      %vm1541 = vcmp.lt.s32.totalorder %v1285, 16
      %vm1542 = vcmp.lt.s32.totalorder %v1286, 16
      %vm1543 = vcmp.lt.s32.totalorder %v1287, 16
      %vm1544 = vcmp.lt.s32.totalorder %v1288, 16
      %vm1545 = vcmp.lt.s32.totalorder %v1289, 16
      %vm1546 = vcmp.lt.s32.totalorder %v1290, 16
      %vm1547 = vcmp.lt.s32.totalorder %v1291, 16
      %vm1548 = vcmp.lt.s32.totalorder %v1292, 16
      %vm1549 = vcmp.lt.s32.totalorder %v1293, 16
      %vm1550 = vcmp.lt.s32.totalorder %v1294, 16
      %vm1551 = vcmp.lt.s32.totalorder %v1295, 16
      %vm1552 = vcmp.lt.s32.totalorder %v1296, 16
      %vm1553 = vcmp.lt.s32.totalorder %v1297, 16
      %vm1554 = vmand %vm1490, %vm1522
      %vm1555 = vmand %vm1491, %vm1523
      %vm1556 = vmand %vm1492, %vm1524
      %vm1557 = vmand %vm1493, %vm1525
      %vm1558 = vmand %vm1494, %vm1526
      %vm1559 = vmand %vm1495, %vm1527
      %vm1560 = vmand %vm1496, %vm1528
      %vm1561 = vmand %vm1497, %vm1529
      %vm1562 = vmand %vm1498, %vm1530
      %vm1563 = vmand %vm1499, %vm1531
      %vm1564 = vmand %vm1500, %vm1532
      %vm1565 = vmand %vm1501, %vm1533
      %vm1566 = vmand %vm1502, %vm1534
      %vm1567 = vmand %vm1503, %vm1535
      %vm1568 = vmand %vm1504, %vm1536
      %vm1569 = vmand %vm1505, %vm1537
      %vm1570 = vmand %vm1506, %vm1538
      %vm1571 = vmand %vm1507, %vm1539
      %vm1572 = vmand %vm1508, %vm1540
      %vm1573 = vmand %vm1509, %vm1541
      %vm1574 = vmand %vm1510, %vm1542
      %vm1575 = vmand %vm1511, %vm1543
      %vm1576 = vmand %vm1512, %vm1544
      %vm1577 = vmand %vm1513, %vm1545
      %vm1578 = vmand %vm1514, %vm1546
      %vm1579 = vmand %vm1515, %vm1547
      %vm1580 = vmand %vm1516, %vm1548
      %vm1581 = vmand %vm1517, %vm1549
      %vm1582 = vmand %vm1518, %vm1550
      %vm1583 = vmand %vm1519, %vm1551
      %vm1584 = vmand %vm1520, %vm1552
      %vm1585 = vmand %vm1521, %vm1553
      %v1586 = vsel %vm1554, 1, 0
      %v1587 = vsel %vm1555, 1, 0
      %v1588 = vsel %vm1556, 1, 0
      %v1589 = vsel %vm1557, 1, 0
      %v1590 = vsel %vm1558, 1, 0
      %v1591 = vsel %vm1559, 1, 0
      %v1592 = vsel %vm1560, 1, 0
      %v1593 = vsel %vm1561, 1, 0
      %v1594 = vsel %vm1562, 1, 0
      %v1595 = vsel %vm1563, 1, 0
      %v1596 = vsel %vm1564, 1, 0
      %v1597 = vsel %vm1565, 1, 0
      %v1598 = vsel %vm1566, 1, 0
      %v1599 = vsel %vm1567, 1, 0
      %v1600 = vsel %vm1568, 1, 0
      %v1601 = vsel %vm1569, 1, 0
      %v1602 = vsel %vm1570, 1, 0
      %v1603 = vsel %vm1571, 1, 0
      %v1604 = vsel %vm1572, 1, 0
      %v1605 = vsel %vm1573, 1, 0
      %v1606 = vsel %vm1574, 1, 0
      %v1607 = vsel %vm1575, 1, 0
      %v1608 = vsel %vm1576, 1, 0
      %v1609 = vsel %vm1577, 1, 0
      %v1610 = vsel %vm1578, 1, 0
      %v1611 = vsel %vm1579, 1, 0
      %v1612 = vsel %vm1580, 1, 0
      %v1613 = vsel %vm1581, 1, 0
      %v1614 = vsel %vm1582, 1, 0
      %v1615 = vsel %vm1583, 1, 0
      %v1616 = vsel %vm1584, 1, 0
      %v1617 = vsel %vm1585, 1, 0
      %v1618 = vcvt.s32.f32 %v1586
      %v1619 = vcvt.s32.f32 %v1587
      %v1620 = vcvt.s32.f32 %v1588
      %v1621 = vcvt.s32.f32 %v1589
      %v1622 = vcvt.s32.f32 %v1590
      %v1623 = vcvt.s32.f32 %v1591
      %v1624 = vcvt.s32.f32 %v1592
      %v1625 = vcvt.s32.f32 %v1593
      %v1626 = vcvt.s32.f32 %v1594
      %v1627 = vcvt.s32.f32 %v1595
      %v1628 = vcvt.s32.f32 %v1596
      %v1629 = vcvt.s32.f32 %v1597
      %v1630 = vcvt.s32.f32 %v1598
      %v1631 = vcvt.s32.f32 %v1599
      %v1632 = vcvt.s32.f32 %v1600
      %v1633 = vcvt.s32.f32 %v1601
      %v1634 = vcvt.s32.f32 %v1602
      %v1635 = vcvt.s32.f32 %v1603
      %v1636 = vcvt.s32.f32 %v1604
      %v1637 = vcvt.s32.f32 %v1605
      %v1638 = vcvt.s32.f32 %v1606
      %v1639 = vcvt.s32.f32 %v1607
      %v1640 = vcvt.s32.f32 %v1608
      %v1641 = vcvt.s32.f32 %v1609
      %v1642 = vcvt.s32.f32 %v1610
      %v1643 = vcvt.s32.f32 %v1611
      %v1644 = vcvt.s32.f32 %v1612
      %v1645 = vcvt.s32.f32 %v1613
      %v1646 = vcvt.s32.f32 %v1614
      %v1647 = vcvt.s32.f32 %v1615
      %v1648 = vcvt.s32.f32 %v1616
      %v1649 = vcvt.s32.f32 %v1617
      %v1650 = vadd.s32 %v1266, 1
      %v1651 = vadd.s32 %v1267, 1
      %v1652 = vadd.s32 %v1268, 1
      %v1653 = vadd.s32 %v1269, 1
      %v1654 = vadd.s32 %v1270, 1
      %v1655 = vadd.s32 %v1271, 1
      %v1656 = vadd.s32 %v1272, 1
      %v1657 = vadd.s32 %v1273, 1
      %v1658 = vadd.s32 %v1274, 1
      %v1659 = vadd.s32 %v1275, 1
      %v1660 = vadd.s32 %v1276, 1
      %v1661 = vadd.s32 %v1277, 1
      %v1662 = vadd.s32 %v1278, 1
      %v1663 = vadd.s32 %v1279, 1
      %v1664 = vadd.s32 %v1280, 1
      %v1665 = vadd.s32 %v1281, 1
      %v1666 = vadd.s32 %v1282, 1
      %v1667 = vadd.s32 %v1283, 1
      %v1668 = vadd.s32 %v1284, 1
      %v1669 = vadd.s32 %v1285, 1
      %v1670 = vadd.s32 %v1286, 1
      %v1671 = vadd.s32 %v1287, 1
      %v1672 = vadd.s32 %v1288, 1
      %v1673 = vadd.s32 %v1289, 1
      %v1674 = vadd.s32 %v1290, 1
      %v1675 = vadd.s32 %v1291, 1
      %v1676 = vadd.s32 %v1292, 1
      %v1677 = vadd.s32 %v1293, 1
      %v1678 = vadd.s32 %v1294, 1
      %v1679 = vadd.s32 %v1295, 1
      %v1680 = vadd.s32 %v1296, 1
      %v1681 = vadd.s32 %v1297, 1
      %vm1682 = vcmp.ge.s32.totalorder %v1650, 0
      %vm1683 = vcmp.ge.s32.totalorder %v1651, 0
      %vm1684 = vcmp.ge.s32.totalorder %v1652, 0
      %vm1685 = vcmp.ge.s32.totalorder %v1653, 0
      %vm1686 = vcmp.ge.s32.totalorder %v1654, 0
      %vm1687 = vcmp.ge.s32.totalorder %v1655, 0
      %vm1688 = vcmp.ge.s32.totalorder %v1656, 0
      %vm1689 = vcmp.ge.s32.totalorder %v1657, 0
      %vm1690 = vcmp.ge.s32.totalorder %v1658, 0
      %vm1691 = vcmp.ge.s32.totalorder %v1659, 0
      %vm1692 = vcmp.ge.s32.totalorder %v1660, 0
      %vm1693 = vcmp.ge.s32.totalorder %v1661, 0
      %vm1694 = vcmp.ge.s32.totalorder %v1662, 0
      %vm1695 = vcmp.ge.s32.totalorder %v1663, 0
      %vm1696 = vcmp.ge.s32.totalorder %v1664, 0
      %vm1697 = vcmp.ge.s32.totalorder %v1665, 0
      %vm1698 = vcmp.ge.s32.totalorder %v1666, 0
      %vm1699 = vcmp.ge.s32.totalorder %v1667, 0
      %vm1700 = vcmp.ge.s32.totalorder %v1668, 0
      %vm1701 = vcmp.ge.s32.totalorder %v1669, 0
      %vm1702 = vcmp.ge.s32.totalorder %v1670, 0
      %vm1703 = vcmp.ge.s32.totalorder %v1671, 0
      %vm1704 = vcmp.ge.s32.totalorder %v1672, 0
      %vm1705 = vcmp.ge.s32.totalorder %v1673, 0
      %vm1706 = vcmp.ge.s32.totalorder %v1674, 0
      %vm1707 = vcmp.ge.s32.totalorder %v1675, 0
      %vm1708 = vcmp.ge.s32.totalorder %v1676, 0
      %vm1709 = vcmp.ge.s32.totalorder %v1677, 0
      %vm1710 = vcmp.ge.s32.totalorder %v1678, 0
      %vm1711 = vcmp.ge.s32.totalorder %v1679, 0
      %vm1712 = vcmp.ge.s32.totalorder %v1680, 0
      %vm1713 = vcmp.ge.s32.totalorder %v1681, 0
      %vm1714 = vcmp.lt.s32.totalorder %v1650, 16
      %vm1715 = vcmp.lt.s32.totalorder %v1651, 16
      %vm1716 = vcmp.lt.s32.totalorder %v1652, 16
      %vm1717 = vcmp.lt.s32.totalorder %v1653, 16
      %vm1718 = vcmp.lt.s32.totalorder %v1654, 16
      %vm1719 = vcmp.lt.s32.totalorder %v1655, 16
      %vm1720 = vcmp.lt.s32.totalorder %v1656, 16
      %vm1721 = vcmp.lt.s32.totalorder %v1657, 16
      %vm1722 = vcmp.lt.s32.totalorder %v1658, 16
      %vm1723 = vcmp.lt.s32.totalorder %v1659, 16
      %vm1724 = vcmp.lt.s32.totalorder %v1660, 16
      %vm1725 = vcmp.lt.s32.totalorder %v1661, 16
      %vm1726 = vcmp.lt.s32.totalorder %v1662, 16
      %vm1727 = vcmp.lt.s32.totalorder %v1663, 16
      %vm1728 = vcmp.lt.s32.totalorder %v1664, 16
      %vm1729 = vcmp.lt.s32.totalorder %v1665, 16
      %vm1730 = vcmp.lt.s32.totalorder %v1666, 16
      %vm1731 = vcmp.lt.s32.totalorder %v1667, 16
      %vm1732 = vcmp.lt.s32.totalorder %v1668, 16
      %vm1733 = vcmp.lt.s32.totalorder %v1669, 16
      %vm1734 = vcmp.lt.s32.totalorder %v1670, 16
      %vm1735 = vcmp.lt.s32.totalorder %v1671, 16
      %vm1736 = vcmp.lt.s32.totalorder %v1672, 16
      %vm1737 = vcmp.lt.s32.totalorder %v1673, 16
      %vm1738 = vcmp.lt.s32.totalorder %v1674, 16
      %vm1739 = vcmp.lt.s32.totalorder %v1675, 16
      %vm1740 = vcmp.lt.s32.totalorder %v1676, 16
      %vm1741 = vcmp.lt.s32.totalorder %v1677, 16
      %vm1742 = vcmp.lt.s32.totalorder %v1678, 16
      %vm1743 = vcmp.lt.s32.totalorder %v1679, 16
      %vm1744 = vcmp.lt.s32.totalorder %v1680, 16
      %vm1745 = vcmp.lt.s32.totalorder %v1681, 16
      %vm1746 = vmand %vm1682, %vm1714
      %vm1747 = vmand %vm1683, %vm1715
      %vm1748 = vmand %vm1684, %vm1716
      %vm1749 = vmand %vm1685, %vm1717
      %vm1750 = vmand %vm1686, %vm1718
      %vm1751 = vmand %vm1687, %vm1719
      %vm1752 = vmand %vm1688, %vm1720
      %vm1753 = vmand %vm1689, %vm1721
      %vm1754 = vmand %vm1690, %vm1722
      %vm1755 = vmand %vm1691, %vm1723
      %vm1756 = vmand %vm1692, %vm1724
      %vm1757 = vmand %vm1693, %vm1725
      %vm1758 = vmand %vm1694, %vm1726
      %vm1759 = vmand %vm1695, %vm1727
      %vm1760 = vmand %vm1696, %vm1728
      %vm1761 = vmand %vm1697, %vm1729
      %vm1762 = vmand %vm1698, %vm1730
      %vm1763 = vmand %vm1699, %vm1731
      %vm1764 = vmand %vm1700, %vm1732
      %vm1765 = vmand %vm1701, %vm1733
      %vm1766 = vmand %vm1702, %vm1734
      %vm1767 = vmand %vm1703, %vm1735
      %vm1768 = vmand %vm1704, %vm1736
      %vm1769 = vmand %vm1705, %vm1737
      %vm1770 = vmand %vm1706, %vm1738
      %vm1771 = vmand %vm1707, %vm1739
      %vm1772 = vmand %vm1708, %vm1740
      %vm1773 = vmand %vm1709, %vm1741
      %vm1774 = vmand %vm1710, %vm1742
      %vm1775 = vmand %vm1711, %vm1743
      %vm1776 = vmand %vm1712, %vm1744
      %vm1777 = vmand %vm1713, %vm1745
      %v1778 = vsel %vm1746, 1, 0
      %v1779 = vsel %vm1747, 1, 0
      %v1780 = vsel %vm1748, 1, 0
      %v1781 = vsel %vm1749, 1, 0
      %v1782 = vsel %vm1750, 1, 0
      %v1783 = vsel %vm1751, 1, 0
      %v1784 = vsel %vm1752, 1, 0
      %v1785 = vsel %vm1753, 1, 0
      %v1786 = vsel %vm1754, 1, 0
      %v1787 = vsel %vm1755, 1, 0
      %v1788 = vsel %vm1756, 1, 0
      %v1789 = vsel %vm1757, 1, 0
      %v1790 = vsel %vm1758, 1, 0
      %v1791 = vsel %vm1759, 1, 0
      %v1792 = vsel %vm1760, 1, 0
      %v1793 = vsel %vm1761, 1, 0
      %v1794 = vsel %vm1762, 1, 0
      %v1795 = vsel %vm1763, 1, 0
      %v1796 = vsel %vm1764, 1, 0
      %v1797 = vsel %vm1765, 1, 0
      %v1798 = vsel %vm1766, 1, 0
      %v1799 = vsel %vm1767, 1, 0
      %v1800 = vsel %vm1768, 1, 0
      %v1801 = vsel %vm1769, 1, 0
      %v1802 = vsel %vm1770, 1, 0
      %v1803 = vsel %vm1771, 1, 0
      %v1804 = vsel %vm1772, 1, 0
      %v1805 = vsel %vm1773, 1, 0
      %v1806 = vsel %vm1774, 1, 0
      %v1807 = vsel %vm1775, 1, 0
      %v1808 = vsel %vm1776, 1, 0
      %v1809 = vsel %vm1777, 1, 0
      %v1810 = vcvt.s32.f32 %v1778
      %v1811 = vcvt.s32.f32 %v1779
      %v1812 = vcvt.s32.f32 %v1780
      %v1813 = vcvt.s32.f32 %v1781
      %v1814 = vcvt.s32.f32 %v1782
      %v1815 = vcvt.s32.f32 %v1783
      %v1816 = vcvt.s32.f32 %v1784
      %v1817 = vcvt.s32.f32 %v1785
      %v1818 = vcvt.s32.f32 %v1786
      %v1819 = vcvt.s32.f32 %v1787
      %v1820 = vcvt.s32.f32 %v1788
      %v1821 = vcvt.s32.f32 %v1789
      %v1822 = vcvt.s32.f32 %v1790
      %v1823 = vcvt.s32.f32 %v1791
      %v1824 = vcvt.s32.f32 %v1792
      %v1825 = vcvt.s32.f32 %v1793
      %v1826 = vcvt.s32.f32 %v1794
      %v1827 = vcvt.s32.f32 %v1795
      %v1828 = vcvt.s32.f32 %v1796
      %v1829 = vcvt.s32.f32 %v1797
      %v1830 = vcvt.s32.f32 %v1798
      %v1831 = vcvt.s32.f32 %v1799
      %v1832 = vcvt.s32.f32 %v1800
      %v1833 = vcvt.s32.f32 %v1801
      %v1834 = vcvt.s32.f32 %v1802
      %v1835 = vcvt.s32.f32 %v1803
      %v1836 = vcvt.s32.f32 %v1804
      %v1837 = vcvt.s32.f32 %v1805
      %v1838 = vcvt.s32.f32 %v1806
      %v1839 = vcvt.s32.f32 %v1807
      %v1840 = vcvt.s32.f32 %v1808
      %v1841 = vcvt.s32.f32 %v1809
      %vm1872 = vcmask 1040384
      %v1873 = vrot.slane %v849, 7
      %v1874 = vrot.slane %v850, 7
      %v1875 = vsel %vm1872, %v1873, %v1874
      %v1876 = vrot.slane %v851, 7
      %v1877 = vsel %vm1872, %v1874, %v1876
      %v1878 = vrot.slane %v852, 7
      %v1879 = vsel %vm1872, %v1876, %v1878
      %v1880 = vrot.slane %v853, 7
      %v1881 = vsel %vm1872, %v1878, %v1880
      %v1882 = vrot.slane %v854, 7
      %v1883 = vsel %vm1872, %v1880, %v1882
      %v1884 = vrot.slane %v855, 7
      %v1885 = vsel %vm1872, %v1882, %v1884
      %v1886 = vrot.slane %v856, 7
      %v1887 = vsel %vm1872, %v1884, %v1886
      %v1888 = vrot.slane %v857, 7
      %v1889 = vsel %vm1872, %v1886, %v1888
      %v1890 = vrot.slane %v858, 7
      %v1891 = vsel %vm1872, %v1888, %v1890
      %v1892 = vrot.slane %v859, 7
      %v1893 = vsel %vm1872, %v1890, %v1892
      %v1894 = vrot.slane %v860, 7
      %v1895 = vsel %vm1872, %v1892, %v1894
      %v1896 = vrot.slane %v861, 7
      %v1897 = vsel %vm1872, %v1894, %v1896
      %v1898 = vrot.slane %v862, 7
      %v1899 = vsel %vm1872, %v1896, %v1898
      %v1900 = vrot.slane %v863, 7
      %v1901 = vsel %vm1872, %v1898, %v1900
      %v1902 = vrot.slane %v864, 7
      %v1903 = vsel %vm1872, %v1900, %v1902
      %v1904 = vrot.slane %v865, 7
      %v1905 = vsel %vm1872, %v1902, %v1904
      %v1906 = vrot.slane %v866, 7
      %v1907 = vsel %vm1872, %v1904, %v1906
      %v1908 = vrot.slane %v867, 7
      %v1909 = vsel %vm1872, %v1906, %v1908
      %v1910 = vrot.slane %v868, 7
      %v1911 = vsel %vm1872, %v1908, %v1910
      %v1912 = vrot.slane %v869, 7
      %v1913 = vsel %vm1872, %v1910, %v1912
      %v1914 = vrot.slane %v870, 7
      %v1915 = vsel %vm1872, %v1912, %v1914
      %v1916 = vrot.slane %v871, 7
      %v1917 = vsel %vm1872, %v1914, %v1916
      %v1918 = vrot.slane %v872, 7
      %v1919 = vsel %vm1872, %v1916, %v1918
      %v1920 = vrot.slane %v873, 7
      %v1921 = vsel %vm1872, %v1918, %v1920
      %v1922 = vrot.slane %v874, 7
      %v1923 = vsel %vm1872, %v1920, %v1922
      %v1924 = vrot.slane %v875, 7
      %v1925 = vsel %vm1872, %v1922, %v1924
      %v1926 = vrot.slane %v876, 7
      %v1927 = vsel %vm1872, %v1924, %v1926
      %v1928 = vrot.slane %v877, 7
      %v1929 = vsel %vm1872, %v1926, %v1928
      %v1930 = vrot.slane %v878, 7
      %v1931 = vsel %vm1872, %v1928, %v1930
      %v1962 = vsel %vm1872, 0.0, %v1873
      %v1963 = vmul.f32 %v1458, 0.0
      %v1964 = vmul.f32 %v1459, 0.0
      %v1965 = vmul.f32 %v1962, %v1460
      %v1966 = vmul.f32 %v1875, %v1461
      %v1967 = vmul.f32 %v1877, %v1462
      %v1968 = vmul.f32 %v1879, %v1463
      %v1969 = vmul.f32 %v1881, %v1464
      %v1970 = vmul.f32 %v1883, %v1465
      %v1971 = vmul.f32 %v1885, %v1466
      %v1972 = vmul.f32 %v1887, %v1467
      %v1973 = vmul.f32 %v1889, %v1468
      %v1974 = vmul.f32 %v1891, %v1469
      %v1975 = vmul.f32 %v1893, %v1470
      %v1976 = vmul.f32 %v1895, %v1471
      %v1977 = vmul.f32 %v1897, %v1472
      %v1978 = vmul.f32 %v1899, %v1473
      %v1979 = vmul.f32 %v1901, %v1474
      %v1980 = vmul.f32 %v1903, %v1475
      %v1981 = vmul.f32 %v1905, %v1476
      %v1982 = vmul.f32 %v1907, %v1477
      %v1983 = vmul.f32 %v1909, %v1478
      %v1984 = vmul.f32 %v1911, %v1479
      %v1985 = vmul.f32 %v1913, %v1480
      %v1986 = vmul.f32 %v1915, %v1481
      %v1987 = vmul.f32 %v1917, %v1482
      %v1988 = vmul.f32 %v1919, %v1483
      %v1989 = vmul.f32 %v1921, %v1484
      %v1990 = vmul.f32 %v1923, %v1485
      %v1991 = vmul.f32 %v1925, %v1486
      %v1992 = vmul.f32 %v1927, %v1487
      %v1993 = vmul.f32 %v1929, %v1488
      %v1994 = vmul.f32 %v1931, %v1489
      %v1995 = vld [vmem:[%s4] sm:$0x1]
      %v1996 = vlaneseq
      %v1997 = vshrl.u32 %v1996, 7
      %v1998 = vsub.s32 0, %v1997
      %v1999 = vrot.slane %v1995, %v1998
      %v2000 = vmul.f32 %v1963, %v1999
      %v2001 = vmul.f32 %v1964, %v1999
      %v2002 = vmul.f32 %v1965, %v1999
      %v2003 = vmul.f32 %v1966, %v1999
      %v2004 = vmul.f32 %v1967, %v1999
      %v2005 = vmul.f32 %v1968, %v1999
      %v2006 = vmul.f32 %v1969, %v1999
      %v2007 = vmul.f32 %v1970, %v1999
      %v2008 = vmul.f32 %v1971, %v1999
      %v2009 = vmul.f32 %v1972, %v1999
      %v2010 = vmul.f32 %v1973, %v1999
      %v2011 = vmul.f32 %v1974, %v1999
      %v2012 = vmul.f32 %v1975, %v1999
      %v2013 = vmul.f32 %v1976, %v1999
      %v2014 = vmul.f32 %v1977, %v1999
      %v2015 = vmul.f32 %v1978, %v1999
      %v2016 = vmul.f32 %v1979, %v1999
      %v2017 = vmul.f32 %v1980, %v1999
      %v2018 = vmul.f32 %v1981, %v1999
      %v2019 = vmul.f32 %v1982, %v1999
      %v2020 = vmul.f32 %v1983, %v1999
      %v2021 = vmul.f32 %v1984, %v1999
      %v2022 = vmul.f32 %v1985, %v1999
      %v2023 = vmul.f32 %v1986, %v1999
      %v2024 = vmul.f32 %v1987, %v1999
      %v2025 = vmul.f32 %v1988, %v1999
      %v2026 = vmul.f32 %v1989, %v1999
      %v2027 = vmul.f32 %v1990, %v1999
      %v2028 = vmul.f32 %v1991, %v1999
      %v2029 = vmul.f32 %v1992, %v1999
      %v2030 = vmul.f32 %v1993, %v1999
      %v2031 = vmul.f32 %v1994, %v1999
      %v2032 = vadd.f32 %v2000, 0.0
      %v2033 = vadd.f32 %v2001, 0.0
      %v2034 = vadd.f32 %v2002, 0.0
      %v2035 = vadd.f32 %v2003, 0.0
      %v2036 = vadd.f32 %v2004, 0.0
      %v2037 = vadd.f32 %v2005, 0.0
      %v2038 = vadd.f32 %v2006, 0.0
      %v2039 = vadd.f32 %v2007, 0.0
      %v2040 = vadd.f32 %v2008, 0.0
      %v2041 = vadd.f32 %v2009, 0.0
      %v2042 = vadd.f32 %v2010, 0.0
      %v2043 = vadd.f32 %v2011, 0.0
      %v2044 = vadd.f32 %v2012, 0.0
      %v2045 = vadd.f32 %v2013, 0.0
      %v2046 = vadd.f32 %v2014, 0.0
      %v2047 = vadd.f32 %v2015, 0.0
      %v2048 = vadd.f32 %v2016, 0.0
      %v2049 = vadd.f32 %v2017, 0.0
      %v2050 = vadd.f32 %v2018, 0.0
      %v2051 = vadd.f32 %v2019, 0.0
      %v2052 = vadd.f32 %v2020, 0.0
      %v2053 = vadd.f32 %v2021, 0.0
      %v2054 = vadd.f32 %v2022, 0.0
      %v2055 = vadd.f32 %v2023, 0.0
      %v2056 = vadd.f32 %v2024, 0.0
      %v2057 = vadd.f32 %v2025, 0.0
      %v2058 = vadd.f32 %v2026, 0.0
      %v2059 = vadd.f32 %v2027, 0.0
      %v2060 = vadd.f32 %v2028, 0.0
      %v2061 = vadd.f32 %v2029, 0.0
      %v2062 = vadd.f32 %v2030, 0.0
      %v2063 = vadd.f32 %v2031, 0.0
      %v2064 = vmul.f32 %v1618, 0.0
      %v2065 = vmul.f32 %v1619, 0.0
      %v2066 = vmul.f32 %v849, %v1620
      %v2067 = vmul.f32 %v850, %v1621
      %v2068 = vmul.f32 %v851, %v1622
      %v2069 = vmul.f32 %v852, %v1623
      %v2070 = vmul.f32 %v853, %v1624
      %v2071 = vmul.f32 %v854, %v1625
      %v2072 = vmul.f32 %v855, %v1626
      %v2073 = vmul.f32 %v856, %v1627
      %v2074 = vmul.f32 %v857, %v1628
      %v2075 = vmul.f32 %v858, %v1629
      %v2076 = vmul.f32 %v859, %v1630
      %v2077 = vmul.f32 %v860, %v1631
      %v2078 = vmul.f32 %v861, %v1632
      %v2079 = vmul.f32 %v862, %v1633
      %v2080 = vmul.f32 %v863, %v1634
      %v2081 = vmul.f32 %v864, %v1635
      %v2082 = vmul.f32 %v865, %v1636
      %v2083 = vmul.f32 %v866, %v1637
      %v2084 = vmul.f32 %v867, %v1638
      %v2085 = vmul.f32 %v868, %v1639
      %v2086 = vmul.f32 %v869, %v1640
      %v2087 = vmul.f32 %v870, %v1641
      %v2088 = vmul.f32 %v871, %v1642
      %v2089 = vmul.f32 %v872, %v1643
      %v2090 = vmul.f32 %v873, %v1644
      %v2091 = vmul.f32 %v874, %v1645
      %v2092 = vmul.f32 %v875, %v1646
      %v2093 = vmul.f32 %v876, %v1647
      %v2094 = vmul.f32 %v877, %v1648
      %v2095 = vmul.f32 %v878, %v1649
      %v2096 = vld [vmem:[%s4 + $0x1] sm:$0x1]
      %v2097 = vlaneseq
      %v2098 = vshrl.u32 %v2097, 7
      %v2099 = vsub.s32 0, %v2098
      %v2100 = vrot.slane %v2096, %v2099
      %v2101 = vmul.f32 %v2064, %v2100
      %v2102 = vmul.f32 %v2065, %v2100
      %v2103 = vmul.f32 %v2066, %v2100
      %v2104 = vmul.f32 %v2067, %v2100
      %v2105 = vmul.f32 %v2068, %v2100
      %v2106 = vmul.f32 %v2069, %v2100
      %v2107 = vmul.f32 %v2070, %v2100
      %v2108 = vmul.f32 %v2071, %v2100
      %v2109 = vmul.f32 %v2072, %v2100
      %v2110 = vmul.f32 %v2073, %v2100
      %v2111 = vmul.f32 %v2074, %v2100
      %v2112 = vmul.f32 %v2075, %v2100
      %v2113 = vmul.f32 %v2076, %v2100
      %v2114 = vmul.f32 %v2077, %v2100
      %v2115 = vmul.f32 %v2078, %v2100
      %v2116 = vmul.f32 %v2079, %v2100
      %v2117 = vmul.f32 %v2080, %v2100
      %v2118 = vmul.f32 %v2081, %v2100
      %v2119 = vmul.f32 %v2082, %v2100
      %v2120 = vmul.f32 %v2083, %v2100
      %v2121 = vmul.f32 %v2084, %v2100
      %v2122 = vmul.f32 %v2085, %v2100
      %v2123 = vmul.f32 %v2086, %v2100
      %v2124 = vmul.f32 %v2087, %v2100
      %v2125 = vmul.f32 %v2088, %v2100
      %v2126 = vmul.f32 %v2089, %v2100
      %v2127 = vmul.f32 %v2090, %v2100
      %v2128 = vmul.f32 %v2091, %v2100
      %v2129 = vmul.f32 %v2092, %v2100
      %v2130 = vmul.f32 %v2093, %v2100
      %v2131 = vmul.f32 %v2094, %v2100
      %v2132 = vmul.f32 %v2095, %v2100
      %v2133 = vadd.f32 %v2032, %v2101
      %v2134 = vadd.f32 %v2033, %v2102
      %v2135 = vadd.f32 %v2034, %v2103
      %v2136 = vadd.f32 %v2035, %v2104
      %v2137 = vadd.f32 %v2036, %v2105
      %v2138 = vadd.f32 %v2037, %v2106
      %v2139 = vadd.f32 %v2038, %v2107
      %v2140 = vadd.f32 %v2039, %v2108
      %v2141 = vadd.f32 %v2040, %v2109
      %v2142 = vadd.f32 %v2041, %v2110
      %v2143 = vadd.f32 %v2042, %v2111
      %v2144 = vadd.f32 %v2043, %v2112
      %v2145 = vadd.f32 %v2044, %v2113
      %v2146 = vadd.f32 %v2045, %v2114
      %v2147 = vadd.f32 %v2046, %v2115
      %v2148 = vadd.f32 %v2047, %v2116
      %v2149 = vadd.f32 %v2048, %v2117
      %v2150 = vadd.f32 %v2049, %v2118
      %v2151 = vadd.f32 %v2050, %v2119
      %v2152 = vadd.f32 %v2051, %v2120
      %v2153 = vadd.f32 %v2052, %v2121
      %v2154 = vadd.f32 %v2053, %v2122
      %v2155 = vadd.f32 %v2054, %v2123
      %v2156 = vadd.f32 %v2055, %v2124
      %v2157 = vadd.f32 %v2056, %v2125
      %v2158 = vadd.f32 %v2057, %v2126
      %v2159 = vadd.f32 %v2058, %v2127
      %v2160 = vadd.f32 %v2059, %v2128
      %v2161 = vadd.f32 %v2060, %v2129
      %v2162 = vadd.f32 %v2061, %v2130
      %v2163 = vadd.f32 %v2062, %v2131
      %v2164 = vadd.f32 %v2063, %v2132
      %vm2166 = vcmask 1046528
      %v2167 = vrot.slane %v849, 1
      %v2168 = vrot.slane %v850, 1
      %v2169 = vsel %vm2166, %v2167, %v2168
      %v2170 = vrot.slane %v851, 1
      %v2171 = vsel %vm2166, %v2168, %v2170
      %v2172 = vrot.slane %v852, 1
      %v2173 = vsel %vm2166, %v2170, %v2172
      %v2174 = vrot.slane %v853, 1
      %v2175 = vsel %vm2166, %v2172, %v2174
      %v2176 = vrot.slane %v854, 1
      %v2177 = vsel %vm2166, %v2174, %v2176
      %v2178 = vrot.slane %v855, 1
      %v2179 = vsel %vm2166, %v2176, %v2178
      %v2180 = vrot.slane %v856, 1
      %v2181 = vsel %vm2166, %v2178, %v2180
      %v2182 = vrot.slane %v857, 1
      %v2183 = vsel %vm2166, %v2180, %v2182
      %v2184 = vrot.slane %v858, 1
      %v2185 = vsel %vm2166, %v2182, %v2184
      %v2186 = vrot.slane %v859, 1
      %v2187 = vsel %vm2166, %v2184, %v2186
      %v2188 = vrot.slane %v860, 1
      %v2189 = vsel %vm2166, %v2186, %v2188
      %v2190 = vrot.slane %v861, 1
      %v2191 = vsel %vm2166, %v2188, %v2190
      %v2192 = vrot.slane %v862, 1
      %v2193 = vsel %vm2166, %v2190, %v2192
      %v2194 = vrot.slane %v863, 1
      %v2195 = vsel %vm2166, %v2192, %v2194
      %v2196 = vrot.slane %v864, 1
      %v2197 = vsel %vm2166, %v2194, %v2196
      %v2198 = vrot.slane %v865, 1
      %v2199 = vsel %vm2166, %v2196, %v2198
      %v2200 = vrot.slane %v866, 1
      %v2201 = vsel %vm2166, %v2198, %v2200
      %v2202 = vrot.slane %v867, 1
      %v2203 = vsel %vm2166, %v2200, %v2202
      %v2204 = vrot.slane %v868, 1
      %v2205 = vsel %vm2166, %v2202, %v2204
      %v2206 = vrot.slane %v869, 1
      %v2207 = vsel %vm2166, %v2204, %v2206
      %v2208 = vrot.slane %v870, 1
      %v2209 = vsel %vm2166, %v2206, %v2208
      %v2210 = vrot.slane %v871, 1
      %v2211 = vsel %vm2166, %v2208, %v2210
      %v2212 = vrot.slane %v872, 1
      %v2213 = vsel %vm2166, %v2210, %v2212
      %v2214 = vrot.slane %v873, 1
      %v2215 = vsel %vm2166, %v2212, %v2214
      %v2216 = vrot.slane %v874, 1
      %v2217 = vsel %vm2166, %v2214, %v2216
      %v2218 = vrot.slane %v875, 1
      %v2219 = vsel %vm2166, %v2216, %v2218
      %v2220 = vrot.slane %v876, 1
      %v2221 = vsel %vm2166, %v2218, %v2220
      %v2222 = vrot.slane %v877, 1
      %v2223 = vsel %vm2166, %v2220, %v2222
      %v2224 = vrot.slane %v878, 1
      %v2225 = vsel %vm2166, %v2222, %v2224
      %v2226 = vrot.slane %v879, 1
      %v2227 = vsel %vm2166, %v2224, %v2226
      %v2259 = vsel %vm2166, 0.0, %v2167
      %v2260 = vmul.f32 %v1810, 0.0
      %v2261 = vmul.f32 %v2259, %v1811
      %v2262 = vmul.f32 %v2169, %v1812
      %v2263 = vmul.f32 %v2171, %v1813
      %v2264 = vmul.f32 %v2173, %v1814
      %v2265 = vmul.f32 %v2175, %v1815
      %v2266 = vmul.f32 %v2177, %v1816
      %v2267 = vmul.f32 %v2179, %v1817
      %v2268 = vmul.f32 %v2181, %v1818
      %v2269 = vmul.f32 %v2183, %v1819
      %v2270 = vmul.f32 %v2185, %v1820
      %v2271 = vmul.f32 %v2187, %v1821
      %v2272 = vmul.f32 %v2189, %v1822
      %v2273 = vmul.f32 %v2191, %v1823
      %v2274 = vmul.f32 %v2193, %v1824
      %v2275 = vmul.f32 %v2195, %v1825
      %v2276 = vmul.f32 %v2197, %v1826
      %v2277 = vmul.f32 %v2199, %v1827
      %v2278 = vmul.f32 %v2201, %v1828
      %v2279 = vmul.f32 %v2203, %v1829
      %v2280 = vmul.f32 %v2205, %v1830
      %v2281 = vmul.f32 %v2207, %v1831
      %v2282 = vmul.f32 %v2209, %v1832
      %v2283 = vmul.f32 %v2211, %v1833
      %v2284 = vmul.f32 %v2213, %v1834
      %v2285 = vmul.f32 %v2215, %v1835
      %v2286 = vmul.f32 %v2217, %v1836
      %v2287 = vmul.f32 %v2219, %v1837
      %v2288 = vmul.f32 %v2221, %v1838
      %v2289 = vmul.f32 %v2223, %v1839
      %v2290 = vmul.f32 %v2225, %v1840
      %v2291 = vmul.f32 %v2227, %v1841
      %v2292 = vld [vmem:[%s4 + $0x2] sm:$0x1]
      %v2293 = vlaneseq
      %v2294 = vshrl.u32 %v2293, 7
      %v2295 = vsub.s32 0, %v2294
      %v2296 = vrot.slane %v2292, %v2295
      %v2297 = vmul.f32 %v2260, %v2296
      %v2298 = vmul.f32 %v2261, %v2296
      %v2299 = vmul.f32 %v2262, %v2296
      %v2300 = vmul.f32 %v2263, %v2296
      %v2301 = vmul.f32 %v2264, %v2296
      %v2302 = vmul.f32 %v2265, %v2296
      %v2303 = vmul.f32 %v2266, %v2296
      %v2304 = vmul.f32 %v2267, %v2296
      %v2305 = vmul.f32 %v2268, %v2296
      %v2306 = vmul.f32 %v2269, %v2296
      %v2307 = vmul.f32 %v2270, %v2296
      %v2308 = vmul.f32 %v2271, %v2296
      %v2309 = vmul.f32 %v2272, %v2296
      %v2310 = vmul.f32 %v2273, %v2296
      %v2311 = vmul.f32 %v2274, %v2296
      %v2312 = vmul.f32 %v2275, %v2296
      %v2313 = vmul.f32 %v2276, %v2296
      %v2314 = vmul.f32 %v2277, %v2296
      %v2315 = vmul.f32 %v2278, %v2296
      %v2316 = vmul.f32 %v2279, %v2296
      %v2317 = vmul.f32 %v2280, %v2296
      %v2318 = vmul.f32 %v2281, %v2296
      %v2319 = vmul.f32 %v2282, %v2296
      %v2320 = vmul.f32 %v2283, %v2296
      %v2321 = vmul.f32 %v2284, %v2296
      %v2322 = vmul.f32 %v2285, %v2296
      %v2323 = vmul.f32 %v2286, %v2296
      %v2324 = vmul.f32 %v2287, %v2296
      %v2325 = vmul.f32 %v2288, %v2296
      %v2326 = vmul.f32 %v2289, %v2296
      %v2327 = vmul.f32 %v2290, %v2296
      %v2328 = vmul.f32 %v2291, %v2296
      %v2329 = vadd.f32 %v2133, %v2297
      %v2330 = vadd.f32 %v2134, %v2298
      %v2331 = vadd.f32 %v2135, %v2299
      %v2332 = vadd.f32 %v2136, %v2300
      %v2333 = vadd.f32 %v2137, %v2301
      %v2334 = vadd.f32 %v2138, %v2302
      %v2335 = vadd.f32 %v2139, %v2303
      %v2336 = vadd.f32 %v2140, %v2304
      %v2337 = vadd.f32 %v2141, %v2305
      %v2338 = vadd.f32 %v2142, %v2306
      %v2339 = vadd.f32 %v2143, %v2307
      %v2340 = vadd.f32 %v2144, %v2308
      %v2341 = vadd.f32 %v2145, %v2309
      %v2342 = vadd.f32 %v2146, %v2310
      %v2343 = vadd.f32 %v2147, %v2311
      %v2344 = vadd.f32 %v2148, %v2312
      %v2345 = vadd.f32 %v2149, %v2313
      %v2346 = vadd.f32 %v2150, %v2314
      %v2347 = vadd.f32 %v2151, %v2315
      %v2348 = vadd.f32 %v2152, %v2316
      %v2349 = vadd.f32 %v2153, %v2317
      %v2350 = vadd.f32 %v2154, %v2318
      %v2351 = vadd.f32 %v2155, %v2319
      %v2352 = vadd.f32 %v2156, %v2320
      %v2353 = vadd.f32 %v2157, %v2321
      %v2354 = vadd.f32 %v2158, %v2322
      %v2355 = vadd.f32 %v2159, %v2323
      %v2356 = vadd.f32 %v2160, %v2324
      %v2357 = vadd.f32 %v2161, %v2325
      %v2358 = vadd.f32 %v2162, %v2326
      %v2359 = vadd.f32 %v2163, %v2327
      %v2360 = vadd.f32 %v2164, %v2328
      %v2362 = vrot.slane %v879, 7
      %v2363 = vsel %vm1872, %v1930, %v2362
      %v2364 = vrot.slane %v880, 7
      %v2365 = vsel %vm1872, %v2362, %v2364
      %v2368 = vmul.f32 %v1962, %v1458
      %v2369 = vmul.f32 %v1875, %v1459
      %v2370 = vmul.f32 %v1877, %v1460
      %v2371 = vmul.f32 %v1879, %v1461
      %v2372 = vmul.f32 %v1881, %v1462
      %v2373 = vmul.f32 %v1883, %v1463
      %v2374 = vmul.f32 %v1885, %v1464
      %v2375 = vmul.f32 %v1887, %v1465
      %v2376 = vmul.f32 %v1889, %v1466
      %v2377 = vmul.f32 %v1891, %v1467
      %v2378 = vmul.f32 %v1893, %v1468
      %v2379 = vmul.f32 %v1895, %v1469
      %v2380 = vmul.f32 %v1897, %v1470
      %v2381 = vmul.f32 %v1899, %v1471
      %v2382 = vmul.f32 %v1901, %v1472
      %v2383 = vmul.f32 %v1903, %v1473
      %v2384 = vmul.f32 %v1905, %v1474
      %v2385 = vmul.f32 %v1907, %v1475
      %v2386 = vmul.f32 %v1909, %v1476
      %v2387 = vmul.f32 %v1911, %v1477
      %v2388 = vmul.f32 %v1913, %v1478
      %v2389 = vmul.f32 %v1915, %v1479
      %v2390 = vmul.f32 %v1917, %v1480
      %v2391 = vmul.f32 %v1919, %v1481
      %v2392 = vmul.f32 %v1921, %v1482
      %v2393 = vmul.f32 %v1923, %v1483
      %v2394 = vmul.f32 %v1925, %v1484
      %v2395 = vmul.f32 %v1927, %v1485
      %v2396 = vmul.f32 %v1929, %v1486
      %v2397 = vmul.f32 %v1931, %v1487
      %v2398 = vmul.f32 %v2363, %v1488
      %v2399 = vmul.f32 %v2365, %v1489
      %v2400 = vld [vmem:[%s4 + $0x3] sm:$0x1]
      %v2401 = vlaneseq
      %v2402 = vshrl.u32 %v2401, 7
      %v2403 = vsub.s32 0, %v2402
      %v2404 = vrot.slane %v2400, %v2403
      %v2405 = vmul.f32 %v2368, %v2404
      %v2406 = vmul.f32 %v2369, %v2404
      %v2407 = vmul.f32 %v2370, %v2404
      %v2408 = vmul.f32 %v2371, %v2404
      %v2409 = vmul.f32 %v2372, %v2404
      %v2410 = vmul.f32 %v2373, %v2404
      %v2411 = vmul.f32 %v2374, %v2404
      %v2412 = vmul.f32 %v2375, %v2404
      %v2413 = vmul.f32 %v2376, %v2404
      %v2414 = vmul.f32 %v2377, %v2404
      %v2415 = vmul.f32 %v2378, %v2404
      %v2416 = vmul.f32 %v2379, %v2404
      %v2417 = vmul.f32 %v2380, %v2404
      %v2418 = vmul.f32 %v2381, %v2404
      %v2419 = vmul.f32 %v2382, %v2404
      %v2420 = vmul.f32 %v2383, %v2404
      %v2421 = vmul.f32 %v2384, %v2404
      %v2422 = vmul.f32 %v2385, %v2404
      %v2423 = vmul.f32 %v2386, %v2404
      %v2424 = vmul.f32 %v2387, %v2404
      %v2425 = vmul.f32 %v2388, %v2404
      %v2426 = vmul.f32 %v2389, %v2404
      %v2427 = vmul.f32 %v2390, %v2404
      %v2428 = vmul.f32 %v2391, %v2404
      %v2429 = vmul.f32 %v2392, %v2404
      %v2430 = vmul.f32 %v2393, %v2404
      %v2431 = vmul.f32 %v2394, %v2404
      %v2432 = vmul.f32 %v2395, %v2404
      %v2433 = vmul.f32 %v2396, %v2404
      %v2434 = vmul.f32 %v2397, %v2404
      %v2435 = vmul.f32 %v2398, %v2404
      %v2436 = vmul.f32 %v2399, %v2404
      %v2437 = vadd.f32 %v2329, %v2405
      %v2438 = vadd.f32 %v2330, %v2406
      %v2439 = vadd.f32 %v2331, %v2407
      %v2440 = vadd.f32 %v2332, %v2408
      %v2441 = vadd.f32 %v2333, %v2409
      %v2442 = vadd.f32 %v2334, %v2410
      %v2443 = vadd.f32 %v2335, %v2411
      %v2444 = vadd.f32 %v2336, %v2412
      %v2445 = vadd.f32 %v2337, %v2413
      %v2446 = vadd.f32 %v2338, %v2414
      %v2447 = vadd.f32 %v2339, %v2415
      %v2448 = vadd.f32 %v2340, %v2416
      %v2449 = vadd.f32 %v2341, %v2417
      %v2450 = vadd.f32 %v2342, %v2418
      %v2451 = vadd.f32 %v2343, %v2419
      %v2452 = vadd.f32 %v2344, %v2420
      %v2453 = vadd.f32 %v2345, %v2421
      %v2454 = vadd.f32 %v2346, %v2422
      %v2455 = vadd.f32 %v2347, %v2423
      %v2456 = vadd.f32 %v2348, %v2424
      %v2457 = vadd.f32 %v2349, %v2425
      %v2458 = vadd.f32 %v2350, %v2426
      %v2459 = vadd.f32 %v2351, %v2427
      %v2460 = vadd.f32 %v2352, %v2428
      %v2461 = vadd.f32 %v2353, %v2429
      %v2462 = vadd.f32 %v2354, %v2430
      %v2463 = vadd.f32 %v2355, %v2431
      %v2464 = vadd.f32 %v2356, %v2432
      %v2465 = vadd.f32 %v2357, %v2433
      %v2466 = vadd.f32 %v2358, %v2434
      %v2467 = vadd.f32 %v2359, %v2435
      %v2468 = vadd.f32 %v2360, %v2436
      %v2469 = vmul.f32 %v849, %v1618
      %v2470 = vmul.f32 %v850, %v1619
      %v2471 = vmul.f32 %v851, %v1620
      %v2472 = vmul.f32 %v852, %v1621
      %v2473 = vmul.f32 %v853, %v1622
      %v2474 = vmul.f32 %v854, %v1623
      %v2475 = vmul.f32 %v855, %v1624
      %v2476 = vmul.f32 %v856, %v1625
      %v2477 = vmul.f32 %v857, %v1626
      %v2478 = vmul.f32 %v858, %v1627
      %v2479 = vmul.f32 %v859, %v1628
      %v2480 = vmul.f32 %v860, %v1629
      %v2481 = vmul.f32 %v861, %v1630
      %v2482 = vmul.f32 %v862, %v1631
      %v2483 = vmul.f32 %v863, %v1632
      %v2484 = vmul.f32 %v864, %v1633
      %v2485 = vmul.f32 %v865, %v1634
      %v2486 = vmul.f32 %v866, %v1635
      %v2487 = vmul.f32 %v867, %v1636
      %v2488 = vmul.f32 %v868, %v1637
      %v2489 = vmul.f32 %v869, %v1638
      %v2490 = vmul.f32 %v870, %v1639
      %v2491 = vmul.f32 %v871, %v1640
      %v2492 = vmul.f32 %v872, %v1641
      %v2493 = vmul.f32 %v873, %v1642
      %v2494 = vmul.f32 %v874, %v1643
      %v2495 = vmul.f32 %v875, %v1644
      %v2496 = vmul.f32 %v876, %v1645
      %v2497 = vmul.f32 %v877, %v1646
      %v2498 = vmul.f32 %v878, %v1647
      %v2499 = vmul.f32 %v879, %v1648
      %v2500 = vmul.f32 %v880, %v1649
      %v2501 = vld [vmem:[%s4 + $0x4] sm:$0x1]
      %v2502 = vlaneseq
      %v2503 = vshrl.u32 %v2502, 7
      %v2504 = vsub.s32 0, %v2503
      %v2505 = vrot.slane %v2501, %v2504
      %v2506 = vmul.f32 %v2469, %v2505
      %v2507 = vmul.f32 %v2470, %v2505
      %v2508 = vmul.f32 %v2471, %v2505
      %v2509 = vmul.f32 %v2472, %v2505
      %v2510 = vmul.f32 %v2473, %v2505
      %v2511 = vmul.f32 %v2474, %v2505
      %v2512 = vmul.f32 %v2475, %v2505
      %v2513 = vmul.f32 %v2476, %v2505
      %v2514 = vmul.f32 %v2477, %v2505
      %v2515 = vmul.f32 %v2478, %v2505
      %v2516 = vmul.f32 %v2479, %v2505
      %v2517 = vmul.f32 %v2480, %v2505
      %v2518 = vmul.f32 %v2481, %v2505
      %v2519 = vmul.f32 %v2482, %v2505
      %v2520 = vmul.f32 %v2483, %v2505
      %v2521 = vmul.f32 %v2484, %v2505
      %v2522 = vmul.f32 %v2485, %v2505
      %v2523 = vmul.f32 %v2486, %v2505
      %v2524 = vmul.f32 %v2487, %v2505
      %v2525 = vmul.f32 %v2488, %v2505
      %v2526 = vmul.f32 %v2489, %v2505
      %v2527 = vmul.f32 %v2490, %v2505
      %v2528 = vmul.f32 %v2491, %v2505
      %v2529 = vmul.f32 %v2492, %v2505
      %v2530 = vmul.f32 %v2493, %v2505
      %v2531 = vmul.f32 %v2494, %v2505
      %v2532 = vmul.f32 %v2495, %v2505
      %v2533 = vmul.f32 %v2496, %v2505
      %v2534 = vmul.f32 %v2497, %v2505
      %v2535 = vmul.f32 %v2498, %v2505
      %v2536 = vmul.f32 %v2499, %v2505
      %v2537 = vmul.f32 %v2500, %v2505
      %v2538 = vadd.f32 %v2437, %v2506
      %v2539 = vadd.f32 %v2438, %v2507
      %v2540 = vadd.f32 %v2439, %v2508
      %v2541 = vadd.f32 %v2440, %v2509
      %v2542 = vadd.f32 %v2441, %v2510
      %v2543 = vadd.f32 %v2442, %v2511
      %v2544 = vadd.f32 %v2443, %v2512
      %v2545 = vadd.f32 %v2444, %v2513
      %v2546 = vadd.f32 %v2445, %v2514
      %v2547 = vadd.f32 %v2446, %v2515
      %v2548 = vadd.f32 %v2447, %v2516
      %v2549 = vadd.f32 %v2448, %v2517
      %v2550 = vadd.f32 %v2449, %v2518
      %v2551 = vadd.f32 %v2450, %v2519
      %v2552 = vadd.f32 %v2451, %v2520
      %v2553 = vadd.f32 %v2452, %v2521
      %v2554 = vadd.f32 %v2453, %v2522
      %v2555 = vadd.f32 %v2454, %v2523
      %v2556 = vadd.f32 %v2455, %v2524
      %v2557 = vadd.f32 %v2456, %v2525
      %v2558 = vadd.f32 %v2457, %v2526
      %v2559 = vadd.f32 %v2458, %v2527
      %v2560 = vadd.f32 %v2459, %v2528
      %v2561 = vadd.f32 %v2460, %v2529
      %v2562 = vadd.f32 %v2461, %v2530
      %v2563 = vadd.f32 %v2462, %v2531
      %v2564 = vadd.f32 %v2463, %v2532
      %v2565 = vadd.f32 %v2464, %v2533
      %v2566 = vadd.f32 %v2465, %v2534
      %v2567 = vadd.f32 %v2466, %v2535
      %v2568 = vadd.f32 %v2467, %v2536
      %v2569 = vadd.f32 %v2468, %v2537
      %v2570 = vrot.slane %v880, 1
      %v2571 = vsel %vm2166, %v2226, %v2570
      %v2574 = vsel %vm2166, %v2570, 0.0
      %v2575 = vmul.f32 %v2169, %v1810
      %v2576 = vmul.f32 %v2171, %v1811
      %v2577 = vmul.f32 %v2173, %v1812
      %v2578 = vmul.f32 %v2175, %v1813
      %v2579 = vmul.f32 %v2177, %v1814
      %v2580 = vmul.f32 %v2179, %v1815
      %v2581 = vmul.f32 %v2181, %v1816
      %v2582 = vmul.f32 %v2183, %v1817
      %v2583 = vmul.f32 %v2185, %v1818
      %v2584 = vmul.f32 %v2187, %v1819
      %v2585 = vmul.f32 %v2189, %v1820
      %v2586 = vmul.f32 %v2191, %v1821
      %v2587 = vmul.f32 %v2193, %v1822
      %v2588 = vmul.f32 %v2195, %v1823
      %v2589 = vmul.f32 %v2197, %v1824
      %v2590 = vmul.f32 %v2199, %v1825
      %v2591 = vmul.f32 %v2201, %v1826
      %v2592 = vmul.f32 %v2203, %v1827
      %v2593 = vmul.f32 %v2205, %v1828
      %v2594 = vmul.f32 %v2207, %v1829
      %v2595 = vmul.f32 %v2209, %v1830
      %v2596 = vmul.f32 %v2211, %v1831
      %v2597 = vmul.f32 %v2213, %v1832
      %v2598 = vmul.f32 %v2215, %v1833
      %v2599 = vmul.f32 %v2217, %v1834
      %v2600 = vmul.f32 %v2219, %v1835
      %v2601 = vmul.f32 %v2221, %v1836
      %v2602 = vmul.f32 %v2223, %v1837
      %v2603 = vmul.f32 %v2225, %v1838
      %v2604 = vmul.f32 %v2227, %v1839
      %v2605 = vmul.f32 %v2571, %v1840
      %v2606 = vmul.f32 %v2574, %v1841
      %v2607 = vld [vmem:[%s4 + $0x5] sm:$0x1]
      %v2608 = vlaneseq
      %v2609 = vshrl.u32 %v2608, 7
      %v2610 = vsub.s32 0, %v2609
      %v2611 = vrot.slane %v2607, %v2610
      %v2612 = vmul.f32 %v2575, %v2611
      %v2613 = vmul.f32 %v2576, %v2611
      %v2614 = vmul.f32 %v2577, %v2611
      %v2615 = vmul.f32 %v2578, %v2611
      %v2616 = vmul.f32 %v2579, %v2611
      %v2617 = vmul.f32 %v2580, %v2611
      %v2618 = vmul.f32 %v2581, %v2611
      %v2619 = vmul.f32 %v2582, %v2611
      %v2620 = vmul.f32 %v2583, %v2611
      %v2621 = vmul.f32 %v2584, %v2611
      %v2622 = vmul.f32 %v2585, %v2611
      %v2623 = vmul.f32 %v2586, %v2611
      %v2624 = vmul.f32 %v2587, %v2611
      %v2625 = vmul.f32 %v2588, %v2611
      %v2626 = vmul.f32 %v2589, %v2611
      %v2627 = vmul.f32 %v2590, %v2611
      %v2628 = vmul.f32 %v2591, %v2611
      %v2629 = vmul.f32 %v2592, %v2611
      %v2630 = vmul.f32 %v2593, %v2611
      %v2631 = vmul.f32 %v2594, %v2611
      %v2632 = vmul.f32 %v2595, %v2611
      %v2633 = vmul.f32 %v2596, %v2611
      %v2634 = vmul.f32 %v2597, %v2611
      %v2635 = vmul.f32 %v2598, %v2611
      %v2636 = vmul.f32 %v2599, %v2611
      %v2637 = vmul.f32 %v2600, %v2611
      %v2638 = vmul.f32 %v2601, %v2611
      %v2639 = vmul.f32 %v2602, %v2611
      %v2640 = vmul.f32 %v2603, %v2611
      %v2641 = vmul.f32 %v2604, %v2611
      %v2642 = vmul.f32 %v2605, %v2611
      %v2643 = vmul.f32 %v2606, %v2611
      %v2644 = vadd.f32 %v2538, %v2612
      %v2645 = vadd.f32 %v2539, %v2613
      %v2646 = vadd.f32 %v2540, %v2614
      %v2647 = vadd.f32 %v2541, %v2615
      %v2648 = vadd.f32 %v2542, %v2616
      %v2649 = vadd.f32 %v2543, %v2617
      %v2650 = vadd.f32 %v2544, %v2618
      %v2651 = vadd.f32 %v2545, %v2619
      %v2652 = vadd.f32 %v2546, %v2620
      %v2653 = vadd.f32 %v2547, %v2621
      %v2654 = vadd.f32 %v2548, %v2622
      %v2655 = vadd.f32 %v2549, %v2623
      %v2656 = vadd.f32 %v2550, %v2624
      %v2657 = vadd.f32 %v2551, %v2625
      %v2658 = vadd.f32 %v2552, %v2626
      %v2659 = vadd.f32 %v2553, %v2627
      %v2660 = vadd.f32 %v2554, %v2628
      %v2661 = vadd.f32 %v2555, %v2629
      %v2662 = vadd.f32 %v2556, %v2630
      %v2663 = vadd.f32 %v2557, %v2631
      %v2664 = vadd.f32 %v2558, %v2632
      %v2665 = vadd.f32 %v2559, %v2633
      %v2666 = vadd.f32 %v2560, %v2634
      %v2667 = vadd.f32 %v2561, %v2635
      %v2668 = vadd.f32 %v2562, %v2636
      %v2669 = vadd.f32 %v2563, %v2637
      %v2670 = vadd.f32 %v2564, %v2638
      %v2671 = vadd.f32 %v2565, %v2639
      %v2672 = vadd.f32 %v2566, %v2640
      %v2673 = vadd.f32 %v2567, %v2641
      %v2674 = vadd.f32 %v2568, %v2642
      %v2675 = vadd.f32 %v2569, %v2643
      %v2677 = vsel %vm1872, %v2364, 0.0
      %v2678 = vmul.f32 %v1877, %v1458
      %v2679 = vmul.f32 %v1879, %v1459
      %v2680 = vmul.f32 %v1881, %v1460
      %v2681 = vmul.f32 %v1883, %v1461
      %v2682 = vmul.f32 %v1885, %v1462
      %v2683 = vmul.f32 %v1887, %v1463
      %v2684 = vmul.f32 %v1889, %v1464
      %v2685 = vmul.f32 %v1891, %v1465
      %v2686 = vmul.f32 %v1893, %v1466
      %v2687 = vmul.f32 %v1895, %v1467
      %v2688 = vmul.f32 %v1897, %v1468
      %v2689 = vmul.f32 %v1899, %v1469
      %v2690 = vmul.f32 %v1901, %v1470
      %v2691 = vmul.f32 %v1903, %v1471
      %v2692 = vmul.f32 %v1905, %v1472
      %v2693 = vmul.f32 %v1907, %v1473
      %v2694 = vmul.f32 %v1909, %v1474
      %v2695 = vmul.f32 %v1911, %v1475
      %v2696 = vmul.f32 %v1913, %v1476
      %v2697 = vmul.f32 %v1915, %v1477
      %v2698 = vmul.f32 %v1917, %v1478
      %v2699 = vmul.f32 %v1919, %v1479
      %v2700 = vmul.f32 %v1921, %v1480
      %v2701 = vmul.f32 %v1923, %v1481
      %v2702 = vmul.f32 %v1925, %v1482
      %v2703 = vmul.f32 %v1927, %v1483
      %v2704 = vmul.f32 %v1929, %v1484
      %v2705 = vmul.f32 %v1931, %v1485
      %v2706 = vmul.f32 %v2363, %v1486
      %v2707 = vmul.f32 %v2365, %v1487
      %v2708 = vmul.f32 %v2677, %v1488
      %v2709 = vmul.f32 %v1489, 0.0
      %v2710 = vld [vmem:[%s4 + $0x6] sm:$0x1]
      %v2711 = vlaneseq
      %v2712 = vshrl.u32 %v2711, 7
      %v2713 = vsub.s32 0, %v2712
      %v2714 = vrot.slane %v2710, %v2713
      %v2715 = vmul.f32 %v2678, %v2714
      %v2716 = vmul.f32 %v2679, %v2714
      %v2717 = vmul.f32 %v2680, %v2714
      %v2718 = vmul.f32 %v2681, %v2714
      %v2719 = vmul.f32 %v2682, %v2714
      %v2720 = vmul.f32 %v2683, %v2714
      %v2721 = vmul.f32 %v2684, %v2714
      %v2722 = vmul.f32 %v2685, %v2714
      %v2723 = vmul.f32 %v2686, %v2714
      %v2724 = vmul.f32 %v2687, %v2714
      %v2725 = vmul.f32 %v2688, %v2714
      %v2726 = vmul.f32 %v2689, %v2714
      %v2727 = vmul.f32 %v2690, %v2714
      %v2728 = vmul.f32 %v2691, %v2714
      %v2729 = vmul.f32 %v2692, %v2714
      %v2730 = vmul.f32 %v2693, %v2714
      %v2731 = vmul.f32 %v2694, %v2714
      %v2732 = vmul.f32 %v2695, %v2714
      %v2733 = vmul.f32 %v2696, %v2714
      %v2734 = vmul.f32 %v2697, %v2714
      %v2735 = vmul.f32 %v2698, %v2714
      %v2736 = vmul.f32 %v2699, %v2714
      %v2737 = vmul.f32 %v2700, %v2714
      %v2738 = vmul.f32 %v2701, %v2714
      %v2739 = vmul.f32 %v2702, %v2714
      %v2740 = vmul.f32 %v2703, %v2714
      %v2741 = vmul.f32 %v2704, %v2714
      %v2742 = vmul.f32 %v2705, %v2714
      %v2743 = vmul.f32 %v2706, %v2714
      %v2744 = vmul.f32 %v2707, %v2714
      %v2745 = vmul.f32 %v2708, %v2714
      %v2746 = vmul.f32 %v2709, %v2714
      %v2747 = vadd.f32 %v2644, %v2715
      %v2748 = vadd.f32 %v2645, %v2716
      %v2749 = vadd.f32 %v2646, %v2717
      %v2750 = vadd.f32 %v2647, %v2718
      %v2751 = vadd.f32 %v2648, %v2719
      %v2752 = vadd.f32 %v2649, %v2720
      %v2753 = vadd.f32 %v2650, %v2721
      %v2754 = vadd.f32 %v2651, %v2722
      %v2755 = vadd.f32 %v2652, %v2723
      %v2756 = vadd.f32 %v2653, %v2724
      %v2757 = vadd.f32 %v2654, %v2725
      %v2758 = vadd.f32 %v2655, %v2726
      %v2759 = vadd.f32 %v2656, %v2727
      %v2760 = vadd.f32 %v2657, %v2728
      %v2761 = vadd.f32 %v2658, %v2729
      %v2762 = vadd.f32 %v2659, %v2730
      %v2763 = vadd.f32 %v2660, %v2731
      %v2764 = vadd.f32 %v2661, %v2732
      %v2765 = vadd.f32 %v2662, %v2733
      %v2766 = vadd.f32 %v2663, %v2734
      %v2767 = vadd.f32 %v2664, %v2735
      %v2768 = vadd.f32 %v2665, %v2736
      %v2769 = vadd.f32 %v2666, %v2737
      %v2770 = vadd.f32 %v2667, %v2738
      %v2771 = vadd.f32 %v2668, %v2739
      %v2772 = vadd.f32 %v2669, %v2740
      %v2773 = vadd.f32 %v2670, %v2741
      %v2774 = vadd.f32 %v2671, %v2742
      %v2775 = vadd.f32 %v2672, %v2743
      %v2776 = vadd.f32 %v2673, %v2744
      %v2777 = vadd.f32 %v2674, %v2745
      %v2778 = vadd.f32 %v2675, %v2746
      %v2779 = vmul.f32 %v851, %v1618
      %v2780 = vmul.f32 %v852, %v1619
      %v2781 = vmul.f32 %v853, %v1620
      %v2782 = vmul.f32 %v854, %v1621
      %v2783 = vmul.f32 %v855, %v1622
      %v2784 = vmul.f32 %v856, %v1623
      %v2785 = vmul.f32 %v857, %v1624
      %v2786 = vmul.f32 %v858, %v1625
      %v2787 = vmul.f32 %v859, %v1626
      %v2788 = vmul.f32 %v860, %v1627
      %v2789 = vmul.f32 %v861, %v1628
      %v2790 = vmul.f32 %v862, %v1629
      %v2791 = vmul.f32 %v863, %v1630
      %v2792 = vmul.f32 %v864, %v1631
      %v2793 = vmul.f32 %v865, %v1632
      %v2794 = vmul.f32 %v866, %v1633
      %v2795 = vmul.f32 %v867, %v1634
      %v2796 = vmul.f32 %v868, %v1635
      %v2797 = vmul.f32 %v869, %v1636
      %v2798 = vmul.f32 %v870, %v1637
      %v2799 = vmul.f32 %v871, %v1638
      %v2800 = vmul.f32 %v872, %v1639
      %v2801 = vmul.f32 %v873, %v1640
      %v2802 = vmul.f32 %v874, %v1641
      %v2803 = vmul.f32 %v875, %v1642
      %v2804 = vmul.f32 %v876, %v1643
      %v2805 = vmul.f32 %v877, %v1644
      %v2806 = vmul.f32 %v878, %v1645
      %v2807 = vmul.f32 %v879, %v1646
      %v2808 = vmul.f32 %v880, %v1647
      %v2809 = vmul.f32 %v1648, 0.0
      %v2810 = vmul.f32 %v1649, 0.0
      %v2811 = vld [vmem:[%s4 + $0x7] sm:$0x1]
      %v2812 = vlaneseq
      %v2813 = vshrl.u32 %v2812, 7
      %v2814 = vsub.s32 0, %v2813
      %v2815 = vrot.slane %v2811, %v2814
      %v2816 = vmul.f32 %v2779, %v2815
      %v2817 = vmul.f32 %v2780, %v2815
      %v2818 = vmul.f32 %v2781, %v2815
      %v2819 = vmul.f32 %v2782, %v2815
      %v2820 = vmul.f32 %v2783, %v2815
      %v2821 = vmul.f32 %v2784, %v2815
      %v2822 = vmul.f32 %v2785, %v2815
      %v2823 = vmul.f32 %v2786, %v2815
      %v2824 = vmul.f32 %v2787, %v2815
      %v2825 = vmul.f32 %v2788, %v2815
      %v2826 = vmul.f32 %v2789, %v2815
      %v2827 = vmul.f32 %v2790, %v2815
      %v2828 = vmul.f32 %v2791, %v2815
      %v2829 = vmul.f32 %v2792, %v2815
      %v2830 = vmul.f32 %v2793, %v2815
      %v2831 = vmul.f32 %v2794, %v2815
      %v2832 = vmul.f32 %v2795, %v2815
      %v2833 = vmul.f32 %v2796, %v2815
      %v2834 = vmul.f32 %v2797, %v2815
      %v2835 = vmul.f32 %v2798, %v2815
      %v2836 = vmul.f32 %v2799, %v2815
      %v2837 = vmul.f32 %v2800, %v2815
      %v2838 = vmul.f32 %v2801, %v2815
      %v2839 = vmul.f32 %v2802, %v2815
      %v2840 = vmul.f32 %v2803, %v2815
      %v2841 = vmul.f32 %v2804, %v2815
      %v2842 = vmul.f32 %v2805, %v2815
      %v2843 = vmul.f32 %v2806, %v2815
      %v2844 = vmul.f32 %v2807, %v2815
      %v2845 = vmul.f32 %v2808, %v2815
      %v2846 = vmul.f32 %v2809, %v2815
      %v2847 = vmul.f32 %v2810, %v2815
      %v2848 = vadd.f32 %v2747, %v2816
      %v2849 = vadd.f32 %v2748, %v2817
      %v2850 = vadd.f32 %v2749, %v2818
      %v2851 = vadd.f32 %v2750, %v2819
      %v2852 = vadd.f32 %v2751, %v2820
      %v2853 = vadd.f32 %v2752, %v2821
      %v2854 = vadd.f32 %v2753, %v2822
      %v2855 = vadd.f32 %v2754, %v2823
      %v2856 = vadd.f32 %v2755, %v2824
      %v2857 = vadd.f32 %v2756, %v2825
      %v2858 = vadd.f32 %v2757, %v2826
      %v2859 = vadd.f32 %v2758, %v2827
      %v2860 = vadd.f32 %v2759, %v2828
      %v2861 = vadd.f32 %v2760, %v2829
      %v2862 = vadd.f32 %v2761, %v2830
      %v2863 = vadd.f32 %v2762, %v2831
      %v2864 = vadd.f32 %v2763, %v2832
      %v2865 = vadd.f32 %v2764, %v2833
      %v2866 = vadd.f32 %v2765, %v2834
      %v2867 = vadd.f32 %v2766, %v2835
      %v2868 = vadd.f32 %v2767, %v2836
      %v2869 = vadd.f32 %v2768, %v2837
      %v2870 = vadd.f32 %v2769, %v2838
      %v2871 = vadd.f32 %v2770, %v2839
      %v2872 = vadd.f32 %v2771, %v2840
      %v2873 = vadd.f32 %v2772, %v2841
      %v2874 = vadd.f32 %v2773, %v2842
      %v2875 = vadd.f32 %v2774, %v2843
      %v2876 = vadd.f32 %v2775, %v2844
      %v2877 = vadd.f32 %v2776, %v2845
      %v2878 = vadd.f32 %v2777, %v2846
      %v2879 = vadd.f32 %v2778, %v2847
      %v2880 = vmul.f32 %v2173, %v1810
      %v2881 = vmul.f32 %v2175, %v1811
      %v2882 = vmul.f32 %v2177, %v1812
      %v2883 = vmul.f32 %v2179, %v1813
      %v2884 = vmul.f32 %v2181, %v1814
      %v2885 = vmul.f32 %v2183, %v1815
      %v2886 = vmul.f32 %v2185, %v1816
      %v2887 = vmul.f32 %v2187, %v1817
      %v2888 = vmul.f32 %v2189, %v1818
      %v2889 = vmul.f32 %v2191, %v1819
      %v2890 = vmul.f32 %v2193, %v1820
      %v2891 = vmul.f32 %v2195, %v1821
      %v2892 = vmul.f32 %v2197, %v1822
      %v2893 = vmul.f32 %v2199, %v1823
      %v2894 = vmul.f32 %v2201, %v1824
      %v2895 = vmul.f32 %v2203, %v1825
      %v2896 = vmul.f32 %v2205, %v1826
      %v2897 = vmul.f32 %v2207, %v1827
      %v2898 = vmul.f32 %v2209, %v1828
      %v2899 = vmul.f32 %v2211, %v1829
      %v2900 = vmul.f32 %v2213, %v1830
      %v2901 = vmul.f32 %v2215, %v1831
      %v2902 = vmul.f32 %v2217, %v1832
      %v2903 = vmul.f32 %v2219, %v1833
      %v2904 = vmul.f32 %v2221, %v1834
      %v2905 = vmul.f32 %v2223, %v1835
      %v2906 = vmul.f32 %v2225, %v1836
      %v2907 = vmul.f32 %v2227, %v1837
      %v2908 = vmul.f32 %v2571, %v1838
      %v2909 = vmul.f32 %v2574, %v1839
      %v2910 = vmul.f32 %v1840, 0.0
      %v2911 = vmul.f32 %v1841, 0.0
      %v2912 = vld [vmem:[%s4 + $0x8] sm:$0x1]
      %v2913 = vlaneseq
      %v2914 = vshrl.u32 %v2913, 7
      %v2915 = vsub.s32 0, %v2914
      %v2916 = vrot.slane %v2912, %v2915
      %v2917 = vmul.f32 %v2880, %v2916
      %v2918 = vmul.f32 %v2881, %v2916
      %v2919 = vmul.f32 %v2882, %v2916
      %v2920 = vmul.f32 %v2883, %v2916
      %v2921 = vmul.f32 %v2884, %v2916
      %v2922 = vmul.f32 %v2885, %v2916
      %v2923 = vmul.f32 %v2886, %v2916
      %v2924 = vmul.f32 %v2887, %v2916
      %v2925 = vmul.f32 %v2888, %v2916
      %v2926 = vmul.f32 %v2889, %v2916
      %v2927 = vmul.f32 %v2890, %v2916
      %v2928 = vmul.f32 %v2891, %v2916
      %v2929 = vmul.f32 %v2892, %v2916
      %v2930 = vmul.f32 %v2893, %v2916
      %v2931 = vmul.f32 %v2894, %v2916
      %v2932 = vmul.f32 %v2895, %v2916
      %v2933 = vmul.f32 %v2896, %v2916
      %v2934 = vmul.f32 %v2897, %v2916
      %v2935 = vmul.f32 %v2898, %v2916
      %v2936 = vmul.f32 %v2899, %v2916
      %v2937 = vmul.f32 %v2900, %v2916
      %v2938 = vmul.f32 %v2901, %v2916
      %v2939 = vmul.f32 %v2902, %v2916
      %v2940 = vmul.f32 %v2903, %v2916
      %v2941 = vmul.f32 %v2904, %v2916
      %v2942 = vmul.f32 %v2905, %v2916
      %v2943 = vmul.f32 %v2906, %v2916
      %v2944 = vmul.f32 %v2907, %v2916
      %v2945 = vmul.f32 %v2908, %v2916
      %v2946 = vmul.f32 %v2909, %v2916
      %v2947 = vmul.f32 %v2910, %v2916
      %v2948 = vmul.f32 %v2911, %v2916
      %v2949 = vadd.f32 %v2848, %v2917
      %v2950 = vadd.f32 %v2849, %v2918
      %v2951 = vadd.f32 %v2850, %v2919
      %v2952 = vadd.f32 %v2851, %v2920
      %v2953 = vadd.f32 %v2852, %v2921
      %v2954 = vadd.f32 %v2853, %v2922
      %v2955 = vadd.f32 %v2854, %v2923
      %v2956 = vadd.f32 %v2855, %v2924
      %v2957 = vadd.f32 %v2856, %v2925
      %v2958 = vadd.f32 %v2857, %v2926
      %v2959 = vadd.f32 %v2858, %v2927
      %v2960 = vadd.f32 %v2859, %v2928
      %v2961 = vadd.f32 %v2860, %v2929
      %v2962 = vadd.f32 %v2861, %v2930
      %v2963 = vadd.f32 %v2862, %v2931
      %v2964 = vadd.f32 %v2863, %v2932
      %v2965 = vadd.f32 %v2864, %v2933
      %v2966 = vadd.f32 %v2865, %v2934
      %v2967 = vadd.f32 %v2866, %v2935
      %v2968 = vadd.f32 %v2867, %v2936
      %v2969 = vadd.f32 %v2868, %v2937
      %v2970 = vadd.f32 %v2869, %v2938
      %v2971 = vadd.f32 %v2870, %v2939
      %v2972 = vadd.f32 %v2871, %v2940
      %v2973 = vadd.f32 %v2872, %v2941
      %v2974 = vadd.f32 %v2873, %v2942
      %v2975 = vadd.f32 %v2874, %v2943
      %v2976 = vadd.f32 %v2875, %v2944
      %v2977 = vadd.f32 %v2876, %v2945
      %v2978 = vadd.f32 %v2877, %v2946
      %v2979 = vadd.f32 %v2878, %v2947
      %v2980 = vadd.f32 %v2879, %v2948
      %v2981 = vld [vmem:[%s5] sm:$0x1]
      %v2983 = vlaneseq
      %v2984 = vshrl.u32 %v2983, 7
      %v2985 = vsub.s32 0, %v2984
      %v2986 = vrot.slane %v2981, %v2985
      %v2988 = vmul.f32 %v2949, %v2986
      %v2989 = vmul.f32 %v2950, %v2986
      %v2990 = vmul.f32 %v2951, %v2986
      %v2991 = vmul.f32 %v2952, %v2986
      %v2992 = vmul.f32 %v2953, %v2986
      %v2993 = vmul.f32 %v2954, %v2986
      %v2994 = vmul.f32 %v2955, %v2986
      %v2995 = vmul.f32 %v2956, %v2986
      %v2996 = vmul.f32 %v2957, %v2986
      %v2997 = vmul.f32 %v2958, %v2986
      %v2998 = vmul.f32 %v2959, %v2986
      %v2999 = vmul.f32 %v2960, %v2986
      %v3000 = vmul.f32 %v2961, %v2986
      %v3001 = vmul.f32 %v2962, %v2986
      %v3002 = vmul.f32 %v2963, %v2986
      %v3003 = vmul.f32 %v2964, %v2986
      %v3004 = vmul.f32 %v2965, %v2986
      %v3005 = vmul.f32 %v2966, %v2986
      %v3006 = vmul.f32 %v2967, %v2986
      %v3007 = vmul.f32 %v2968, %v2986
      %v3008 = vmul.f32 %v2969, %v2986
      %v3009 = vmul.f32 %v2970, %v2986
      %v3010 = vmul.f32 %v2971, %v2986
      %v3011 = vmul.f32 %v2972, %v2986
      %v3012 = vmul.f32 %v2973, %v2986
      %v3013 = vmul.f32 %v2974, %v2986
      %v3014 = vmul.f32 %v2975, %v2986
      %v3015 = vmul.f32 %v2976, %v2986
      %v3016 = vmul.f32 %v2977, %v2986
      %v3017 = vmul.f32 %v2978, %v2986
      %v3018 = vmul.f32 %v2979, %v2986
      %v3019 = vmul.f32 %v2980, %v2986
      %v3020 = vld [vmem:[%s6] sm:$0x1]
      %v3022 = vlaneseq
      %v3023 = vshrl.u32 %v3022, 7
      %v3024 = vsub.s32 0, %v3023
      %v3025 = vrot.slane %v3020, %v3024
      %v3027 = vadd.f32 %v2988, %v3025
      %v3028 = vadd.f32 %v2989, %v3025
      %v3029 = vadd.f32 %v2990, %v3025
      %v3030 = vadd.f32 %v2991, %v3025
      %v3031 = vadd.f32 %v2992, %v3025
      %v3032 = vadd.f32 %v2993, %v3025
      %v3033 = vadd.f32 %v2994, %v3025
      %v3034 = vadd.f32 %v2995, %v3025
      %v3035 = vadd.f32 %v2996, %v3025
      %v3036 = vadd.f32 %v2997, %v3025
      %v3037 = vadd.f32 %v2998, %v3025
      %v3038 = vadd.f32 %v2999, %v3025
      %v3039 = vadd.f32 %v3000, %v3025
      %v3040 = vadd.f32 %v3001, %v3025
      %v3041 = vadd.f32 %v3002, %v3025
      %v3042 = vadd.f32 %v3003, %v3025
      %v3043 = vadd.f32 %v3004, %v3025
      %v3044 = vadd.f32 %v3005, %v3025
      %v3045 = vadd.f32 %v3006, %v3025
      %v3046 = vadd.f32 %v3007, %v3025
      %v3047 = vadd.f32 %v3008, %v3025
      %v3048 = vadd.f32 %v3009, %v3025
      %v3049 = vadd.f32 %v3010, %v3025
      %v3050 = vadd.f32 %v3011, %v3025
      %v3051 = vadd.f32 %v3012, %v3025
      %v3052 = vadd.f32 %v3013, %v3025
      %v3053 = vadd.f32 %v3014, %v3025
      %v3054 = vadd.f32 %v3015, %v3025
      %v3055 = vadd.f32 %v3016, %v3025
      %v3056 = vadd.f32 %v3017, %v3025
      %v3057 = vadd.f32 %v3018, %v3025
      %v3058 = vadd.f32 %v3019, %v3025
      %v3059 = vxor.u32 %v3027, 2147483648
      %v3060 = vxor.u32 %v3028, 2147483648
      %v3061 = vxor.u32 %v3029, 2147483648
      %v3062 = vxor.u32 %v3030, 2147483648
      %v3063 = vxor.u32 %v3031, 2147483648
      %v3064 = vxor.u32 %v3032, 2147483648
      %v3065 = vxor.u32 %v3033, 2147483648
      %v3066 = vxor.u32 %v3034, 2147483648
      %v3067 = vxor.u32 %v3035, 2147483648
      %v3068 = vxor.u32 %v3036, 2147483648
      %v3069 = vxor.u32 %v3037, 2147483648
      %v3070 = vxor.u32 %v3038, 2147483648
      %v3071 = vxor.u32 %v3039, 2147483648
      %v3072 = vxor.u32 %v3040, 2147483648
      %v3073 = vxor.u32 %v3041, 2147483648
      %v3074 = vxor.u32 %v3042, 2147483648
      %v3075 = vxor.u32 %v3043, 2147483648
      %v3076 = vxor.u32 %v3044, 2147483648
      %v3077 = vxor.u32 %v3045, 2147483648
      %v3078 = vxor.u32 %v3046, 2147483648
      %v3079 = vxor.u32 %v3047, 2147483648
      %v3080 = vxor.u32 %v3048, 2147483648
      %v3081 = vxor.u32 %v3049, 2147483648
      %v3082 = vxor.u32 %v3050, 2147483648
      %v3083 = vxor.u32 %v3051, 2147483648
      %v3084 = vxor.u32 %v3052, 2147483648
      %v3085 = vxor.u32 %v3053, 2147483648
      %v3086 = vxor.u32 %v3054, 2147483648
      %v3087 = vxor.u32 %v3055, 2147483648
      %v3088 = vxor.u32 %v3056, 2147483648
      %v3089 = vxor.u32 %v3057, 2147483648
      %v3090 = vxor.u32 %v3058, 2147483648
      %v3091 = vmul.f32 %v3059, 1.442695
      %v3092 = vpow.pop %v3091
      %v3093 = vmul.f32 %v3060, 1.442695
      %v3094 = vpow.pop %v3093
      %v3095 = vmul.f32 %v3061, 1.442695
      %v3096 = vpow.pop %v3095
      %v3097 = vmul.f32 %v3062, 1.442695
      %v3098 = vpow.pop %v3097
      %v3099 = vmul.f32 %v3063, 1.442695
      %v3100 = vpow.pop %v3099
      %v3101 = vmul.f32 %v3064, 1.442695
      %v3102 = vpow.pop %v3101
      %v3103 = vmul.f32 %v3065, 1.442695
      %v3104 = vpow.pop %v3103
      %v3105 = vmul.f32 %v3066, 1.442695
      %v3106 = vpow.pop %v3105
      %v3107 = vmul.f32 %v3067, 1.442695
      %v3108 = vpow.pop %v3107
      %v3109 = vmul.f32 %v3068, 1.442695
      %v3110 = vpow.pop %v3109
      %v3111 = vmul.f32 %v3069, 1.442695
      %v3112 = vpow.pop %v3111
      %v3113 = vmul.f32 %v3070, 1.442695
      %v3114 = vpow.pop %v3113
      %v3115 = vmul.f32 %v3071, 1.442695
      %v3116 = vpow.pop %v3115
      %v3117 = vmul.f32 %v3072, 1.442695
      %v3118 = vpow.pop %v3117
      %v3119 = vmul.f32 %v3073, 1.442695
      %v3120 = vpow.pop %v3119
      %v3121 = vmul.f32 %v3074, 1.442695
      %v3122 = vpow.pop %v3121
      %v3123 = vmul.f32 %v3075, 1.442695
      %v3124 = vpow.pop %v3123
      %v3125 = vmul.f32 %v3076, 1.442695
      %v3126 = vpow.pop %v3125
      %v3127 = vmul.f32 %v3077, 1.442695
      %v3128 = vpow.pop %v3127
      %v3129 = vmul.f32 %v3078, 1.442695
      %v3130 = vpow.pop %v3129
      %v3131 = vmul.f32 %v3079, 1.442695
      %v3132 = vpow.pop %v3131
      %v3133 = vmul.f32 %v3080, 1.442695
      %v3134 = vpow.pop %v3133
      %v3135 = vmul.f32 %v3081, 1.442695
      %v3136 = vpow.pop %v3135
      %v3137 = vmul.f32 %v3082, 1.442695
      %v3138 = vpow.pop %v3137
      %v3139 = vmul.f32 %v3083, 1.442695
      %v3140 = vpow.pop %v3139
      %v3141 = vmul.f32 %v3084, 1.442695
      %v3142 = vpow.pop %v3141
      %v3143 = vmul.f32 %v3085, 1.442695
      %v3144 = vpow.pop %v3143
      %v3145 = vmul.f32 %v3086, 1.442695
      %v3146 = vpow.pop %v3145
      %v3147 = vmul.f32 %v3087, 1.442695
      %v3148 = vpow.pop %v3147
      %v3149 = vmul.f32 %v3088, 1.442695
      %v3150 = vpow.pop %v3149
      %v3151 = vmul.f32 %v3089, 1.442695
      %v3152 = vpow.pop %v3151
      %v3153 = vmul.f32 %v3090, 1.442695
      %v3154 = vpow.pop %v3153
      %v3155 = vadd.f32 %v3092, 1.0
      %v3156 = vadd.f32 %v3094, 1.0
      %v3157 = vadd.f32 %v3096, 1.0
      %v3158 = vadd.f32 %v3098, 1.0
      %v3159 = vadd.f32 %v3100, 1.0
      %v3160 = vadd.f32 %v3102, 1.0
      %v3161 = vadd.f32 %v3104, 1.0
      %v3162 = vadd.f32 %v3106, 1.0
      %v3163 = vadd.f32 %v3108, 1.0
      %v3164 = vadd.f32 %v3110, 1.0
      %v3165 = vadd.f32 %v3112, 1.0
      %v3166 = vadd.f32 %v3114, 1.0
      %v3167 = vadd.f32 %v3116, 1.0
      %v3168 = vadd.f32 %v3118, 1.0
      %v3169 = vadd.f32 %v3120, 1.0
      %v3170 = vadd.f32 %v3122, 1.0
      %v3171 = vadd.f32 %v3124, 1.0
      %v3172 = vadd.f32 %v3126, 1.0
      %v3173 = vadd.f32 %v3128, 1.0
      %v3174 = vadd.f32 %v3130, 1.0
      %v3175 = vadd.f32 %v3132, 1.0
      %v3176 = vadd.f32 %v3134, 1.0
      %v3177 = vadd.f32 %v3136, 1.0
      %v3178 = vadd.f32 %v3138, 1.0
      %v3179 = vadd.f32 %v3140, 1.0
      %v3180 = vadd.f32 %v3142, 1.0
      %v3181 = vadd.f32 %v3144, 1.0
      %v3182 = vadd.f32 %v3146, 1.0
      %v3183 = vadd.f32 %v3148, 1.0
      %v3184 = vadd.f32 %v3150, 1.0
      %v3185 = vadd.f32 %v3152, 1.0
      %v3186 = vadd.f32 %v3154, 1.0
      %v3187 = vrcp.pop %v3155
      %v3188 = vmul.f32 1.0, %v3187
      %v3189 = vrcp.pop %v3156
      %v3190 = vmul.f32 1.0, %v3189
      %v3191 = vrcp.pop %v3157
      %v3192 = vmul.f32 1.0, %v3191
      %v3193 = vrcp.pop %v3158
      %v3194 = vmul.f32 1.0, %v3193
      %v3195 = vrcp.pop %v3159
      %v3196 = vmul.f32 1.0, %v3195
      %v3197 = vrcp.pop %v3160
      %v3198 = vmul.f32 1.0, %v3197
      %v3199 = vrcp.pop %v3161
      %v3200 = vmul.f32 1.0, %v3199
      %v3201 = vrcp.pop %v3162
      %v3202 = vmul.f32 1.0, %v3201
      %v3203 = vrcp.pop %v3163
      %v3204 = vmul.f32 1.0, %v3203
      %v3205 = vrcp.pop %v3164
      %v3206 = vmul.f32 1.0, %v3205
      %v3207 = vrcp.pop %v3165
      %v3208 = vmul.f32 1.0, %v3207
      %v3209 = vrcp.pop %v3166
      %v3210 = vmul.f32 1.0, %v3209
      %v3211 = vrcp.pop %v3167
      %v3212 = vmul.f32 1.0, %v3211
      %v3213 = vrcp.pop %v3168
      %v3214 = vmul.f32 1.0, %v3213
      %v3215 = vrcp.pop %v3169
      %v3216 = vmul.f32 1.0, %v3215
      %v3217 = vrcp.pop %v3170
      %v3218 = vmul.f32 1.0, %v3217
      %v3219 = vrcp.pop %v3171
      %v3220 = vmul.f32 1.0, %v3219
      %v3221 = vrcp.pop %v3172
      %v3222 = vmul.f32 1.0, %v3221
      %v3223 = vrcp.pop %v3173
      %v3224 = vmul.f32 1.0, %v3223
      %v3225 = vrcp.pop %v3174
      %v3226 = vmul.f32 1.0, %v3225
      %v3227 = vrcp.pop %v3175
      %v3228 = vmul.f32 1.0, %v3227
      %v3229 = vrcp.pop %v3176
      %v3230 = vmul.f32 1.0, %v3229
      %v3231 = vrcp.pop %v3177
      %v3232 = vmul.f32 1.0, %v3231
      %v3233 = vrcp.pop %v3178
      %v3234 = vmul.f32 1.0, %v3233
      %v3235 = vrcp.pop %v3179
      %v3236 = vmul.f32 1.0, %v3235
      %v3237 = vrcp.pop %v3180
      %v3238 = vmul.f32 1.0, %v3237
      %v3239 = vrcp.pop %v3181
      %v3240 = vmul.f32 1.0, %v3239
      %v3241 = vrcp.pop %v3182
      %v3242 = vmul.f32 1.0, %v3241
      %v3243 = vrcp.pop %v3183
      %v3244 = vmul.f32 1.0, %v3243
      %v3245 = vrcp.pop %v3184
      %v3246 = vmul.f32 1.0, %v3245
      %v3247 = vrcp.pop %v3185
      %v3248 = vmul.f32 1.0, %v3247
      %v3249 = vrcp.pop %v3186
      %v3250 = vmul.f32 1.0, %v3249
      %v3251 = vmul.f32 %v3027, %v3188
      %v3252 = vmul.f32 %v3028, %v3190
      %v3253 = vmul.f32 %v3029, %v3192
      %v3254 = vmul.f32 %v3030, %v3194
      %v3255 = vmul.f32 %v3031, %v3196
      %v3256 = vmul.f32 %v3032, %v3198
      %v3257 = vmul.f32 %v3033, %v3200
      %v3258 = vmul.f32 %v3034, %v3202
      %v3259 = vmul.f32 %v3035, %v3204
      %v3260 = vmul.f32 %v3036, %v3206
      %v3261 = vmul.f32 %v3037, %v3208
      %v3262 = vmul.f32 %v3038, %v3210
      %v3263 = vmul.f32 %v3039, %v3212
      %v3264 = vmul.f32 %v3040, %v3214
      %v3265 = vmul.f32 %v3041, %v3216
      %v3266 = vmul.f32 %v3042, %v3218
      %v3267 = vmul.f32 %v3043, %v3220
      %v3268 = vmul.f32 %v3044, %v3222
      %v3269 = vmul.f32 %v3045, %v3224
      %v3270 = vmul.f32 %v3046, %v3226
      %v3271 = vmul.f32 %v3047, %v3228
      %v3272 = vmul.f32 %v3048, %v3230
      %v3273 = vmul.f32 %v3049, %v3232
      %v3274 = vmul.f32 %v3050, %v3234
      %v3275 = vmul.f32 %v3051, %v3236
      %v3276 = vmul.f32 %v3052, %v3238
      %v3277 = vmul.f32 %v3053, %v3240
      %v3278 = vmul.f32 %v3054, %v3242
      %v3279 = vmul.f32 %v3055, %v3244
      %v3280 = vmul.f32 %v3056, %v3246
      %v3281 = vmul.f32 %v3057, %v3248
      %v3282 = vmul.f32 %v3058, %v3250
      %vm3283 = vcmask 261120
      %3284 = vst.msk [vmem:[%s311] sm:$0xff] %vm3283, %v3251
      %3285 = vst.msk [vmem:[%s311 + $0x8] sm:$0xff] %vm3283, %v3252
      %3286 = vst.msk [vmem:[%s311 + $0x10] sm:$0xff] %vm3283, %v3253
      %3287 = vst.msk [vmem:[%s311 + $0x18] sm:$0xff] %vm3283, %v3254
      %3288 = vst.msk [vmem:[%s311 + $0x20] sm:$0xff] %vm3283, %v3255
      %3289 = vst.msk [vmem:[%s311 + $0x28] sm:$0xff] %vm3283, %v3256
      %3290 = vst.msk [vmem:[%s311 + $0x30] sm:$0xff] %vm3283, %v3257
      %3291 = vst.msk [vmem:[%s311 + $0x38] sm:$0xff] %vm3283, %v3258
      %3292 = vst.msk [vmem:[%s311 + $0x40] sm:$0xff] %vm3283, %v3259
      %3293 = vst.msk [vmem:[%s311 + $0x48] sm:$0xff] %vm3283, %v3260
      %3294 = vst.msk [vmem:[%s311 + $0x50] sm:$0xff] %vm3283, %v3261
      %3295 = vst.msk [vmem:[%s311 + $0x58] sm:$0xff] %vm3283, %v3262
      %3296 = vst.msk [vmem:[%s311 + $0x60] sm:$0xff] %vm3283, %v3263
      %3297 = vst.msk [vmem:[%s311 + $0x68] sm:$0xff] %vm3283, %v3264
      %3298 = vst.msk [vmem:[%s311 + $0x70] sm:$0xff] %vm3283, %v3265
      %3299 = vst.msk [vmem:[%s311 + $0x78] sm:$0xff] %vm3283, %v3266
      %3300 = vst.msk [vmem:[%s311 + $0x80] sm:$0xff] %vm3283, %v3267
      %3301 = vst.msk [vmem:[%s311 + $0x88] sm:$0xff] %vm3283, %v3268
      %3302 = vst.msk [vmem:[%s311 + $0x90] sm:$0xff] %vm3283, %v3269
      %3303 = vst.msk [vmem:[%s311 + $0x98] sm:$0xff] %vm3283, %v3270
      %3304 = vst.msk [vmem:[%s311 + $0xa0] sm:$0xff] %vm3283, %v3271
      %3305 = vst.msk [vmem:[%s311 + $0xa8] sm:$0xff] %vm3283, %v3272
      %3306 = vst.msk [vmem:[%s311 + $0xb0] sm:$0xff] %vm3283, %v3273
      %3307 = vst.msk [vmem:[%s311 + $0xb8] sm:$0xff] %vm3283, %v3274
      %3308 = vst.msk [vmem:[%s311 + $0xc0] sm:$0xff] %vm3283, %v3275
      %3309 = vst.msk [vmem:[%s311 + $0xc8] sm:$0xff] %vm3283, %v3276
      %3310 = vst.msk [vmem:[%s311 + $0xd0] sm:$0xff] %vm3283, %v3277
      %3311 = vst.msk [vmem:[%s311 + $0xd8] sm:$0xff] %vm3283, %v3278
      %3312 = vst.msk [vmem:[%s311 + $0xe0] sm:$0xff] %vm3283, %v3279
      %3313 = vst.msk [vmem:[%s311 + $0xe8] sm:$0xff] %vm3283, %v3280
      %3314 = vst.msk [vmem:[%s311 + $0xf0] sm:$0xff] %vm3283, %v3281
      %3315 = vst.msk [vmem:[%s311 + $0xf8] sm:$0xff] %vm3283, %v3282
      %v3316 = vsel %vm3283, %v3251, 0.0
      %v3317 = vsel %vm3283, %v3252, 0.0
      %v3318 = vadd.f32 %v3316, %v3317
      %v3319 = vsel %vm3283, %v3253, 0.0
      %v3320 = vadd.f32 %v3318, %v3319
      %v3321 = vsel %vm3283, %v3254, 0.0
      %v3322 = vadd.f32 %v3320, %v3321
      %v3323 = vsel %vm3283, %v3255, 0.0
      %v3324 = vadd.f32 %v3322, %v3323
      %v3325 = vsel %vm3283, %v3256, 0.0
      %v3326 = vadd.f32 %v3324, %v3325
      %v3327 = vsel %vm3283, %v3257, 0.0
      %v3328 = vadd.f32 %v3326, %v3327
      %v3329 = vsel %vm3283, %v3258, 0.0
      %v3330 = vadd.f32 %v3328, %v3329
      %v3331 = vsel %vm3283, %v3259, 0.0
      %v3332 = vadd.f32 %v3330, %v3331
      %v3333 = vsel %vm3283, %v3260, 0.0
      %v3334 = vadd.f32 %v3332, %v3333
      %v3335 = vsel %vm3283, %v3261, 0.0
      %v3336 = vadd.f32 %v3334, %v3335
      %v3337 = vsel %vm3283, %v3262, 0.0
      %v3338 = vadd.f32 %v3336, %v3337
      %v3339 = vsel %vm3283, %v3263, 0.0
      %v3340 = vadd.f32 %v3338, %v3339
      %v3341 = vsel %vm3283, %v3264, 0.0
      %v3342 = vadd.f32 %v3340, %v3341
      %v3343 = vsel %vm3283, %v3265, 0.0
      %v3344 = vadd.f32 %v3342, %v3343
      %v3345 = vsel %vm3283, %v3266, 0.0
      %v3346 = vadd.f32 %v3344, %v3345
      %v3347 = vsel %vm3283, %v3267, 0.0
      %v3348 = vadd.f32 %v3346, %v3347
      %v3349 = vsel %vm3283, %v3268, 0.0
      %v3350 = vadd.f32 %v3348, %v3349
      %v3351 = vsel %vm3283, %v3269, 0.0
      %v3352 = vadd.f32 %v3350, %v3351
      %v3353 = vsel %vm3283, %v3270, 0.0
      %v3354 = vadd.f32 %v3352, %v3353
      %v3355 = vsel %vm3283, %v3271, 0.0
      %v3356 = vadd.f32 %v3354, %v3355
      %v3357 = vsel %vm3283, %v3272, 0.0
      %v3358 = vadd.f32 %v3356, %v3357
      %v3359 = vsel %vm3283, %v3273, 0.0
      %v3360 = vadd.f32 %v3358, %v3359
      %v3361 = vsel %vm3283, %v3274, 0.0
      %v3362 = vadd.f32 %v3360, %v3361
      %v3363 = vsel %vm3283, %v3275, 0.0
      %v3364 = vadd.f32 %v3362, %v3363
      %v3365 = vsel %vm3283, %v3276, 0.0
      %v3366 = vadd.f32 %v3364, %v3365
      %v3367 = vsel %vm3283, %v3277, 0.0
      %v3368 = vadd.f32 %v3366, %v3367
      %v3369 = vsel %vm3283, %v3278, 0.0
      %v3370 = vadd.f32 %v3368, %v3369
      %v3371 = vsel %vm3283, %v3279, 0.0
      %v3372 = vadd.f32 %v3370, %v3371
      %v3373 = vsel %vm3283, %v3280, 0.0
      %v3374 = vadd.f32 %v3372, %v3373
      %v3375 = vsel %vm3283, %v3281, 0.0
      %v3376 = vadd.f32 %v3374, %v3375
      %v3377 = vsel %vm3283, %v3282, 0.0
      %v3378 = vadd.f32 %v3376, %v3377
      %v3379 = vrot.slane %v3378, 4
      %v3380 = vadd.f32 %v3378, %v3379
      %v3381 = vrot.slane %v3380, 2
      %v3382 = vadd.f32 %v3380, %v3381
      %v3383 = vrot.slane %v3382, 1
      %v3384 = vadd.f32 %v3382, %v3383
      %v3385 = vrcp.pop 256.0
      %v3386 = vmul.f32 %v3384, %v3385
      %vm3387 = vcmask 253952
      %3388 = vst.msk [vmem:[%s314] sm:$0x1] %vm3387, %v3386
      %p3389 = scmp.lt.s32.totalorder %s20, 1
      %s3390 = scalar_select %p3389, %s20, 1
      %s3391 = smul.addr %s3390, 32
      %s3392 = smul.addr %s3391, 8
      %s3393 = scalar_lea.vmem %s7, %s3392
      %p3394 = scmp.lt.s32.totalorder %s20, 1
      %s3395 = scalar_select %p3394, %s20, 1
      %s3396 = scalar_lea.vmem %s8, %s3395
      // Predicated region
      $region49: #{mobilenet_block.3} parent=47 // pred_check
        %p3397 = pneg %p190
      $region50: #{mobilenet_block.3} parent=47 // pred_check_branch
        %3399 = sbr.rel (%p3397) target = $region52
      $region51: #{mobilenet_block.3} parent=47 // pred_region
        _
      $region52: #{mobilenet_block.3} parent=47 // pred_fallthru
        _
      // Predicated region
      $region53: #{mobilenet_block.3} parent=47 // pred_check
        %p3400 = pneg %p216
      $region54: #{mobilenet_block.3} parent=47 // pred_check_branch
        %3402 = sbr.rel (%p3400) target = $region56
      $region55: #{mobilenet_block.3} parent=47 // pred_region
        _
      $region56: #{mobilenet_block.3} parent=47 // pred_fallthru
        _
    $region48: #{mobilenet_block.3} parent=5 // pred_fallthru
      _
    %p3403 = scmp.le.s32.totalorder 2, %s15
    // Predicated region
    $region57: #{mobilenet_block.3} parent=5 // pred_check
      %p3404 = pneg %p3403
    $region58: #{mobilenet_block.3} parent=5 // pred_check_branch
      %3406 = sbr.rel (%p3404) target = $region60
    $region59: #{mobilenet_block.3} parent=5 // pred_region
      %s3407 = ssub.s32 %s15, 2
      // Predicated region
      $region61: #{mobilenet_block.3} parent=59 // pred_check
        %p3408 = pneg %p196
      $region62: #{mobilenet_block.3} parent=59 // pred_check_branch
        %3410 = sbr.rel (%p3408) target = $region64
      $region63: #{mobilenet_block.3} parent=59 // pred_region
        %p3411 = scmp.lt.s32.totalorder %s21, 1
        %s3412 = scalar_select %p3411, %s21, 1
        %s3413 = smul.addr %s3412, 32
        %s3414 = smul.addr %s3413, 8
        %s3415 = scalar_lea.vmem %s7, %s3414
      $region64: #{mobilenet_block.3} parent=59 // pred_fallthru
        _
      // Predicated region
      $region65: #{mobilenet_block.3} parent=59 // pred_check
        %p3416 = pneg %p222
      $region66: #{mobilenet_block.3} parent=59 // pred_check_branch
        %3418 = sbr.rel (%p3416) target = $region68
      $region67: #{mobilenet_block.3} parent=59 // pred_region
        %p3419 = scmp.lt.s32.totalorder %s21, 1
        %s3420 = scalar_select %p3419, %s21, 1
        %s3421 = scalar_lea.vmem %s8, %s3420
      $region68: #{mobilenet_block.3} parent=59 // pred_fallthru
        _
    $region60: #{mobilenet_block.3} parent=5 // pred_fallthru
      _
  $region6: #{mobilenet_block.3} parent=0 // loop_footer
    %s19 = sadd.s32 1, %s15
  $region7: #{mobilenet_block.3} parent=0 // loop_footer_branch
    %14 = sbr.rel target = $region3
  $region8: #{mobilenet_block.3} parent=0 // loop_exit
    _

</llo_original>
